<compile_context>
chip_gen: v7x
topology: tpu7x:2x2x1
jax: 0.10.0
libtpu: 0.0.40
codegen_flags: <defaults>
</compile_context>

<pallas_src>
import jax
import jax.numpy as jnp
from jax import lax
from jax.experimental import pallas as pl
from jax.experimental.pallas import tpu as pltpu
import numpy as np

# ----------------------------- config (small) --------------------------------
BATCH = 2          # B
SEQ = 8            # S
PAD_B = 8          # timestep slab padded to 8 sublanes (full (8,128) tiles)
ENC_HIDDEN = 256   # encoder hidden size (bert-base would be 768)
HIDDEN = 128       # LSTM hidden_size (module default 512, shrunk for test)
NUM_LAYERS = 2     # LSTM num_layers
VOCAB = 1024       # vocab size (bert-base would be 30522)


# ----------------------------- Pallas kernel ----------------------------------
def fused_lstm_fc_kernel(x_ref, wih0_ref, whh0_ref, b0_ref, b1_ref, fcb_ref,
                         wih1_hbm, whh1_hbm, fcw_hbm,
                         logits_ref,
                         gx_scr, act_scr, wih1_v, whh1_v, fcw_v, dma_sems):
    """Fused 2-layer LSTM + Linear head on time-major padded rows (row = t*8 + b).

    Gate packing is [i, f, o, g] (permuted offline from PyTorch's [i, f, g, o]):
        gates = x_t @ W_ih^T + h @ W_hh^T + (b_ih + b_hh)
        c = f*c + i*g ; h = o*tanh(c)
    All matmul operands are bf16 with f32 MXU accumulation; gates / h / c stay f32.
    Rows b >= BATCH of every timestep slab are zero-padding lanes (independent
    per-row LSTM math -> they never contaminate the valid rows).
    """
    S, PB, H = SEQ, PAD_B, HIDDEN

    # Kick off layer-1 / FC weight DMAs; they land under layer-0 compute.
    cp_wih1 = pltpu.make_async_copy(wih1_hbm, wih1_v, dma_sems.at[0])
    cp_whh1 = pltpu.make_async_copy(whh1_hbm, whh1_v, dma_sems.at[1])
    cp_fcw = pltpu.make_async_copy(fcw_hbm, fcw_v, dma_sems.at[2])
    cp_wih1.start()
    cp_whh1.start()
    cp_fcw.start()

    def run_layer(whh_ref):
        """Serial recurrence over S steps reading hoisted gates from gx_scr,
        writing h_t (bf16) into act_scr.  Statically unrolled; every slab slice
        is 8-sublane aligned."""
        h = jnp.zeros((PB, H), jnp.float32)
        c = jnp.zeros((PB, H), jnp.float32)
        for t in range(S):
            g = gx_scr[t * PB:(t + 1) * PB, :] + jnp.dot(
                h.astype(jnp.bfloat16), whh_ref[...],
                preferred_element_type=jnp.float32)
            sig = jax.nn.sigmoid(g[:, 0:3 * H])          # [i | f | o] in one shot
            i_g = sig[:, 0:H]
            f_g = sig[:, H:2 * H]
            o_g = sig[:, 2 * H:3 * H]
            u = jnp.tanh(g[:, 3 * H:4 * H])              # g gate
            c = f_g * c + i_g * u
            h = o_g * jnp.tanh(c)
            act_scr[t * PB:(t + 1) * PB, :] = h.astype(jnp.bfloat16)

    # ---- layer 0: hoisted input projection (one M=S*8 GEMM, bias folded once) ----
    gx_scr[...] = (jnp.dot(x_ref[...], wih0_ref[...],
                           preferred_element_type=jnp.float32) + b0_ref[...])
    run_layer(whh0_ref)

    # ---- layer 1: input projection from the in-VMEM layer-0 activations ----
    cp_wih1.wait()
    gx_scr[...] = (jnp.dot(act_scr[...], wih1_v[...],
                           preferred_element_type=jnp.float32) + b1_ref[...])
    cp_whh1.wait()
    run_layer(whh1_v)

    # ---- fused FC head: full-vocab GEMM, one dense lane-full f32 store ----
    cp_fcw.wait()
    logits_ref[...] = (jnp.dot(act_scr[...], fcw_v[...],
                               preferred_element_type=jnp.float32)
                       + fcb_ref[...])


# ----------------------------- wrapper -----------------------------------------
def fused_lstm_fc_pallas(x_tm, layers, fc_w_t, fc_b2d):
    """x_tm: (S*PAD_B, D) bf16 time-major padded; returns (S*PAD_B, V) f32 logits."""
    SBp, D = x_tm.shape
    H, V = HIDDEN, VOCAB
    (wih0, whh0, b0), (wih1, whh1, b1) = layers
    return pl.pallas_call(
        fused_lstm_fc_kernel,
        out_shape=jax.ShapeDtypeStruct((SBp, V), jnp.float32),
        grid_spec=pltpu.PrefetchScalarGridSpec(
            num_scalar_prefetch=0,
            grid=(1,),
            in_specs=[
                pl.BlockSpec((SBp, D), lambda i: (0, 0)),       # x
                pl.BlockSpec(wih0.shape, lambda i: (0, 0)),     # W_ih layer 0
                pl.BlockSpec(whh0.shape, lambda i: (0, 0)),     # W_hh layer 0
                pl.BlockSpec(b0.shape, lambda i: (0, 0)),       # bias layer 0
                pl.BlockSpec(b1.shape, lambda i: (0, 0)),       # bias layer 1 (tiny)
                pl.BlockSpec(fc_b2d.shape, lambda i: (0, 0)),   # fc bias (tiny)
                pl.BlockSpec(memory_space=pl.ANY),              # W_ih layer 1 (manual DMA)
                pl.BlockSpec(memory_space=pl.ANY),              # W_hh layer 1 (manual DMA)
                pl.BlockSpec(memory_space=pl.ANY),              # fc weight   (manual DMA)
            ],
            out_specs=pl.BlockSpec((SBp, V), lambda i: (0, 0)),
            scratch_shapes=[
                pltpu.VMEM((SBp, 4 * H), jnp.float32),   # hoisted gates (reused per layer)
                pltpu.VMEM((SBp, H), jnp.bfloat16),      # inter-layer / FC-input activation
                pltpu.VMEM((H, 4 * H), jnp.bfloat16),    # W_ih layer 1 landing buffer
                pltpu.VMEM((H, 4 * H), jnp.bfloat16),    # W_hh layer 1 landing buffer
                pltpu.VMEM((H, V), jnp.bfloat16),        # fc weight landing buffer
                pltpu.SemaphoreType.DMA((3,)),
            ]),
        compiler_params=pltpu.CompilerParams(
            dimension_semantics=("arbitrary",)),
    )(x_tm, wih0, whh0, b0, b1, fc_b2d, wih1, whh1, fc_w_t)


# ----------------------------- params ------------------------------------------
def _permute_gates_ifog(w):
    """Reorder the 4H gate blocks from PyTorch's [i,f,g,o] to [i,f,o,g]."""
    H = HIDDEN
    return jnp.concatenate([w[0:H], w[H:2 * H], w[3 * H:4 * H], w[2 * H:3 * H]], axis=0)


def init_params(key):
    """Deterministic parameter init mimicking the PyTorch module's shapes."""
    ks = jax.random.split(key, 4 + 4 * NUM_LAYERS)
    p = {}
    # Encoder stand-in: token + position embeddings.
    p["tok_emb"] = 0.02 * jax.random.normal(ks[0], (VOCAB, ENC_HIDDEN), jnp.float32)
    p["pos_emb"] = 0.02 * jax.random.normal(ks[1], (SEQ, ENC_HIDDEN), jnp.float32)
    # LSTM layers (PyTorch: W_ih (4H, in), W_hh (4H, H), b_ih, b_hh (4H,)).
    k_lstm = 1.0 / np.sqrt(HIDDEN)
    lstm = []
    for l in range(NUM_LAYERS):
        in_size = ENC_HIDDEN if l == 0 else HIDDEN
        kk = ks[2 + 4 * l: 2 + 4 * (l + 1)]
        w_ih = jax.random.uniform(kk[0], (4 * HIDDEN, in_size), jnp.float32, -k_lstm, k_lstm)
        w_hh = jax.random.uniform(kk[1], (4 * HIDDEN, HIDDEN), jnp.float32, -k_lstm, k_lstm)
        b_ih = jax.random.uniform(kk[2], (4 * HIDDEN,), jnp.float32, -k_lstm, k_lstm)
        b_hh = jax.random.uniform(kk[3], (4 * HIDDEN,), jnp.float32, -k_lstm, k_lstm)
        lstm.append({
            # gate columns permuted to [i,f,o,g]; transposed so kernel does x @ W.
            "w_ih_t": _permute_gates_ifog(w_ih).T.astype(jnp.bfloat16),   # (in, 4H) bf16
            "w_hh_t": _permute_gates_ifog(w_hh).T.astype(jnp.bfloat16),   # (H, 4H)  bf16
            "bias": _permute_gates_ifog(b_ih + b_hh).reshape(1, 4 * HIDDEN),  # f32, folded
        })
    p["lstm"] = lstm
    # fc: Linear(HIDDEN, VOCAB)
    k_fc = 1.0 / np.sqrt(HIDDEN)
    p["fc_w_t"] = jax.random.uniform(ks[-2], (VOCAB, HIDDEN), jnp.float32,
                                     -k_fc, k_fc).T.astype(jnp.bfloat16)    # (H, V)
    p["fc_b2d"] = jax.random.uniform(ks[-1], (VOCAB,), jnp.float32,
                                     -k_fc, k_fc).reshape(1, VOCAB)         # (1, V) once
    return p


def transformer_rnn_forward(params, input_ids, attention_mask):
    """Forward pass matching TransformerRNN.forward: logits (B, S, VOCAB)."""
    del attention_mask  # TODO(synk): only used inside the real BERT encoder.
    B, S = input_ids.shape
    # Encoder stand-in (plain-JAX glue: gather + add).
    hidden_states = params["tok_emb"][input_ids] + params["pos_emb"][None, :S, :]  # (B,S,D)
    # Time-major, pad each timestep slab to 8 rows, flatten (tiny XLA glue).
    x_tm = jnp.transpose(hidden_states, (1, 0, 2))                         # (S,B,D)
    x_tm = jnp.pad(x_tm, ((0, 0), (0, PAD_B - B), (0, 0)))                 # (S,8,D)
    x_tm = x_tm.reshape(S * PAD_B, ENC_HIDDEN).astype(jnp.bfloat16)        # (S*8,D) bf16
    layers = tuple((l["w_ih_t"], l["w_hh_t"], l["bias"]) for l in params["lstm"])
    logits_tm = fused_lstm_fc_pallas(x_tm, layers, params["fc_w_t"], params["fc_b2d"])
    logits = logits_tm.reshape(S, PAD_B, VOCAB)[:, :B, :]                  # drop pad rows
    return jnp.transpose(logits, (1, 0, 2))                                # (B,S,V)


# ----------------------------- pure-JAX reference -------------------------------
def lstm_layer_ref(x_tm2d, w_ih_t, w_hh_t, bias2d, S, B):
    """Mirrors the kernel math exactly (bf16 matmul operands, f32 state, [i,f,o,g])."""
    H = HIDDEN
    gx = (jnp.dot(x_tm2d, w_ih_t, preferred_element_type=jnp.float32)
          + bias2d).reshape(S, B, 4 * H)

    def step(carry, g_x):
        h, c = carry
        g = g_x + jnp.dot(h.astype(jnp.bfloat16), w_hh_t,
                          preferred_element_type=jnp.float32)
        sig = jax.nn.sigmoid(g[:, 0:3 * H])
        i, f, o = sig[:, 0:H], sig[:, H:2 * H], sig[:, 2 * H:3 * H]
        u = jnp.tanh(g[:, 3 * H:4 * H])
        c = f * c + i * u
        h = o * jnp.tanh(c)
        return (h, c), h

    init = (jnp.zeros((B, H), jnp.float32), jnp.zeros((B, H), jnp.float32))
    _, ys = lax.scan(step, init, gx)
    return ys.reshape(S * B, H)   # f32, time-major


def forward_ref(params, input_ids, attention_mask):
    del attention_mask
    B, S = input_ids.shape
    hidden_states = params["tok_emb"][input_ids] + params["pos_emb"][None, :S, :]
    x = (jnp.transpose(hidden_states, (1, 0, 2))
         .reshape(S * B, ENC_HIDDEN).astype(jnp.bfloat16))
    for layer in params["lstm"]:
        y = lstm_layer_ref(x, layer["w_ih_t"], layer["w_hh_t"], layer["bias"], S, B)
        x = y.astype(jnp.bfloat16)
    logits = (jnp.dot(x, params["fc_w_t"], preferred_element_type=jnp.float32)
              + params["fc_b2d"])
    logits = logits.reshape(S, B, VOCAB)
    return jnp.transpose(logits, (1, 0, 2))


# ----------------------------- main ---------------------------------------------
if __name__ == "__main__":
    key = jax.random.PRNGKey(0)
    k_param, k_ids = jax.random.split(key)
    params = init_params(k_param)

    input_ids = jax.random.randint(k_ids, (BATCH, SEQ), 0, VOCAB, dtype=jnp.int32)
    attention_mask = jnp.ones((BATCH, SEQ), dtype=jnp.int32)

    out = transformer_rnn_forward(params, input_ids, attention_mask)
    out = jax.block_until_ready(out)
    assert out.shape == (BATCH, SEQ, VOCAB), out.shape

    ref = jax.block_until_ready(forward_ref(params, input_ids, attention_mask))
    np.testing.assert_allclose(np.asarray(out), np.asarray(ref), rtol=1e-3, atol=1e-3)

    print("KERNEL_OK")
</pallas_src>

<mosaic_0001>
module attributes {stable_mosaic.version = 11 : i64} {
  func.func @fused_lstm_fc_kernel(%arg0: i32, %arg1: memref<64x256xbf16, #tpu.memory_space<vmem>>, %arg2: memref<256x512xbf16, #tpu.memory_space<vmem>>, %arg3: memref<128x512xbf16, #tpu.memory_space<vmem>>, %arg4: memref<1x512xf32, #tpu.memory_space<vmem>>, %arg5: memref<1x512xf32, #tpu.memory_space<vmem>>, %arg6: memref<1x1024xf32, #tpu.memory_space<vmem>>, %arg7: memref<128x512xbf16, #tpu.memory_space<any>>, %arg8: memref<128x512xbf16, #tpu.memory_space<any>>, %arg9: memref<128x1024xbf16, #tpu.memory_space<any>>, %arg10: memref<64x1024xf32, #tpu.memory_space<vmem>>, %arg11: memref<64x512xf32, #tpu.memory_space<vmem>>, %arg12: memref<64x128xbf16, #tpu.memory_space<vmem>>, %arg13: memref<128x512xbf16, #tpu.memory_space<vmem>>, %arg14: memref<128x512xbf16, #tpu.memory_space<vmem>>, %arg15: memref<128x1024xbf16, #tpu.memory_space<vmem>>, %arg16: memref<3x!tpu.dma_semaphore, #tpu.memory_space<semaphore_mem>>) attributes {dimension_semantics = [#tpu.dimension_semantics<arbitrary>], iteration_bounds = array<i64: 1>, scalar_prefetch = 0 : i64, scratch_operands = 6 : i64, tpu.core_type = #tpu.core_type<tc>, window_params = [{pipeline_mode = #tpu.pipeline_mode<synchronous>, transform_indices = @transform_0, window_bounds = array<i64: 64, 256>}, {pipeline_mode = #tpu.pipeline_mode<synchronous>, transform_indices = @transform_1, window_bounds = array<i64: 256, 512>}, {pipeline_mode = #tpu.pipeline_mode<synchronous>, transform_indices = @transform_2, window_bounds = array<i64: 128, 512>}, {pipeline_mode = #tpu.pipeline_mode<synchronous>, transform_indices = @transform_3, window_bounds = array<i64: 1, 512>}, {pipeline_mode = #tpu.pipeline_mode<synchronous>, transform_indices = @transform_4, window_bounds = array<i64: 1, 512>}, {pipeline_mode = #tpu.pipeline_mode<synchronous>, transform_indices = @transform_5, window_bounds = array<i64: 1, 1024>}, {}, {}, {}, {pipeline_mode = #tpu.pipeline_mode<synchronous>, transform_indices = @transform_9, window_bounds = array<i64: 64, 1024>}]} {
    %c0_i32 = arith.constant 0 : i32
    %0 = tpu.memref_slice %arg16[%c0_i32] : memref<3x!tpu.dma_semaphore, #tpu.memory_space<semaphore_mem>> -> memref<1x!tpu.dma_semaphore, #tpu.memory_space<semaphore_mem>>
    %1 = tpu.memref_squeeze %0 : memref<1x!tpu.dma_semaphore, #tpu.memory_space<semaphore_mem>> -> memref<!tpu.dma_semaphore, #tpu.memory_space<semaphore_mem>>
    tpu.enqueue_dma source(%arg7 : memref<128x512xbf16, #tpu.memory_space<any>>) target(%arg13 : memref<128x512xbf16, #tpu.memory_space<vmem>>) target_semaphore(%1 : memref<!tpu.dma_semaphore, #tpu.memory_space<semaphore_mem>>)
    %c1_i32 = arith.constant 1 : i32
    %2 = tpu.memref_slice %arg16[%c1_i32] : memref<3x!tpu.dma_semaphore, #tpu.memory_space<semaphore_mem>> -> memref<1x!tpu.dma_semaphore, #tpu.memory_space<semaphore_mem>>
    %3 = tpu.memref_squeeze %2 : memref<1x!tpu.dma_semaphore, #tpu.memory_space<semaphore_mem>> -> memref<!tpu.dma_semaphore, #tpu.memory_space<semaphore_mem>>
    tpu.enqueue_dma source(%arg8 : memref<128x512xbf16, #tpu.memory_space<any>>) target(%arg14 : memref<128x512xbf16, #tpu.memory_space<vmem>>) target_semaphore(%3 : memref<!tpu.dma_semaphore, #tpu.memory_space<semaphore_mem>>)
    %c2_i32 = arith.constant 2 : i32
    %4 = tpu.memref_slice %arg16[%c2_i32] : memref<3x!tpu.dma_semaphore, #tpu.memory_space<semaphore_mem>> -> memref<1x!tpu.dma_semaphore, #tpu.memory_space<semaphore_mem>>
    %5 = tpu.memref_squeeze %4 : memref<1x!tpu.dma_semaphore, #tpu.memory_space<semaphore_mem>> -> memref<!tpu.dma_semaphore, #tpu.memory_space<semaphore_mem>>
    tpu.enqueue_dma source(%arg9 : memref<128x1024xbf16, #tpu.memory_space<any>>) target(%arg15 : memref<128x1024xbf16, #tpu.memory_space<vmem>>) target_semaphore(%5 : memref<!tpu.dma_semaphore, #tpu.memory_space<semaphore_mem>>)
    %c0 = arith.constant 0 : index
    %c0_0 = arith.constant 0 : index
    %6 = vector.load %arg1[%c0, %c0_0] : memref<64x256xbf16, #tpu.memory_space<vmem>>, vector<64x256xbf16>
    %c0_1 = arith.constant 0 : index
    %c0_2 = arith.constant 0 : index
    %7 = vector.load %arg2[%c0_1, %c0_2] : memref<256x512xbf16, #tpu.memory_space<vmem>>, vector<256x512xbf16>
    %cst = arith.constant dense<0.000000e+00> : vector<64x512xf32>
    %8 = tpu.matmul %6, %7, %cst {dimension_numbers = #tpu.dot_dimension_numbers<[1], [0], [0], [1], [0, 0, 1, 1], [], []>} : vector<64x256xbf16>, vector<256x512xbf16>, vector<64x512xf32> -> vector<64x512xf32>
    %c0_3 = arith.constant 0 : index
    %c0_4 = arith.constant 0 : index
    %9 = vector.load %arg4[%c0_3, %c0_4] : memref<1x512xf32, #tpu.memory_space<vmem>>, vector<1x512xf32>
    %10 = vector.broadcast %9 : vector<1x512xf32> to vector<64x512xf32>
    %11 = arith.addf %8, %10 : vector<64x512xf32>
    %c0_5 = arith.constant 0 : index
    %c0_6 = arith.constant 0 : index
    %12 = vector.load %arg11[%c0_5, %c0_6] : memref<64x512xf32, #tpu.memory_space<vmem>>, vector<64x512xf32>
    tpu.vector_store %arg11[%c0_5, %c0_6], %11 {strides = array<i32>} : memref<64x512xf32, #tpu.memory_space<vmem>>, vector<64x512xf32>,
    %cst_7 = arith.constant 0.000000e+00 : f32
    %13 = vector.broadcast %cst_7 : f32 to vector<8x128xf32>
    %cst_8 = arith.constant 0.000000e+00 : f32
    %14 = vector.broadcast %cst_8 : f32 to vector<8x128xf32>
    %c0_9 = arith.constant 0 : index
    %c0_10 = arith.constant 0 : index
    %15 = vector.load %arg11[%c0_9, %c0_10] : memref<64x512xf32, #tpu.memory_space<vmem>>, vector<8x512xf32>
    %16 = arith.truncf %13 : vector<8x128xf32> to vector<8x128xbf16>
    %c0_11 = arith.constant 0 : index
    %c0_12 = arith.constant 0 : index
    %17 = vector.load %arg3[%c0_11, %c0_12] : memref<128x512xbf16, #tpu.memory_space<vmem>>, vector<128x512xbf16>
    %cst_13 = arith.constant dense<0.000000e+00> : vector<8x512xf32>
    %18 = tpu.matmul %16, %17, %cst_13 {dimension_numbers = #tpu.dot_dimension_numbers<[1], [0], [0], [1], [0, 0, 1, 1], [], []>} : vector<8x128xbf16>, vector<128x512xbf16>, vector<8x512xf32> -> vector<8x512xf32>
    %19 = arith.addf %15, %18 : vector<8x512xf32>
    %20 = vector.extract_strided_slice %19 {offsets = [0, 0], sizes = [8, 384], strides = [1, 1]} : vector<8x512xf32> to vector<8x384xf32>
    %21 = arith.negf %20 : vector<8x384xf32>
    %22 = math.exp %21 : vector<8x384xf32>
    %cst_14 = arith.constant 1.000000e+00 : f32
    %23 = vector.broadcast %cst_14 : f32 to vector<8x384xf32>
    %24 = arith.addf %23, %22 : vector<8x384xf32>
    %25 = arith.divf %23, %24 : vector<8x384xf32>
    %26 = vector.extract_strided_slice %25 {offsets = [0, 0], sizes = [8, 128], strides = [1, 1]} : vector<8x384xf32> to vector<8x128xf32>
    %27 = vector.extract_strided_slice %25 {offsets = [0, 128], sizes = [8, 128], strides = [1, 1]} : vector<8x384xf32> to vector<8x128xf32>
    %28 = vector.extract_strided_slice %25 {offsets = [0, 256], sizes = [8, 128], strides = [1, 1]} : vector<8x384xf32> to vector<8x128xf32>
    %29 = vector.extract_strided_slice %19 {offsets = [0, 384], sizes = [8, 128], strides = [1, 1]} : vector<8x512xf32> to vector<8x128xf32>
    %30 = math.tanh %29 : vector<8x128xf32>
    %31 = arith.mulf %27, %14 : vector<8x128xf32>
    %32 = arith.mulf %26, %30 : vector<8x128xf32>
    %33 = arith.addf %31, %32 : vector<8x128xf32>
    %34 = math.tanh %33 : vector<8x128xf32>
    %35 = arith.mulf %28, %34 : vector<8x128xf32>
    %36 = arith.truncf %35 : vector<8x128xf32> to vector<8x128xbf16>
    %c0_15 = arith.constant 0 : index
    %c0_16 = arith.constant 0 : index
    %37 = vector.load %arg12[%c0_15, %c0_16] : memref<64x128xbf16, #tpu.memory_space<vmem>>, vector<8x128xbf16>
    tpu.vector_store %arg12[%c0_15, %c0_16], %36 {strides = array<i32>} : memref<64x128xbf16, #tpu.memory_space<vmem>>, vector<8x128xbf16>,
    %c8 = arith.constant 8 : index
    %c0_17 = arith.constant 0 : index
    %38 = vector.load %arg11[%c8, %c0_17] : memref<64x512xf32, #tpu.memory_space<vmem>>, vector<8x512xf32>
    %39 = arith.truncf %35 : vector<8x128xf32> to vector<8x128xbf16>
    %c0_18 = arith.constant 0 : index
    %c0_19 = arith.constant 0 : index
    %40 = vector.load %arg3[%c0_18, %c0_19] : memref<128x512xbf16, #tpu.memory_space<vmem>>, vector<128x512xbf16>
    %cst_20 = arith.constant dense<0.000000e+00> : vector<8x512xf32>
    %41 = tpu.matmul %39, %40, %cst_20 {dimension_numbers = #tpu.dot_dimension_numbers<[1], [0], [0], [1], [0, 0, 1, 1], [], []>} : vector<8x128xbf16>, vector<128x512xbf16>, vector<8x512xf32> -> vector<8x512xf32>
    %42 = arith.addf %38, %41 : vector<8x512xf32>
    %43 = vector.extract_strided_slice %42 {offsets = [0, 0], sizes = [8, 384], strides = [1, 1]} : vector<8x512xf32> to vector<8x384xf32>
    %44 = arith.negf %43 : vector<8x384xf32>
    %45 = math.exp %44 : vector<8x384xf32>
    %cst_21 = arith.constant 1.000000e+00 : f32
    %46 = vector.broadcast %cst_21 : f32 to vector<8x384xf32>
    %47 = arith.addf %46, %45 : vector<8x384xf32>
    %48 = arith.divf %46, %47 : vector<8x384xf32>
    %49 = vector.extract_strided_slice %48 {offsets = [0, 0], sizes = [8, 128], strides = [1, 1]} : vector<8x384xf32> to vector<8x128xf32>
    %50 = vector.extract_strided_slice %48 {offsets = [0, 128], sizes = [8, 128], strides = [1, 1]} : vector<8x384xf32> to vector<8x128xf32>
    %51 = vector.extract_strided_slice %48 {offsets = [0, 256], sizes = [8, 128], strides = [1, 1]} : vector<8x384xf32> to vector<8x128xf32>
    %52 = vector.extract_strided_slice %42 {offsets = [0, 384], sizes = [8, 128], strides = [1, 1]} : vector<8x512xf32> to vector<8x128xf32>
    %53 = math.tanh %52 : vector<8x128xf32>
    %54 = arith.mulf %50, %33 : vector<8x128xf32>
    %55 = arith.mulf %49, %53 : vector<8x128xf32>
    %56 = arith.addf %54, %55 : vector<8x128xf32>
    %57 = math.tanh %56 : vector<8x128xf32>
    %58 = arith.mulf %51, %57 : vector<8x128xf32>
    %59 = arith.truncf %58 : vector<8x128xf32> to vector<8x128xbf16>
    %c8_22 = arith.constant 8 : index
    %c0_23 = arith.constant 0 : index
    %60 = vector.load %arg12[%c8_22, %c0_23] : memref<64x128xbf16, #tpu.memory_space<vmem>>, vector<8x128xbf16>
    tpu.vector_store %arg12[%c8_22, %c0_23], %59 {strides = array<i32>} : memref<64x128xbf16, #tpu.memory_space<vmem>>, vector<8x128xbf16>,
    %c16 = arith.constant 16 : index
    %c0_24 = arith.constant 0 : index
    %61 = vector.load %arg11[%c16, %c0_24] : memref<64x512xf32, #tpu.memory_space<vmem>>, vector<8x512xf32>
    %62 = arith.truncf %58 : vector<8x128xf32> to vector<8x128xbf16>
    %c0_25 = arith.constant 0 : index
    %c0_26 = arith.constant 0 : index
    %63 = vector.load %arg3[%c0_25, %c0_26] : memref<128x512xbf16, #tpu.memory_space<vmem>>, vector<128x512xbf16>
    %cst_27 = arith.constant dense<0.000000e+00> : vector<8x512xf32>
    %64 = tpu.matmul %62, %63, %cst_27 {dimension_numbers = #tpu.dot_dimension_numbers<[1], [0], [0], [1], [0, 0, 1, 1], [], []>} : vector<8x128xbf16>, vector<128x512xbf16>, vector<8x512xf32> -> vector<8x512xf32>
    %65 = arith.addf %61, %64 : vector<8x512xf32>
    %66 = vector.extract_strided_slice %65 {offsets = [0, 0], sizes = [8, 384], strides = [1, 1]} : vector<8x512xf32> to vector<8x384xf32>
    %67 = arith.negf %66 : vector<8x384xf32>
    %68 = math.exp %67 : vector<8x384xf32>
    %cst_28 = arith.constant 1.000000e+00 : f32
    %69 = vector.broadcast %cst_28 : f32 to vector<8x384xf32>
    %70 = arith.addf %69, %68 : vector<8x384xf32>
    %71 = arith.divf %69, %70 : vector<8x384xf32>
    %72 = vector.extract_strided_slice %71 {offsets = [0, 0], sizes = [8, 128], strides = [1, 1]} : vector<8x384xf32> to vector<8x128xf32>
    %73 = vector.extract_strided_slice %71 {offsets = [0, 128], sizes = [8, 128], strides = [1, 1]} : vector<8x384xf32> to vector<8x128xf32>
    %74 = vector.extract_strided_slice %71 {offsets = [0, 256], sizes = [8, 128], strides = [1, 1]} : vector<8x384xf32> to vector<8x128xf32>
    %75 = vector.extract_strided_slice %65 {offsets = [0, 384], sizes = [8, 128], strides = [1, 1]} : vector<8x512xf32> to vector<8x128xf32>
    %76 = math.tanh %75 : vector<8x128xf32>
    %77 = arith.mulf %73, %56 : vector<8x128xf32>
    %78 = arith.mulf %72, %76 : vector<8x128xf32>
    %79 = arith.addf %77, %78 : vector<8x128xf32>
    %80 = math.tanh %79 : vector<8x128xf32>
    %81 = arith.mulf %74, %80 : vector<8x128xf32>
    %82 = arith.truncf %81 : vector<8x128xf32> to vector<8x128xbf16>
    %c16_29 = arith.constant 16 : index
    %c0_30 = arith.constant 0 : index
    %83 = vector.load %arg12[%c16_29, %c0_30] : memref<64x128xbf16, #tpu.memory_space<vmem>>, vector<8x128xbf16>
    tpu.vector_store %arg12[%c16_29, %c0_30], %82 {strides = array<i32>} : memref<64x128xbf16, #tpu.memory_space<vmem>>, vector<8x128xbf16>,
    %c24 = arith.constant 24 : index
    %c0_31 = arith.constant 0 : index
    %84 = vector.load %arg11[%c24, %c0_31] : memref<64x512xf32, #tpu.memory_space<vmem>>, vector<8x512xf32>
    %85 = arith.truncf %81 : vector<8x128xf32> to vector<8x128xbf16>
    %c0_32 = arith.constant 0 : index
    %c0_33 = arith.constant 0 : index
    %86 = vector.load %arg3[%c0_32, %c0_33] : memref<128x512xbf16, #tpu.memory_space<vmem>>, vector<128x512xbf16>
    %cst_34 = arith.constant dense<0.000000e+00> : vector<8x512xf32>
    %87 = tpu.matmul %85, %86, %cst_34 {dimension_numbers = #tpu.dot_dimension_numbers<[1], [0], [0], [1], [0, 0, 1, 1], [], []>} : vector<8x128xbf16>, vector<128x512xbf16>, vector<8x512xf32> -> vector<8x512xf32>
    %88 = arith.addf %84, %87 : vector<8x512xf32>
    %89 = vector.extract_strided_slice %88 {offsets = [0, 0], sizes = [8, 384], strides = [1, 1]} : vector<8x512xf32> to vector<8x384xf32>
    %90 = arith.negf %89 : vector<8x384xf32>
    %91 = math.exp %90 : vector<8x384xf32>
    %cst_35 = arith.constant 1.000000e+00 : f32
    %92 = vector.broadcast %cst_35 : f32 to vector<8x384xf32>
    %93 = arith.addf %92, %91 : vector<8x384xf32>
    %94 = arith.divf %92, %93 : vector<8x384xf32>
    %95 = vector.extract_strided_slice %94 {offsets = [0, 0], sizes = [8, 128], strides = [1, 1]} : vector<8x384xf32> to vector<8x128xf32>
    %96 = vector.extract_strided_slice %94 {offsets = [0, 128], sizes = [8, 128], strides = [1, 1]} : vector<8x384xf32> to vector<8x128xf32>
    %97 = vector.extract_strided_slice %94 {offsets = [0, 256], sizes = [8, 128], strides = [1, 1]} : vector<8x384xf32> to vector<8x128xf32>
    %98 = vector.extract_strided_slice %88 {offsets = [0, 384], sizes = [8, 128], strides = [1, 1]} : vector<8x512xf32> to vector<8x128xf32>
    %99 = math.tanh %98 : vector<8x128xf32>
    %100 = arith.mulf %96, %79 : vector<8x128xf32>
    %101 = arith.mulf %95, %99 : vector<8x128xf32>
    %102 = arith.addf %100, %101 : vector<8x128xf32>
    %103 = math.tanh %102 : vector<8x128xf32>
    %104 = arith.mulf %97, %103 : vector<8x128xf32>
    %105 = arith.truncf %104 : vector<8x128xf32> to vector<8x128xbf16>
    %c24_36 = arith.constant 24 : index
    %c0_37 = arith.constant 0 : index
    %106 = vector.load %arg12[%c24_36, %c0_37] : memref<64x128xbf16, #tpu.memory_space<vmem>>, vector<8x128xbf16>
    tpu.vector_store %arg12[%c24_36, %c0_37], %105 {strides = array<i32>} : memref<64x128xbf16, #tpu.memory_space<vmem>>, vector<8x128xbf16>,
    %c32 = arith.constant 32 : index
    %c0_38 = arith.constant 0 : index
    %107 = vector.load %arg11[%c32, %c0_38] : memref<64x512xf32, #tpu.memory_space<vmem>>, vector<8x512xf32>
    %108 = arith.truncf %104 : vector<8x128xf32> to vector<8x128xbf16>
    %c0_39 = arith.constant 0 : index
    %c0_40 = arith.constant 0 : index
    %109 = vector.load %arg3[%c0_39, %c0_40] : memref<128x512xbf16, #tpu.memory_space<vmem>>, vector<128x512xbf16>
    %cst_41 = arith.constant dense<0.000000e+00> : vector<8x512xf32>
    %110 = tpu.matmul %108, %109, %cst_41 {dimension_numbers = #tpu.dot_dimension_numbers<[1], [0], [0], [1], [0, 0, 1, 1], [], []>} : vector<8x128xbf16>, vector<128x512xbf16>, vector<8x512xf32> -> vector<8x512xf32>
    %111 = arith.addf %107, %110 : vector<8x512xf32>
    %112 = vector.extract_strided_slice %111 {offsets = [0, 0], sizes = [8, 384], strides = [1, 1]} : vector<8x512xf32> to vector<8x384xf32>
    %113 = arith.negf %112 : vector<8x384xf32>
    %114 = math.exp %113 : vector<8x384xf32>
    %cst_42 = arith.constant 1.000000e+00 : f32
    %115 = vector.broadcast %cst_42 : f32 to vector<8x384xf32>
    %116 = arith.addf %115, %114 : vector<8x384xf32>
    %117 = arith.divf %115, %116 : vector<8x384xf32>
    %118 = vector.extract_strided_slice %117 {offsets = [0, 0], sizes = [8, 128], strides = [1, 1]} : vector<8x384xf32> to vector<8x128xf32>
    %119 = vector.extract_strided_slice %117 {offsets = [0, 128], sizes = [8, 128], strides = [1, 1]} : vector<8x384xf32> to vector<8x128xf32>
    %120 = vector.extract_strided_slice %117 {offsets = [0, 256], sizes = [8, 128], strides = [1, 1]} : vector<8x384xf32> to vector<8x128xf32>
    %121 = vector.extract_strided_slice %111 {offsets = [0, 384], sizes = [8, 128], strides = [1, 1]} : vector<8x512xf32> to vector<8x128xf32>
    %122 = math.tanh %121 : vector<8x128xf32>
    %123 = arith.mulf %119, %102 : vector<8x128xf32>
    %124 = arith.mulf %118, %122 : vector<8x128xf32>
    %125 = arith.addf %123, %124 : vector<8x128xf32>
    %126 = math.tanh %125 : vector<8x128xf32>
    %127 = arith.mulf %120, %126 : vector<8x128xf32>
    %128 = arith.truncf %127 : vector<8x128xf32> to vector<8x128xbf16>
    %c32_43 = arith.constant 32 : index
    %c0_44 = arith.constant 0 : index
    %129 = vector.load %arg12[%c32_43, %c0_44] : memref<64x128xbf16, #tpu.memory_space<vmem>>, vector<8x128xbf16>
    tpu.vector_store %arg12[%c32_43, %c0_44], %128 {strides = array<i32>} : memref<64x128xbf16, #tpu.memory_space<vmem>>, vector<8x128xbf16>,
    %c40 = arith.constant 40 : index
    %c0_45 = arith.constant 0 : index
    %130 = vector.load %arg11[%c40, %c0_45] : memref<64x512xf32, #tpu.memory_space<vmem>>, vector<8x512xf32>
    %131 = arith.truncf %127 : vector<8x128xf32> to vector<8x128xbf16>
    %c0_46 = arith.constant 0 : index
    %c0_47 = arith.constant 0 : index
    %132 = vector.load %arg3[%c0_46, %c0_47] : memref<128x512xbf16, #tpu.memory_space<vmem>>, vector<128x512xbf16>
    %cst_48 = arith.constant dense<0.000000e+00> : vector<8x512xf32>
    %133 = tpu.matmul %131, %132, %cst_48 {dimension_numbers = #tpu.dot_dimension_numbers<[1], [0], [0], [1], [0, 0, 1, 1], [], []>} : vector<8x128xbf16>, vector<128x512xbf16>, vector<8x512xf32> -> vector<8x512xf32>
    %134 = arith.addf %130, %133 : vector<8x512xf32>
    %135 = vector.extract_strided_slice %134 {offsets = [0, 0], sizes = [8, 384], strides = [1, 1]} : vector<8x512xf32> to vector<8x384xf32>
    %136 = arith.negf %135 : vector<8x384xf32>
    %137 = math.exp %136 : vector<8x384xf32>
    %cst_49 = arith.constant 1.000000e+00 : f32
    %138 = vector.broadcast %cst_49 : f32 to vector<8x384xf32>
    %139 = arith.addf %138, %137 : vector<8x384xf32>
    %140 = arith.divf %138, %139 : vector<8x384xf32>
    %141 = vector.extract_strided_slice %140 {offsets = [0, 0], sizes = [8, 128], strides = [1, 1]} : vector<8x384xf32> to vector<8x128xf32>
    %142 = vector.extract_strided_slice %140 {offsets = [0, 128], sizes = [8, 128], strides = [1, 1]} : vector<8x384xf32> to vector<8x128xf32>
    %143 = vector.extract_strided_slice %140 {offsets = [0, 256], sizes = [8, 128], strides = [1, 1]} : vector<8x384xf32> to vector<8x128xf32>
    %144 = vector.extract_strided_slice %134 {offsets = [0, 384], sizes = [8, 128], strides = [1, 1]} : vector<8x512xf32> to vector<8x128xf32>
    %145 = math.tanh %144 : vector<8x128xf32>
    %146 = arith.mulf %142, %125 : vector<8x128xf32>
    %147 = arith.mulf %141, %145 : vector<8x128xf32>
    %148 = arith.addf %146, %147 : vector<8x128xf32>
    %149 = math.tanh %148 : vector<8x128xf32>
    %150 = arith.mulf %143, %149 : vector<8x128xf32>
    %151 = arith.truncf %150 : vector<8x128xf32> to vector<8x128xbf16>
    %c40_50 = arith.constant 40 : index
    %c0_51 = arith.constant 0 : index
    %152 = vector.load %arg12[%c40_50, %c0_51] : memref<64x128xbf16, #tpu.memory_space<vmem>>, vector<8x128xbf16>
    tpu.vector_store %arg12[%c40_50, %c0_51], %151 {strides = array<i32>} : memref<64x128xbf16, #tpu.memory_space<vmem>>, vector<8x128xbf16>,
    %c48 = arith.constant 48 : index
    %c0_52 = arith.constant 0 : index
    %153 = vector.load %arg11[%c48, %c0_52] : memref<64x512xf32, #tpu.memory_space<vmem>>, vector<8x512xf32>
    %154 = arith.truncf %150 : vector<8x128xf32> to vector<8x128xbf16>
    %c0_53 = arith.constant 0 : index
    %c0_54 = arith.constant 0 : index
    %155 = vector.load %arg3[%c0_53, %c0_54] : memref<128x512xbf16, #tpu.memory_space<vmem>>, vector<128x512xbf16>
    %cst_55 = arith.constant dense<0.000000e+00> : vector<8x512xf32>
    %156 = tpu.matmul %154, %155, %cst_55 {dimension_numbers = #tpu.dot_dimension_numbers<[1], [0], [0], [1], [0, 0, 1, 1], [], []>} : vector<8x128xbf16>, vector<128x512xbf16>, vector<8x512xf32> -> vector<8x512xf32>
    %157 = arith.addf %153, %156 : vector<8x512xf32>
    %158 = vector.extract_strided_slice %157 {offsets = [0, 0], sizes = [8, 384], strides = [1, 1]} : vector<8x512xf32> to vector<8x384xf32>
    %159 = arith.negf %158 : vector<8x384xf32>
    %160 = math.exp %159 : vector<8x384xf32>
    %cst_56 = arith.constant 1.000000e+00 : f32
    %161 = vector.broadcast %cst_56 : f32 to vector<8x384xf32>
    %162 = arith.addf %161, %160 : vector<8x384xf32>
    %163 = arith.divf %161, %162 : vector<8x384xf32>
    %164 = vector.extract_strided_slice %163 {offsets = [0, 0], sizes = [8, 128], strides = [1, 1]} : vector<8x384xf32> to vector<8x128xf32>
    %165 = vector.extract_strided_slice %163 {offsets = [0, 128], sizes = [8, 128], strides = [1, 1]} : vector<8x384xf32> to vector<8x128xf32>
    %166 = vector.extract_strided_slice %163 {offsets = [0, 256], sizes = [8, 128], strides = [1, 1]} : vector<8x384xf32> to vector<8x128xf32>
    %167 = vector.extract_strided_slice %157 {offsets = [0, 384], sizes = [8, 128], strides = [1, 1]} : vector<8x512xf32> to vector<8x128xf32>
    %168 = math.tanh %167 : vector<8x128xf32>
    %169 = arith.mulf %165, %148 : vector<8x128xf32>
    %170 = arith.mulf %164, %168 : vector<8x128xf32>
    %171 = arith.addf %169, %170 : vector<8x128xf32>
    %172 = math.tanh %171 : vector<8x128xf32>
    %173 = arith.mulf %166, %172 : vector<8x128xf32>
    %174 = arith.truncf %173 : vector<8x128xf32> to vector<8x128xbf16>
    %c48_57 = arith.constant 48 : index
    %c0_58 = arith.constant 0 : index
    %175 = vector.load %arg12[%c48_57, %c0_58] : memref<64x128xbf16, #tpu.memory_space<vmem>>, vector<8x128xbf16>
    tpu.vector_store %arg12[%c48_57, %c0_58], %174 {strides = array<i32>} : memref<64x128xbf16, #tpu.memory_space<vmem>>, vector<8x128xbf16>,
    %c56 = arith.constant 56 : index
    %c0_59 = arith.constant 0 : index
    %176 = vector.load %arg11[%c56, %c0_59] : memref<64x512xf32, #tpu.memory_space<vmem>>, vector<8x512xf32>
    %177 = arith.truncf %173 : vector<8x128xf32> to vector<8x128xbf16>
    %c0_60 = arith.constant 0 : index
    %c0_61 = arith.constant 0 : index
    %178 = vector.load %arg3[%c0_60, %c0_61] : memref<128x512xbf16, #tpu.memory_space<vmem>>, vector<128x512xbf16>
    %cst_62 = arith.constant dense<0.000000e+00> : vector<8x512xf32>
    %179 = tpu.matmul %177, %178, %cst_62 {dimension_numbers = #tpu.dot_dimension_numbers<[1], [0], [0], [1], [0, 0, 1, 1], [], []>} : vector<8x128xbf16>, vector<128x512xbf16>, vector<8x512xf32> -> vector<8x512xf32>
    %180 = arith.addf %176, %179 : vector<8x512xf32>
    %181 = vector.extract_strided_slice %180 {offsets = [0, 0], sizes = [8, 384], strides = [1, 1]} : vector<8x512xf32> to vector<8x384xf32>
    %182 = arith.negf %181 : vector<8x384xf32>
    %183 = math.exp %182 : vector<8x384xf32>
    %cst_63 = arith.constant 1.000000e+00 : f32
    %184 = vector.broadcast %cst_63 : f32 to vector<8x384xf32>
    %185 = arith.addf %184, %183 : vector<8x384xf32>
    %186 = arith.divf %184, %185 : vector<8x384xf32>
    %187 = vector.extract_strided_slice %186 {offsets = [0, 0], sizes = [8, 128], strides = [1, 1]} : vector<8x384xf32> to vector<8x128xf32>
    %188 = vector.extract_strided_slice %186 {offsets = [0, 128], sizes = [8, 128], strides = [1, 1]} : vector<8x384xf32> to vector<8x128xf32>
    %189 = vector.extract_strided_slice %186 {offsets = [0, 256], sizes = [8, 128], strides = [1, 1]} : vector<8x384xf32> to vector<8x128xf32>
    %190 = vector.extract_strided_slice %180 {offsets = [0, 384], sizes = [8, 128], strides = [1, 1]} : vector<8x512xf32> to vector<8x128xf32>
    %191 = math.tanh %190 : vector<8x128xf32>
    %192 = arith.mulf %188, %171 : vector<8x128xf32>
    %193 = arith.mulf %187, %191 : vector<8x128xf32>
    %194 = arith.addf %192, %193 : vector<8x128xf32>
    %195 = math.tanh %194 : vector<8x128xf32>
    %196 = arith.mulf %189, %195 : vector<8x128xf32>
    %197 = arith.truncf %196 : vector<8x128xf32> to vector<8x128xbf16>
    %c56_64 = arith.constant 56 : index
    %c0_65 = arith.constant 0 : index
    %198 = vector.load %arg12[%c56_64, %c0_65] : memref<64x128xbf16, #tpu.memory_space<vmem>>, vector<8x128xbf16>
    tpu.vector_store %arg12[%c56_64, %c0_65], %197 {strides = array<i32>} : memref<64x128xbf16, #tpu.memory_space<vmem>>, vector<8x128xbf16>,
    %c0_i32_66 = arith.constant 0 : i32
    %199 = tpu.memref_slice %arg16[%c0_i32_66] : memref<3x!tpu.dma_semaphore, #tpu.memory_space<semaphore_mem>> -> memref<1x!tpu.dma_semaphore, #tpu.memory_space<semaphore_mem>>
    %200 = tpu.memref_squeeze %199 : memref<1x!tpu.dma_semaphore, #tpu.memory_space<semaphore_mem>> -> memref<!tpu.dma_semaphore, #tpu.memory_space<semaphore_mem>>
    tpu.wait_dma2 semaphore(%200 : memref<!tpu.dma_semaphore, #tpu.memory_space<semaphore_mem>>) src(%arg7 : memref<128x512xbf16, #tpu.memory_space<any>>) dst(%arg13 : memref<128x512xbf16, #tpu.memory_space<vmem>>)
    %c0_67 = arith.constant 0 : index
    %c0_68 = arith.constant 0 : index
    %201 = vector.load %arg12[%c0_67, %c0_68] : memref<64x128xbf16, #tpu.memory_space<vmem>>, vector<64x128xbf16>
    %c0_69 = arith.constant 0 : index
    %c0_70 = arith.constant 0 : index
    %202 = vector.load %arg13[%c0_69, %c0_70] : memref<128x512xbf16, #tpu.memory_space<vmem>>, vector<128x512xbf16>
    %cst_71 = arith.constant dense<0.000000e+00> : vector<64x512xf32>
    %203 = tpu.matmul %201, %202, %cst_71 {dimension_numbers = #tpu.dot_dimension_numbers<[1], [0], [0], [1], [0, 0, 1, 1], [], []>} : vector<64x128xbf16>, vector<128x512xbf16>, vector<64x512xf32> -> vector<64x512xf32>
    %c0_72 = arith.constant 0 : index
    %c0_73 = arith.constant 0 : index
    %204 = vector.load %arg5[%c0_72, %c0_73] : memref<1x512xf32, #tpu.memory_space<vmem>>, vector<1x512xf32>
    %205 = vector.broadcast %204 : vector<1x512xf32> to vector<64x512xf32>
    %206 = arith.addf %203, %205 : vector<64x512xf32>
    %c0_74 = arith.constant 0 : index
    %c0_75 = arith.constant 0 : index
    %207 = vector.load %arg11[%c0_74, %c0_75] : memref<64x512xf32, #tpu.memory_space<vmem>>, vector<64x512xf32>
    tpu.vector_store %arg11[%c0_74, %c0_75], %206 {strides = array<i32>} : memref<64x512xf32, #tpu.memory_space<vmem>>, vector<64x512xf32>,
    %c1_i32_76 = arith.constant 1 : i32
    %208 = tpu.memref_slice %arg16[%c1_i32_76] : memref<3x!tpu.dma_semaphore, #tpu.memory_space<semaphore_mem>> -> memref<1x!tpu.dma_semaphore, #tpu.memory_space<semaphore_mem>>
    %209 = tpu.memref_squeeze %208 : memref<1x!tpu.dma_semaphore, #tpu.memory_space<semaphore_mem>> -> memref<!tpu.dma_semaphore, #tpu.memory_space<semaphore_mem>>
    tpu.wait_dma2 semaphore(%209 : memref<!tpu.dma_semaphore, #tpu.memory_space<semaphore_mem>>) src(%arg8 : memref<128x512xbf16, #tpu.memory_space<any>>) dst(%arg14 : memref<128x512xbf16, #tpu.memory_space<vmem>>)
    %cst_77 = arith.constant 0.000000e+00 : f32
    %210 = vector.broadcast %cst_77 : f32 to vector<8x128xf32>
    %cst_78 = arith.constant 0.000000e+00 : f32
    %211 = vector.broadcast %cst_78 : f32 to vector<8x128xf32>
    %c0_79 = arith.constant 0 : index
    %c0_80 = arith.constant 0 : index
    %212 = vector.load %arg11[%c0_79, %c0_80] : memref<64x512xf32, #tpu.memory_space<vmem>>, vector<8x512xf32>
    %213 = arith.truncf %210 : vector<8x128xf32> to vector<8x128xbf16>
    %c0_81 = arith.constant 0 : index
    %c0_82 = arith.constant 0 : index
    %214 = vector.load %arg14[%c0_81, %c0_82] : memref<128x512xbf16, #tpu.memory_space<vmem>>, vector<128x512xbf16>
    %cst_83 = arith.constant dense<0.000000e+00> : vector<8x512xf32>
    %215 = tpu.matmul %213, %214, %cst_83 {dimension_numbers = #tpu.dot_dimension_numbers<[1], [0], [0], [1], [0, 0, 1, 1], [], []>} : vector<8x128xbf16>, vector<128x512xbf16>, vector<8x512xf32> -> vector<8x512xf32>
    %216 = arith.addf %212, %215 : vector<8x512xf32>
    %217 = vector.extract_strided_slice %216 {offsets = [0, 0], sizes = [8, 384], strides = [1, 1]} : vector<8x512xf32> to vector<8x384xf32>
    %218 = arith.negf %217 : vector<8x384xf32>
    %219 = math.exp %218 : vector<8x384xf32>
    %cst_84 = arith.constant 1.000000e+00 : f32
    %220 = vector.broadcast %cst_84 : f32 to vector<8x384xf32>
    %221 = arith.addf %220, %219 : vector<8x384xf32>
    %222 = arith.divf %220, %221 : vector<8x384xf32>
    %223 = vector.extract_strided_slice %222 {offsets = [0, 0], sizes = [8, 128], strides = [1, 1]} : vector<8x384xf32> to vector<8x128xf32>
    %224 = vector.extract_strided_slice %222 {offsets = [0, 128], sizes = [8, 128], strides = [1, 1]} : vector<8x384xf32> to vector<8x128xf32>
    %225 = vector.extract_strided_slice %222 {offsets = [0, 256], sizes = [8, 128], strides = [1, 1]} : vector<8x384xf32> to vector<8x128xf32>
    %226 = vector.extract_strided_slice %216 {offsets = [0, 384], sizes = [8, 128], strides = [1, 1]} : vector<8x512xf32> to vector<8x128xf32>
    %227 = math.tanh %226 : vector<8x128xf32>
    %228 = arith.mulf %224, %211 : vector<8x128xf32>
    %229 = arith.mulf %223, %227 : vector<8x128xf32>
    %230 = arith.addf %228, %229 : vector<8x128xf32>
    %231 = math.tanh %230 : vector<8x128xf32>
    %232 = arith.mulf %225, %231 : vector<8x128xf32>
    %233 = arith.truncf %232 : vector<8x128xf32> to vector<8x128xbf16>
    %c0_85 = arith.constant 0 : index
    %c0_86 = arith.constant 0 : index
    %234 = vector.load %arg12[%c0_85, %c0_86] : memref<64x128xbf16, #tpu.memory_space<vmem>>, vector<8x128xbf16>
    tpu.vector_store %arg12[%c0_85, %c0_86], %233 {strides = array<i32>} : memref<64x128xbf16, #tpu.memory_space<vmem>>, vector<8x128xbf16>,
    %c8_87 = arith.constant 8 : index
    %c0_88 = arith.constant 0 : index
    %235 = vector.load %arg11[%c8_87, %c0_88] : memref<64x512xf32, #tpu.memory_space<vmem>>, vector<8x512xf32>
    %236 = arith.truncf %232 : vector<8x128xf32> to vector<8x128xbf16>
    %c0_89 = arith.constant 0 : index
    %c0_90 = arith.constant 0 : index
    %237 = vector.load %arg14[%c0_89, %c0_90] : memref<128x512xbf16, #tpu.memory_space<vmem>>, vector<128x512xbf16>
    %cst_91 = arith.constant dense<0.000000e+00> : vector<8x512xf32>
    %238 = tpu.matmul %236, %237, %cst_91 {dimension_numbers = #tpu.dot_dimension_numbers<[1], [0], [0], [1], [0, 0, 1, 1], [], []>} : vector<8x128xbf16>, vector<128x512xbf16>, vector<8x512xf32> -> vector<8x512xf32>
    %239 = arith.addf %235, %238 : vector<8x512xf32>
    %240 = vector.extract_strided_slice %239 {offsets = [0, 0], sizes = [8, 384], strides = [1, 1]} : vector<8x512xf32> to vector<8x384xf32>
    %241 = arith.negf %240 : vector<8x384xf32>
    %242 = math.exp %241 : vector<8x384xf32>
    %cst_92 = arith.constant 1.000000e+00 : f32
    %243 = vector.broadcast %cst_92 : f32 to vector<8x384xf32>
    %244 = arith.addf %243, %242 : vector<8x384xf32>
    %245 = arith.divf %243, %244 : vector<8x384xf32>
    %246 = vector.extract_strided_slice %245 {offsets = [0, 0], sizes = [8, 128], strides = [1, 1]} : vector<8x384xf32> to vector<8x128xf32>
    %247 = vector.extract_strided_slice %245 {offsets = [0, 128], sizes = [8, 128], strides = [1, 1]} : vector<8x384xf32> to vector<8x128xf32>
    %248 = vector.extract_strided_slice %245 {offsets = [0, 256], sizes = [8, 128], strides = [1, 1]} : vector<8x384xf32> to vector<8x128xf32>
    %249 = vector.extract_strided_slice %239 {offsets = [0, 384], sizes = [8, 128], strides = [1, 1]} : vector<8x512xf32> to vector<8x128xf32>
    %250 = math.tanh %249 : vector<8x128xf32>
    %251 = arith.mulf %247, %230 : vector<8x128xf32>
    %252 = arith.mulf %246, %250 : vector<8x128xf32>
    %253 = arith.addf %251, %252 : vector<8x128xf32>
    %254 = math.tanh %253 : vector<8x128xf32>
    %255 = arith.mulf %248, %254 : vector<8x128xf32>
    %256 = arith.truncf %255 : vector<8x128xf32> to vector<8x128xbf16>
    %c8_93 = arith.constant 8 : index
    %c0_94 = arith.constant 0 : index
    %257 = vector.load %arg12[%c8_93, %c0_94] : memref<64x128xbf16, #tpu.memory_space<vmem>>, vector<8x128xbf16>
    tpu.vector_store %arg12[%c8_93, %c0_94], %256 {strides = array<i32>} : memref<64x128xbf16, #tpu.memory_space<vmem>>, vector<8x128xbf16>,
    %c16_95 = arith.constant 16 : index
    %c0_96 = arith.constant 0 : index
    %258 = vector.load %arg11[%c16_95, %c0_96] : memref<64x512xf32, #tpu.memory_space<vmem>>, vector<8x512xf32>
    %259 = arith.truncf %255 : vector<8x128xf32> to vector<8x128xbf16>
    %c0_97 = arith.constant 0 : index
    %c0_98 = arith.constant 0 : index
    %260 = vector.load %arg14[%c0_97, %c0_98] : memref<128x512xbf16, #tpu.memory_space<vmem>>, vector<128x512xbf16>
    %cst_99 = arith.constant dense<0.000000e+00> : vector<8x512xf32>
    %261 = tpu.matmul %259, %260, %cst_99 {dimension_numbers = #tpu.dot_dimension_numbers<[1], [0], [0], [1], [0, 0, 1, 1], [], []>} : vector<8x128xbf16>, vector<128x512xbf16>, vector<8x512xf32> -> vector<8x512xf32>
    %262 = arith.addf %258, %261 : vector<8x512xf32>
    %263 = vector.extract_strided_slice %262 {offsets = [0, 0], sizes = [8, 384], strides = [1, 1]} : vector<8x512xf32> to vector<8x384xf32>
    %264 = arith.negf %263 : vector<8x384xf32>
    %265 = math.exp %264 : vector<8x384xf32>
    %cst_100 = arith.constant 1.000000e+00 : f32
    %266 = vector.broadcast %cst_100 : f32 to vector<8x384xf32>
    %267 = arith.addf %266, %265 : vector<8x384xf32>
    %268 = arith.divf %266, %267 : vector<8x384xf32>
    %269 = vector.extract_strided_slice %268 {offsets = [0, 0], sizes = [8, 128], strides = [1, 1]} : vector<8x384xf32> to vector<8x128xf32>
    %270 = vector.extract_strided_slice %268 {offsets = [0, 128], sizes = [8, 128], strides = [1, 1]} : vector<8x384xf32> to vector<8x128xf32>
    %271 = vector.extract_strided_slice %268 {offsets = [0, 256], sizes = [8, 128], strides = [1, 1]} : vector<8x384xf32> to vector<8x128xf32>
    %272 = vector.extract_strided_slice %262 {offsets = [0, 384], sizes = [8, 128], strides = [1, 1]} : vector<8x512xf32> to vector<8x128xf32>
    %273 = math.tanh %272 : vector<8x128xf32>
    %274 = arith.mulf %270, %253 : vector<8x128xf32>
    %275 = arith.mulf %269, %273 : vector<8x128xf32>
    %276 = arith.addf %274, %275 : vector<8x128xf32>
    %277 = math.tanh %276 : vector<8x128xf32>
    %278 = arith.mulf %271, %277 : vector<8x128xf32>
    %279 = arith.truncf %278 : vector<8x128xf32> to vector<8x128xbf16>
    %c16_101 = arith.constant 16 : index
    %c0_102 = arith.constant 0 : index
    %280 = vector.load %arg12[%c16_101, %c0_102] : memref<64x128xbf16, #tpu.memory_space<vmem>>, vector<8x128xbf16>
    tpu.vector_store %arg12[%c16_101, %c0_102], %279 {strides = array<i32>} : memref<64x128xbf16, #tpu.memory_space<vmem>>, vector<8x128xbf16>,
    %c24_103 = arith.constant 24 : index
    %c0_104 = arith.constant 0 : index
    %281 = vector.load %arg11[%c24_103, %c0_104] : memref<64x512xf32, #tpu.memory_space<vmem>>, vector<8x512xf32>
    %282 = arith.truncf %278 : vector<8x128xf32> to vector<8x128xbf16>
    %c0_105 = arith.constant 0 : index
    %c0_106 = arith.constant 0 : index
    %283 = vector.load %arg14[%c0_105, %c0_106] : memref<128x512xbf16, #tpu.memory_space<vmem>>, vector<128x512xbf16>
    %cst_107 = arith.constant dense<0.000000e+00> : vector<8x512xf32>
    %284 = tpu.matmul %282, %283, %cst_107 {dimension_numbers = #tpu.dot_dimension_numbers<[1], [0], [0], [1], [0, 0, 1, 1], [], []>} : vector<8x128xbf16>, vector<128x512xbf16>, vector<8x512xf32> -> vector<8x512xf32>
    %285 = arith.addf %281, %284 : vector<8x512xf32>
    %286 = vector.extract_strided_slice %285 {offsets = [0, 0], sizes = [8, 384], strides = [1, 1]} : vector<8x512xf32> to vector<8x384xf32>
    %287 = arith.negf %286 : vector<8x384xf32>
    %288 = math.exp %287 : vector<8x384xf32>
    %cst_108 = arith.constant 1.000000e+00 : f32
    %289 = vector.broadcast %cst_108 : f32 to vector<8x384xf32>
    %290 = arith.addf %289, %288 : vector<8x384xf32>
    %291 = arith.divf %289, %290 : vector<8x384xf32>
    %292 = vector.extract_strided_slice %291 {offsets = [0, 0], sizes = [8, 128], strides = [1, 1]} : vector<8x384xf32> to vector<8x128xf32>
    %293 = vector.extract_strided_slice %291 {offsets = [0, 128], sizes = [8, 128], strides = [1, 1]} : vector<8x384xf32> to vector<8x128xf32>
    %294 = vector.extract_strided_slice %291 {offsets = [0, 256], sizes = [8, 128], strides = [1, 1]} : vector<8x384xf32> to vector<8x128xf32>
    %295 = vector.extract_strided_slice %285 {offsets = [0, 384], sizes = [8, 128], strides = [1, 1]} : vector<8x512xf32> to vector<8x128xf32>
    %296 = math.tanh %295 : vector<8x128xf32>
    %297 = arith.mulf %293, %276 : vector<8x128xf32>
    %298 = arith.mulf %292, %296 : vector<8x128xf32>
    %299 = arith.addf %297, %298 : vector<8x128xf32>
    %300 = math.tanh %299 : vector<8x128xf32>
    %301 = arith.mulf %294, %300 : vector<8x128xf32>
    %302 = arith.truncf %301 : vector<8x128xf32> to vector<8x128xbf16>
    %c24_109 = arith.constant 24 : index
    %c0_110 = arith.constant 0 : index
    %303 = vector.load %arg12[%c24_109, %c0_110] : memref<64x128xbf16, #tpu.memory_space<vmem>>, vector<8x128xbf16>
    tpu.vector_store %arg12[%c24_109, %c0_110], %302 {strides = array<i32>} : memref<64x128xbf16, #tpu.memory_space<vmem>>, vector<8x128xbf16>,
    %c32_111 = arith.constant 32 : index
    %c0_112 = arith.constant 0 : index
    %304 = vector.load %arg11[%c32_111, %c0_112] : memref<64x512xf32, #tpu.memory_space<vmem>>, vector<8x512xf32>
    %305 = arith.truncf %301 : vector<8x128xf32> to vector<8x128xbf16>
    %c0_113 = arith.constant 0 : index
    %c0_114 = arith.constant 0 : index
    %306 = vector.load %arg14[%c0_113, %c0_114] : memref<128x512xbf16, #tpu.memory_space<vmem>>, vector<128x512xbf16>
    %cst_115 = arith.constant dense<0.000000e+00> : vector<8x512xf32>
    %307 = tpu.matmul %305, %306, %cst_115 {dimension_numbers = #tpu.dot_dimension_numbers<[1], [0], [0], [1], [0, 0, 1, 1], [], []>} : vector<8x128xbf16>, vector<128x512xbf16>, vector<8x512xf32> -> vector<8x512xf32>
    %308 = arith.addf %304, %307 : vector<8x512xf32>
    %309 = vector.extract_strided_slice %308 {offsets = [0, 0], sizes = [8, 384], strides = [1, 1]} : vector<8x512xf32> to vector<8x384xf32>
    %310 = arith.negf %309 : vector<8x384xf32>
    %311 = math.exp %310 : vector<8x384xf32>
    %cst_116 = arith.constant 1.000000e+00 : f32
    %312 = vector.broadcast %cst_116 : f32 to vector<8x384xf32>
    %313 = arith.addf %312, %311 : vector<8x384xf32>
    %314 = arith.divf %312, %313 : vector<8x384xf32>
    %315 = vector.extract_strided_slice %314 {offsets = [0, 0], sizes = [8, 128], strides = [1, 1]} : vector<8x384xf32> to vector<8x128xf32>
    %316 = vector.extract_strided_slice %314 {offsets = [0, 128], sizes = [8, 128], strides = [1, 1]} : vector<8x384xf32> to vector<8x128xf32>
    %317 = vector.extract_strided_slice %314 {offsets = [0, 256], sizes = [8, 128], strides = [1, 1]} : vector<8x384xf32> to vector<8x128xf32>
    %318 = vector.extract_strided_slice %308 {offsets = [0, 384], sizes = [8, 128], strides = [1, 1]} : vector<8x512xf32> to vector<8x128xf32>
    %319 = math.tanh %318 : vector<8x128xf32>
    %320 = arith.mulf %316, %299 : vector<8x128xf32>
    %321 = arith.mulf %315, %319 : vector<8x128xf32>
    %322 = arith.addf %320, %321 : vector<8x128xf32>
    %323 = math.tanh %322 : vector<8x128xf32>
    %324 = arith.mulf %317, %323 : vector<8x128xf32>
    %325 = arith.truncf %324 : vector<8x128xf32> to vector<8x128xbf16>
    %c32_117 = arith.constant 32 : index
    %c0_118 = arith.constant 0 : index
    %326 = vector.load %arg12[%c32_117, %c0_118] : memref<64x128xbf16, #tpu.memory_space<vmem>>, vector<8x128xbf16>
    tpu.vector_store %arg12[%c32_117, %c0_118], %325 {strides = array<i32>} : memref<64x128xbf16, #tpu.memory_space<vmem>>, vector<8x128xbf16>,
    %c40_119 = arith.constant 40 : index
    %c0_120 = arith.constant 0 : index
    %327 = vector.load %arg11[%c40_119, %c0_120] : memref<64x512xf32, #tpu.memory_space<vmem>>, vector<8x512xf32>
    %328 = arith.truncf %324 : vector<8x128xf32> to vector<8x128xbf16>
    %c0_121 = arith.constant 0 : index
    %c0_122 = arith.constant 0 : index
    %329 = vector.load %arg14[%c0_121, %c0_122] : memref<128x512xbf16, #tpu.memory_space<vmem>>, vector<128x512xbf16>
    %cst_123 = arith.constant dense<0.000000e+00> : vector<8x512xf32>
    %330 = tpu.matmul %328, %329, %cst_123 {dimension_numbers = #tpu.dot_dimension_numbers<[1], [0], [0], [1], [0, 0, 1, 1], [], []>} : vector<8x128xbf16>, vector<128x512xbf16>, vector<8x512xf32> -> vector<8x512xf32>
    %331 = arith.addf %327, %330 : vector<8x512xf32>
    %332 = vector.extract_strided_slice %331 {offsets = [0, 0], sizes = [8, 384], strides = [1, 1]} : vector<8x512xf32> to vector<8x384xf32>
    %333 = arith.negf %332 : vector<8x384xf32>
    %334 = math.exp %333 : vector<8x384xf32>
    %cst_124 = arith.constant 1.000000e+00 : f32
    %335 = vector.broadcast %cst_124 : f32 to vector<8x384xf32>
    %336 = arith.addf %335, %334 : vector<8x384xf32>
    %337 = arith.divf %335, %336 : vector<8x384xf32>
    %338 = vector.extract_strided_slice %337 {offsets = [0, 0], sizes = [8, 128], strides = [1, 1]} : vector<8x384xf32> to vector<8x128xf32>
    %339 = vector.extract_strided_slice %337 {offsets = [0, 128], sizes = [8, 128], strides = [1, 1]} : vector<8x384xf32> to vector<8x128xf32>
    %340 = vector.extract_strided_slice %337 {offsets = [0, 256], sizes = [8, 128], strides = [1, 1]} : vector<8x384xf32> to vector<8x128xf32>
    %341 = vector.extract_strided_slice %331 {offsets = [0, 384], sizes = [8, 128], strides = [1, 1]} : vector<8x512xf32> to vector<8x128xf32>
    %342 = math.tanh %341 : vector<8x128xf32>
    %343 = arith.mulf %339, %322 : vector<8x128xf32>
    %344 = arith.mulf %338, %342 : vector<8x128xf32>
    %345 = arith.addf %343, %344 : vector<8x128xf32>
    %346 = math.tanh %345 : vector<8x128xf32>
    %347 = arith.mulf %340, %346 : vector<8x128xf32>
    %348 = arith.truncf %347 : vector<8x128xf32> to vector<8x128xbf16>
    %c40_125 = arith.constant 40 : index
    %c0_126 = arith.constant 0 : index
    %349 = vector.load %arg12[%c40_125, %c0_126] : memref<64x128xbf16, #tpu.memory_space<vmem>>, vector<8x128xbf16>
    tpu.vector_store %arg12[%c40_125, %c0_126], %348 {strides = array<i32>} : memref<64x128xbf16, #tpu.memory_space<vmem>>, vector<8x128xbf16>,
    %c48_127 = arith.constant 48 : index
    %c0_128 = arith.constant 0 : index
    %350 = vector.load %arg11[%c48_127, %c0_128] : memref<64x512xf32, #tpu.memory_space<vmem>>, vector<8x512xf32>
    %351 = arith.truncf %347 : vector<8x128xf32> to vector<8x128xbf16>
    %c0_129 = arith.constant 0 : index
    %c0_130 = arith.constant 0 : index
    %352 = vector.load %arg14[%c0_129, %c0_130] : memref<128x512xbf16, #tpu.memory_space<vmem>>, vector<128x512xbf16>
    %cst_131 = arith.constant dense<0.000000e+00> : vector<8x512xf32>
    %353 = tpu.matmul %351, %352, %cst_131 {dimension_numbers = #tpu.dot_dimension_numbers<[1], [0], [0], [1], [0, 0, 1, 1], [], []>} : vector<8x128xbf16>, vector<128x512xbf16>, vector<8x512xf32> -> vector<8x512xf32>
    %354 = arith.addf %350, %353 : vector<8x512xf32>
    %355 = vector.extract_strided_slice %354 {offsets = [0, 0], sizes = [8, 384], strides = [1, 1]} : vector<8x512xf32> to vector<8x384xf32>
    %356 = arith.negf %355 : vector<8x384xf32>
    %357 = math.exp %356 : vector<8x384xf32>
    %cst_132 = arith.constant 1.000000e+00 : f32
    %358 = vector.broadcast %cst_132 : f32 to vector<8x384xf32>
    %359 = arith.addf %358, %357 : vector<8x384xf32>
    %360 = arith.divf %358, %359 : vector<8x384xf32>
    %361 = vector.extract_strided_slice %360 {offsets = [0, 0], sizes = [8, 128], strides = [1, 1]} : vector<8x384xf32> to vector<8x128xf32>
    %362 = vector.extract_strided_slice %360 {offsets = [0, 128], sizes = [8, 128], strides = [1, 1]} : vector<8x384xf32> to vector<8x128xf32>
    %363 = vector.extract_strided_slice %360 {offsets = [0, 256], sizes = [8, 128], strides = [1, 1]} : vector<8x384xf32> to vector<8x128xf32>
    %364 = vector.extract_strided_slice %354 {offsets = [0, 384], sizes = [8, 128], strides = [1, 1]} : vector<8x512xf32> to vector<8x128xf32>
    %365 = math.tanh %364 : vector<8x128xf32>
    %366 = arith.mulf %362, %345 : vector<8x128xf32>
    %367 = arith.mulf %361, %365 : vector<8x128xf32>
    %368 = arith.addf %366, %367 : vector<8x128xf32>
    %369 = math.tanh %368 : vector<8x128xf32>
    %370 = arith.mulf %363, %369 : vector<8x128xf32>
    %371 = arith.truncf %370 : vector<8x128xf32> to vector<8x128xbf16>
    %c48_133 = arith.constant 48 : index
    %c0_134 = arith.constant 0 : index
    %372 = vector.load %arg12[%c48_133, %c0_134] : memref<64x128xbf16, #tpu.memory_space<vmem>>, vector<8x128xbf16>
    tpu.vector_store %arg12[%c48_133, %c0_134], %371 {strides = array<i32>} : memref<64x128xbf16, #tpu.memory_space<vmem>>, vector<8x128xbf16>,
    %c56_135 = arith.constant 56 : index
    %c0_136 = arith.constant 0 : index
    %373 = vector.load %arg11[%c56_135, %c0_136] : memref<64x512xf32, #tpu.memory_space<vmem>>, vector<8x512xf32>
    %374 = arith.truncf %370 : vector<8x128xf32> to vector<8x128xbf16>
    %c0_137 = arith.constant 0 : index
    %c0_138 = arith.constant 0 : index
    %375 = vector.load %arg14[%c0_137, %c0_138] : memref<128x512xbf16, #tpu.memory_space<vmem>>, vector<128x512xbf16>
    %cst_139 = arith.constant dense<0.000000e+00> : vector<8x512xf32>
    %376 = tpu.matmul %374, %375, %cst_139 {dimension_numbers = #tpu.dot_dimension_numbers<[1], [0], [0], [1], [0, 0, 1, 1], [], []>} : vector<8x128xbf16>, vector<128x512xbf16>, vector<8x512xf32> -> vector<8x512xf32>
    %377 = arith.addf %373, %376 : vector<8x512xf32>
    %378 = vector.extract_strided_slice %377 {offsets = [0, 0], sizes = [8, 384], strides = [1, 1]} : vector<8x512xf32> to vector<8x384xf32>
    %379 = arith.negf %378 : vector<8x384xf32>
    %380 = math.exp %379 : vector<8x384xf32>
    %cst_140 = arith.constant 1.000000e+00 : f32
    %381 = vector.broadcast %cst_140 : f32 to vector<8x384xf32>
    %382 = arith.addf %381, %380 : vector<8x384xf32>
    %383 = arith.divf %381, %382 : vector<8x384xf32>
    %384 = vector.extract_strided_slice %383 {offsets = [0, 0], sizes = [8, 128], strides = [1, 1]} : vector<8x384xf32> to vector<8x128xf32>
    %385 = vector.extract_strided_slice %383 {offsets = [0, 128], sizes = [8, 128], strides = [1, 1]} : vector<8x384xf32> to vector<8x128xf32>
    %386 = vector.extract_strided_slice %383 {offsets = [0, 256], sizes = [8, 128], strides = [1, 1]} : vector<8x384xf32> to vector<8x128xf32>
    %387 = vector.extract_strided_slice %377 {offsets = [0, 384], sizes = [8, 128], strides = [1, 1]} : vector<8x512xf32> to vector<8x128xf32>
    %388 = math.tanh %387 : vector<8x128xf32>
    %389 = arith.mulf %385, %368 : vector<8x128xf32>
    %390 = arith.mulf %384, %388 : vector<8x128xf32>
    %391 = arith.addf %389, %390 : vector<8x128xf32>
    %392 = math.tanh %391 : vector<8x128xf32>
    %393 = arith.mulf %386, %392 : vector<8x128xf32>
    %394 = arith.truncf %393 : vector<8x128xf32> to vector<8x128xbf16>
    %c56_141 = arith.constant 56 : index
    %c0_142 = arith.constant 0 : index
    %395 = vector.load %arg12[%c56_141, %c0_142] : memref<64x128xbf16, #tpu.memory_space<vmem>>, vector<8x128xbf16>
    tpu.vector_store %arg12[%c56_141, %c0_142], %394 {strides = array<i32>} : memref<64x128xbf16, #tpu.memory_space<vmem>>, vector<8x128xbf16>,
    %c2_i32_143 = arith.constant 2 : i32
    %396 = tpu.memref_slice %arg16[%c2_i32_143] : memref<3x!tpu.dma_semaphore, #tpu.memory_space<semaphore_mem>> -> memref<1x!tpu.dma_semaphore, #tpu.memory_space<semaphore_mem>>
    %397 = tpu.memref_squeeze %396 : memref<1x!tpu.dma_semaphore, #tpu.memory_space<semaphore_mem>> -> memref<!tpu.dma_semaphore, #tpu.memory_space<semaphore_mem>>
    tpu.wait_dma2 semaphore(%397 : memref<!tpu.dma_semaphore, #tpu.memory_space<semaphore_mem>>) src(%arg9 : memref<128x1024xbf16, #tpu.memory_space<any>>) dst(%arg15 : memref<128x1024xbf16, #tpu.memory_space<vmem>>)
    %c0_144 = arith.constant 0 : index
    %c0_145 = arith.constant 0 : index
    %398 = vector.load %arg12[%c0_144, %c0_145] : memref<64x128xbf16, #tpu.memory_space<vmem>>, vector<64x128xbf16>
    %c0_146 = arith.constant 0 : index
    %c0_147 = arith.constant 0 : index
    %399 = vector.load %arg15[%c0_146, %c0_147] : memref<128x1024xbf16, #tpu.memory_space<vmem>>, vector<128x1024xbf16>
    %cst_148 = arith.constant dense<0.000000e+00> : vector<64x1024xf32>
    %400 = tpu.matmul %398, %399, %cst_148 {dimension_numbers = #tpu.dot_dimension_numbers<[1], [0], [0], [1], [0, 0, 1, 1], [], []>} : vector<64x128xbf16>, vector<128x1024xbf16>, vector<64x1024xf32> -> vector<64x1024xf32>
    %c0_149 = arith.constant 0 : index
    %c0_150 = arith.constant 0 : index
    %401 = vector.load %arg6[%c0_149, %c0_150] : memref<1x1024xf32, #tpu.memory_space<vmem>>, vector<1x1024xf32>
    %402 = vector.broadcast %401 : vector<1x1024xf32> to vector<64x1024xf32>
    %403 = arith.addf %400, %402 : vector<64x1024xf32>
    %c0_151 = arith.constant 0 : index
    %c0_152 = arith.constant 0 : index
    %404 = vector.load %arg10[%c0_151, %c0_152] : memref<64x1024xf32, #tpu.memory_space<vmem>>, vector<64x1024xf32>
    tpu.vector_store %arg10[%c0_151, %c0_152], %403 {strides = array<i32>} : memref<64x1024xf32, #tpu.memory_space<vmem>>, vector<64x1024xf32>,
    return
  }
  func.func @transform_0(%arg0: i32) -> (i32, i32) {
    %c0_i32 = arith.constant 0 : i32
    %c0_i32_0 = arith.constant 0 : i32
    %c0_i32_1 = arith.constant 0 : i32
    return %c0_i32, %c0_i32_0 : i32, i32
  }
  func.func @transform_1(%arg0: i32) -> (i32, i32) {
    %c0_i32 = arith.constant 0 : i32
    %c0_i32_0 = arith.constant 0 : i32
    %c0_i32_1 = arith.constant 0 : i32
    return %c0_i32, %c0_i32_0 : i32, i32
  }
  func.func @transform_2(%arg0: i32) -> (i32, i32) {
    %c0_i32 = arith.constant 0 : i32
    %c0_i32_0 = arith.constant 0 : i32
    %c0_i32_1 = arith.constant 0 : i32
    return %c0_i32, %c0_i32_0 : i32, i32
  }
  func.func @transform_3(%arg0: i32) -> (i32, i32) {
    %c0_i32 = arith.constant 0 : i32
    %c0_i32_0 = arith.constant 0 : i32
    %c0_i32_1 = arith.constant 0 : i32
    return %c0_i32, %c0_i32_0 : i32, i32
  }
  func.func @transform_4(%arg0: i32) -> (i32, i32) {
    %c0_i32 = arith.constant 0 : i32
    %c0_i32_0 = arith.constant 0 : i32
    %c0_i32_1 = arith.constant 0 : i32
    return %c0_i32, %c0_i32_0 : i32, i32
  }
  func.func @transform_5(%arg0: i32) -> (i32, i32) {
    %c0_i32 = arith.constant 0 : i32
    %c0_i32_0 = arith.constant 0 : i32
    %c0_i32_1 = arith.constant 0 : i32
    return %c0_i32, %c0_i32_0 : i32, i32
  }
  func.func @transform_9(%arg0: i32) -> (i32, i32) {
    %c0_i32 = arith.constant 0 : i32
    %c0_i32_0 = arith.constant 0 : i32
    %c0_i32_1 = arith.constant 0 : i32
    return %c0_i32, %c0_i32_0 : i32, i32
  }
}

</mosaic_0001>

<llo_original>
// kernel: tpu_custom_call.1
$region0: #{tpu_custom_call.1}
  #allocation0 [shape = 'u32[]', space=smem, size = 0x4, offset = 0x4, fixed_abs, tag = 'smem constant byte address 0x4 - core index']
  #allocation1 [shape = 'u32[144,128]{1,0:T(1,128)}', space=vmem, size = 0x12000, scoped, tag = 'internal scratch']
  #allocation2 [shape = 'f32[64,512]{1,0:T(8,128)}', space=vmem, size = 0x20000, scoped, tag = 'scratch operand']
  #allocation3 [shape = 'bf16[64,128]{1,0:T(16,128)(2,1)}', space=vmem, size = 0x4000, scoped, tag = 'scratch operand']
  #allocation4 [shape = 'bf16[128,512]{1,0:T(16,128)(2,1)}', space=vmem, size = 0x20000, scoped, tag = 'scratch operand']
  #allocation5 [shape = 'bf16[128,512]{1,0:T(16,128)(2,1)}', space=vmem, size = 0x20000, scoped, tag = 'scratch operand']
  #allocation6 [shape = 'bf16[128,1024]{1,0:T(16,128)(2,1)}', space=vmem, size = 0x40000, scoped, tag = 'scratch operand']
  #allocation7 [shape = 's32[3]{0}', space=sflag, size = 0xc, scoped, tag = 'scratch operand']
  #allocation17 [shape = 's32[]', space=sflag, size = 0x4, offset = 0, fixed_abs, tag = 'sflag constant byte address 0x0 - dummy sync flag']
  #allocation19 [shape = 's32[]', space=sflag, size = 0x4, offset = 0, fixed_abs, tag = 'sflag constant byte address 0x0 - dummy sync flag']
  #allocation21 [shape = 's32[]', space=sflag, size = 0x4, offset = 0, fixed_abs, tag = 'sflag constant byte address 0x0 - dummy sync flag']
  %s0 = inlined_call_operand.hbm [shape: bf16[64,256], index: 0, kind: input, shape index: {}]
  %s1 = inlined_call_operand.hbm [shape: bf16[256,512], index: 1, kind: input, shape index: {}]
  %s2 = inlined_call_operand.hbm [shape: bf16[128,512], index: 2, kind: input, shape index: {}]
  %s3 = inlined_call_operand.vmem [shape: f32[1,512], index: 3, kind: input, shape index: {}]
  %s4 = inlined_call_operand.hbm [shape: f32[1,512], index: 4, kind: input, shape index: {}]
  %s5 = inlined_call_operand.vmem [shape: f32[1,1024], index: 5, kind: input, shape index: {}]
  %s6 = inlined_call_operand.hbm [shape: bf16[128,512], index: 6, kind: input, shape index: {}]
  %s7 = inlined_call_operand.hbm [shape: bf16[128,512], index: 7, kind: input, shape index: {}]
  %s8 = inlined_call_operand.hbm [shape: bf16[128,1024], index: 8, kind: input, shape index: {}]
  %s9 = inlined_call_operand.hbm [shape: f32[64,1024], index: 9, kind: output, shape index: {}]
  %s10 = sld [smem:[#allocation0]]
  $region50: #{tpu_custom_call.1} parent=0
    _
  %s12 = ssub.s32 1, %s10
  %s13 = scalar_select 0, %s12, %s10
  $region1: #{tpu_custom_call.1} parent=0
    #allocation8 [shape = 'u8[32768]{0}', space=vmem, size = 0x8000, scoped, tag = 'input window, operand 0, single buffered']
    #allocation9 [shape = 's32[1]{0}', space=sflag, size = 0x4, scoped, tag = 'scoped memory for tpu_custom_call.1']
    #allocation10 [shape = 's32[1]{0}', space=sflag, size = 0x4, scoped, tag = 'scoped memory for tpu_custom_call.1']
    #allocation11 [shape = 'u8[262144]{0}', space=vmem, size = 0x40000, scoped, tag = 'input window, operand 1, single buffered']
    #allocation12 [shape = 's32[1]{0}', space=sflag, size = 0x4, scoped, tag = 'scoped memory for tpu_custom_call.1']
    #allocation13 [shape = 'u8[131072]{0}', space=vmem, size = 0x20000, scoped, tag = 'input window, operand 2, single buffered']
    #allocation14 [shape = 'u8[2048]{0}', space=vmem, size = 0x800, scoped, tag = 'input window, operand 4, single buffered']
    #allocation15 [shape = 's32[1]{0}', space=sflag, size = 0x4, scoped, tag = 'scoped memory for tpu_custom_call.1']
    #allocation16 [shape = 'u8[262144]{0}', space=vmem, size = 0x40000, scoped, tag = 'output window, operand 0, single buffered']
    #allocation18 [shape = 'u32[9]{0}', space=smem, size = 0x24, scoped, tag = 'DMA stride descriptor']
    #allocation20 [shape = 'u32[9]{0}', space=smem, size = 0x24, scoped, tag = 'DMA stride descriptor']
    #allocation22 [shape = 'u32[9]{0}', space=smem, size = 0x24, scoped, tag = 'DMA stride descriptor']
    %14 = vsyncpa [#allocation9], 0
    %15 = vsyncpa [#allocation12], 0
    %16 = vsyncpa [#allocation15], 0
    %17 = vsyncpa [#allocation10], 0
    // Predicated region
    $region2: #{tpu_custom_call.1} parent=1 // pred_check
      _
    $region3: #{tpu_custom_call.1} parent=1 // pred_check_branch
      %19 = sbr.rel (0) target = $region5
    $region4: #{tpu_custom_call.1} parent=1 // pred_region
      %s21 = ssub.s32 1024, 1024
      %22 = vsyncadd [#allocation9], %s21
      %s23 = sshll.u32 [#allocation8], 4
      %s24 = int_to_ptr.vmem [resolvable:$true] %s23
      %29 = dma.hbm_to_vmem [thread:$0]  %s0, 1024, %s24, [#allocation9], 128, 128, 8
    $region5: #{tpu_custom_call.1} parent=1 // pred_fallthru
      _
    // Predicated region
    $region6: #{tpu_custom_call.1} parent=1 // pred_check
      _
    $region7: #{tpu_custom_call.1} parent=1 // pred_check_branch
      %31 = sbr.rel (0) target = $region9
    $region8: #{tpu_custom_call.1} parent=1 // pred_region
      %s33 = ssub.s32 8192, 8192
      %34 = vsyncadd [#allocation12], %s33
      %s35 = sshll.u32 [#allocation11], 4
      %s36 = int_to_ptr.vmem [resolvable:$true] %s35
      %41 = dma.hbm_to_vmem [thread:$0]  %s1, 8192, %s36, [#allocation12], 256, 256, 16
    $region9: #{tpu_custom_call.1} parent=1 // pred_fallthru
      _
    // Predicated region
    $region10: #{tpu_custom_call.1} parent=1 // pred_check
      _
    $region11: #{tpu_custom_call.1} parent=1 // pred_check_branch
      %43 = sbr.rel (0) target = $region13
    $region12: #{tpu_custom_call.1} parent=1 // pred_region
      %s45 = ssub.s32 4096, 4096
      %46 = vsyncadd [#allocation12], %s45
      %s47 = sshll.u32 [#allocation13], 4
      %s48 = int_to_ptr.vmem [resolvable:$true] %s47
      %53 = dma.hbm_to_vmem [thread:$0]  %s2, 4096, %s48, [#allocation12], 256, 256, 16
    $region13: #{tpu_custom_call.1} parent=1 // pred_fallthru
      _
    // Predicated region
    $region14: #{tpu_custom_call.1} parent=1 // pred_check
      _
    $region15: #{tpu_custom_call.1} parent=1 // pred_check_branch
      %55 = sbr.rel (0) target = $region17
    $region16: #{tpu_custom_call.1} parent=1 // pred_region
      _
    $region17: #{tpu_custom_call.1} parent=1 // pred_fallthru
      _
    // Predicated region
    $region18: #{tpu_custom_call.1} parent=1 // pred_check
      _
    $region19: #{tpu_custom_call.1} parent=1 // pred_check_branch
      %57 = sbr.rel (0) target = $region21
    $region20: #{tpu_custom_call.1} parent=1 // pred_region
      %s59 = ssub.s32 64, 64
      %60 = vsyncadd [#allocation15], %s59
      %s62 = sshll.u32 [#allocation14], 4
      %s63 = int_to_ptr.vmem [resolvable:$true] %s62
      %65 = dma.hbm_to_vmem [thread:$0]  %s4, 64, %s63, [#allocation15]
    $region21: #{tpu_custom_call.1} parent=1 // pred_fallthru
      _
    // Predicated region
    $region22: #{tpu_custom_call.1} parent=1 // pred_check
      _
    $region23: #{tpu_custom_call.1} parent=1 // pred_check_branch
      %67 = sbr.rel (0) target = $region25
    $region24: #{tpu_custom_call.1} parent=1 // pred_region
      _
    $region25: #{tpu_custom_call.1} parent=1 // pred_fallthru
      _
    // Predicated region
    $region26: #{tpu_custom_call.1} parent=1 // pred_check
      _
    $region27: #{tpu_custom_call.1} parent=1 // pred_check_branch
      %69 = sbr.rel (0) target = $region29
    $region28: #{tpu_custom_call.1} parent=1 // pred_region
      %70 = dma.done [#allocation9], 1024
    $region29: #{tpu_custom_call.1} parent=1 // pred_fallthru
      _
    // Predicated region
    $region30: #{tpu_custom_call.1} parent=1 // pred_check
      _
    $region31: #{tpu_custom_call.1} parent=1 // pred_check_branch
      %72 = sbr.rel (0) target = $region33
    $region32: #{tpu_custom_call.1} parent=1 // pred_region
      %73 = dma.done [#allocation12], 8192
    $region33: #{tpu_custom_call.1} parent=1 // pred_fallthru
      _
    // Predicated region
    $region34: #{tpu_custom_call.1} parent=1 // pred_check
      _
    $region35: #{tpu_custom_call.1} parent=1 // pred_check_branch
      %75 = sbr.rel (0) target = $region37
    $region36: #{tpu_custom_call.1} parent=1 // pred_region
      %76 = dma.done [#allocation12], 4096
    $region37: #{tpu_custom_call.1} parent=1 // pred_fallthru
      _
    // Predicated region
    $region38: #{tpu_custom_call.1} parent=1 // pred_check
      _
    $region39: #{tpu_custom_call.1} parent=1 // pred_check_branch
      %78 = sbr.rel (0) target = $region41
    $region40: #{tpu_custom_call.1} parent=1 // pred_region
      %79 = dma.done [#allocation15], 64
    $region41: #{tpu_custom_call.1} parent=1 // pred_fallthru
      _
    %s82 = sshll.u32 1, 14
    %s83 = sxor.u32 4294967295, %s82
    %s85 = sld [smem:[#allocation0]]
    %s86 = sadd.s32 2, %s85
    %s88 = sshll.u32 7, 26
    %s89 = sxor.u32 4294967295, %s88
    %s90 = sand.u32 0, %s89
    %s91 = sshll.u32 %s86, 26
    %s92 = sor.u32 %s90, %s91
    %s93 = sshll.u32 [#allocation4], 4
    %s94 = int_to_ptr.vmem [resolvable:$true] %s93
    %97 = sst [smem:[#allocation18]] 512
    %s98 = scalar_lea.smem [#allocation18], 1
    %99 = sst [smem:[%s98]] 512
    %s100 = scalar_lea.smem [#allocation18], 2
    %101 = sst [smem:[%s100]] 4
    %s102 = scalar_lea.smem [#allocation18], 3
    %103 = sst [smem:[%s102]] 64
    %s104 = scalar_lea.smem [#allocation18], 4
    %105 = sst [smem:[%s104]] 128
    %s106 = scalar_lea.smem [#allocation18], 5
    %107 = sst [smem:[%s106]] 2
    %s108 = scalar_lea.smem [#allocation18], 6
    %109 = sst [smem:[%s108]] 256
    %s110 = scalar_lea.smem [#allocation18], 7
    %111 = sst [smem:[%s110]] 64
    %s112 = scalar_lea.smem [#allocation18], 8
    %113 = sst [smem:[%s112]] 4
    %115 = dma.general %s6, 4096, %s94, [#allocation7], [#allocation17], [#allocation18], %s92, 0
    %s116 = scalar_lea.sflag [#allocation7], 1
    %s118 = sshll.u32 1, 14
    %s119 = sxor.u32 4294967295, %s118
    %s121 = sadd.s32 2, %s85
    %s123 = sshll.u32 7, 26
    %s124 = sxor.u32 4294967295, %s123
    %s125 = sand.u32 0, %s124
    %s126 = sshll.u32 %s121, 26
    %s127 = sor.u32 %s125, %s126
    %s128 = sshll.u32 [#allocation5], 4
    %s129 = int_to_ptr.vmem [resolvable:$true] %s128
    %132 = sst [smem:[#allocation20]] 512
    %s133 = scalar_lea.smem [#allocation20], 1
    %134 = sst [smem:[%s133]] 512
    %s135 = scalar_lea.smem [#allocation20], 2
    %136 = sst [smem:[%s135]] 4
    %s137 = scalar_lea.smem [#allocation20], 3
    %138 = sst [smem:[%s137]] 64
    %s139 = scalar_lea.smem [#allocation20], 4
    %140 = sst [smem:[%s139]] 128
    %s141 = scalar_lea.smem [#allocation20], 5
    %142 = sst [smem:[%s141]] 2
    %s143 = scalar_lea.smem [#allocation20], 6
    %144 = sst [smem:[%s143]] 256
    %s145 = scalar_lea.smem [#allocation20], 7
    %146 = sst [smem:[%s145]] 64
    %s147 = scalar_lea.smem [#allocation20], 8
    %148 = sst [smem:[%s147]] 4
    %150 = dma.general %s7, 4096, %s129, %s116, [#allocation19], [#allocation20], %s127, 0
    %s151 = scalar_lea.sflag [#allocation7], 2
    %s153 = sshll.u32 1, 14
    %s154 = sxor.u32 4294967295, %s153
    %s156 = sadd.s32 2, %s85
    %s158 = sshll.u32 7, 26
    %s159 = sxor.u32 4294967295, %s158
    %s160 = sand.u32 0, %s159
    %s161 = sshll.u32 %s156, 26
    %s162 = sor.u32 %s160, %s161
    %s163 = sshll.u32 [#allocation6], 4
    %s164 = int_to_ptr.vmem [resolvable:$true] %s163
    %167 = sst [smem:[#allocation22]] 1024
    %s168 = scalar_lea.smem [#allocation22], 1
    %169 = sst [smem:[%s168]] 1024
    %s170 = scalar_lea.smem [#allocation22], 2
    %171 = sst [smem:[%s170]] 8
    %s172 = scalar_lea.smem [#allocation22], 3
    %173 = sst [smem:[%s172]] 64
    %s174 = scalar_lea.smem [#allocation22], 4
    %175 = sst [smem:[%s174]] 128
    %s176 = scalar_lea.smem [#allocation22], 5
    %177 = sst [smem:[%s176]] 2
    %s178 = scalar_lea.smem [#allocation22], 6
    %179 = sst [smem:[%s178]] 512
    %s180 = scalar_lea.smem [#allocation22], 7
    %181 = sst [smem:[%s180]] 64
    %s182 = scalar_lea.smem [#allocation22], 8
    %183 = sst [smem:[%s182]] 4
    %185 = dma.general %s8, 8192, %s164, %s151, [#allocation21], [#allocation22], %s162, 0
    %v186 = vld [vmem:[#allocation8] sm:$0xff]
    %v187 = vld [vmem:[#allocation8 + $0x8] sm:$0xff]
    %v188 = vld [vmem:[#allocation8 + $0x10] sm:$0xff]
    %v189 = vld [vmem:[#allocation8 + $0x18] sm:$0xff]
    %v190 = vld [vmem:[#allocation8 + $0x20] sm:$0xff]
    %v191 = vld [vmem:[#allocation8 + $0x28] sm:$0xff]
    %v192 = vld [vmem:[#allocation8 + $0x30] sm:$0xff]
    %v193 = vld [vmem:[#allocation8 + $0x38] sm:$0xff]
    %v194 = vld [vmem:[#allocation11] sm:$0xff]
    %v195 = vld [vmem:[#allocation11 + $0x8] sm:$0xff]
    %v196 = vld [vmem:[#allocation11 + $0x10] sm:$0xff]
    %v197 = vld [vmem:[#allocation11 + $0x18] sm:$0xff]
    %v198 = vld [vmem:[#allocation11 + $0x20] sm:$0xff]
    %v199 = vld [vmem:[#allocation11 + $0x28] sm:$0xff]
    %v200 = vld [vmem:[#allocation11 + $0x30] sm:$0xff]
    %v201 = vld [vmem:[#allocation11 + $0x38] sm:$0xff]
    %v202 = vld [vmem:[#allocation11 + $0x40] sm:$0xff]
    %v203 = vld [vmem:[#allocation11 + $0x48] sm:$0xff]
    %v204 = vld [vmem:[#allocation11 + $0x50] sm:$0xff]
    %v205 = vld [vmem:[#allocation11 + $0x58] sm:$0xff]
    %v206 = vld [vmem:[#allocation11 + $0x60] sm:$0xff]
    %v207 = vld [vmem:[#allocation11 + $0x68] sm:$0xff]
    %v208 = vld [vmem:[#allocation11 + $0x70] sm:$0xff]
    %v209 = vld [vmem:[#allocation11 + $0x78] sm:$0xff]
    %v210 = vld [vmem:[#allocation11 + $0x80] sm:$0xff]
    %v211 = vld [vmem:[#allocation11 + $0x88] sm:$0xff]
    %v212 = vld [vmem:[#allocation11 + $0x90] sm:$0xff]
    %v213 = vld [vmem:[#allocation11 + $0x98] sm:$0xff]
    %v214 = vld [vmem:[#allocation11 + $0xa0] sm:$0xff]
    %v215 = vld [vmem:[#allocation11 + $0xa8] sm:$0xff]
    %v216 = vld [vmem:[#allocation11 + $0xb0] sm:$0xff]
    %v217 = vld [vmem:[#allocation11 + $0xb8] sm:$0xff]
    %v218 = vld [vmem:[#allocation11 + $0xc0] sm:$0xff]
    %v219 = vld [vmem:[#allocation11 + $0xc8] sm:$0xff]
    %v220 = vld [vmem:[#allocation11 + $0xd0] sm:$0xff]
    %v221 = vld [vmem:[#allocation11 + $0xd8] sm:$0xff]
    %v222 = vld [vmem:[#allocation11 + $0xe0] sm:$0xff]
    %v223 = vld [vmem:[#allocation11 + $0xe8] sm:$0xff]
    %v224 = vld [vmem:[#allocation11 + $0xf0] sm:$0xff]
    %v225 = vld [vmem:[#allocation11 + $0xf8] sm:$0xff]
    %v226 = vld [vmem:[#allocation11 + $0x100] sm:$0xff]
    %v227 = vld [vmem:[#allocation11 + $0x108] sm:$0xff]
    %v228 = vld [vmem:[#allocation11 + $0x110] sm:$0xff]
    %v229 = vld [vmem:[#allocation11 + $0x118] sm:$0xff]
    %v230 = vld [vmem:[#allocation11 + $0x120] sm:$0xff]
    %v231 = vld [vmem:[#allocation11 + $0x128] sm:$0xff]
    %v232 = vld [vmem:[#allocation11 + $0x130] sm:$0xff]
    %v233 = vld [vmem:[#allocation11 + $0x138] sm:$0xff]
    %v234 = vld [vmem:[#allocation11 + $0x140] sm:$0xff]
    %v235 = vld [vmem:[#allocation11 + $0x148] sm:$0xff]
    %v236 = vld [vmem:[#allocation11 + $0x150] sm:$0xff]
    %v237 = vld [vmem:[#allocation11 + $0x158] sm:$0xff]
    %v238 = vld [vmem:[#allocation11 + $0x160] sm:$0xff]
    %v239 = vld [vmem:[#allocation11 + $0x168] sm:$0xff]
    %v240 = vld [vmem:[#allocation11 + $0x170] sm:$0xff]
    %v241 = vld [vmem:[#allocation11 + $0x178] sm:$0xff]
    %v242 = vld [vmem:[#allocation11 + $0x180] sm:$0xff]
    %v243 = vld [vmem:[#allocation11 + $0x188] sm:$0xff]
    %v244 = vld [vmem:[#allocation11 + $0x190] sm:$0xff]
    %v245 = vld [vmem:[#allocation11 + $0x198] sm:$0xff]
    %v246 = vld [vmem:[#allocation11 + $0x1a0] sm:$0xff]
    %v247 = vld [vmem:[#allocation11 + $0x1a8] sm:$0xff]
    %v248 = vld [vmem:[#allocation11 + $0x1b0] sm:$0xff]
    %v249 = vld [vmem:[#allocation11 + $0x1b8] sm:$0xff]
    %v250 = vld [vmem:[#allocation11 + $0x1c0] sm:$0xff]
    %v251 = vld [vmem:[#allocation11 + $0x1c8] sm:$0xff]
    %v252 = vld [vmem:[#allocation11 + $0x1d0] sm:$0xff]
    %v253 = vld [vmem:[#allocation11 + $0x1d8] sm:$0xff]
    %v254 = vld [vmem:[#allocation11 + $0x1e0] sm:$0xff]
    %v255 = vld [vmem:[#allocation11 + $0x1e8] sm:$0xff]
    %v256 = vld [vmem:[#allocation11 + $0x1f0] sm:$0xff]
    %v257 = vld [vmem:[#allocation11 + $0x1f8] sm:$0xff]
    %v258 = vld [vmem:[%s3] sm:$0xf]
    %v260 = vlaneseq
    %v261 = vshrl.u32 %v260, 7
    %v262 = vsub.s32 0, %v261
    %v263 = vrot.slane %v258, %v262
    %v264 = vlaneseq
    %v265 = vshrl.u32 %v264, 7
    %v266 = vsub.s32 1, %v265
    %v267 = vrot.slane %v258, %v266
    %v268 = vlaneseq
    %v269 = vshrl.u32 %v268, 7
    %v270 = vsub.s32 2, %v269
    %v271 = vrot.slane %v258, %v270
    %v272 = vlaneseq
    %v273 = vshrl.u32 %v272, 7
    %v274 = vsub.s32 3, %v273
    %v275 = vrot.slane %v258, %v274
    %v288 = vunpack.c.l.b16 %v186
    %v289 = vunpack.c.h.b16 %v186
    %v290 = vunpack.c.l.b16 %v187
    %v291 = vunpack.c.h.b16 %v187
    %v292 = vunpack.c.l.b16 %v188
    %v293 = vunpack.c.h.b16 %v188
    %v294 = vunpack.c.l.b16 %v189
    %v295 = vunpack.c.h.b16 %v189
    %v296 = vunpack.c.l.b16 %v190
    %v297 = vunpack.c.h.b16 %v190
    %v298 = vunpack.c.l.b16 %v191
    %v299 = vunpack.c.h.b16 %v191
    %v300 = vunpack.c.l.b16 %v192
    %v301 = vunpack.c.h.b16 %v192
    %v302 = vunpack.c.l.b16 %v193
    %v303 = vunpack.c.h.b16 %v193
    %v304 = vpack.c.b16 %v290, %v288
    %v305 = vpack.c.b16 %v291, %v289
    %v306 = vpack.c.b16 %v294, %v292
    %v307 = vpack.c.b16 %v295, %v293
    %v308 = vpack.c.b16 %v298, %v296
    %v309 = vpack.c.b16 %v299, %v297
    %v310 = vpack.c.b16 %v302, %v300
    %v311 = vpack.c.b16 %v303, %v301
    %v384 = vunpack.c.l.b16 %v194
    %v385 = vunpack.c.h.b16 %v194
    %v386 = vunpack.c.l.b16 %v195
    %v387 = vunpack.c.h.b16 %v195
    %v388 = vunpack.c.l.b16 %v196
    %v389 = vunpack.c.h.b16 %v196
    %v390 = vunpack.c.l.b16 %v197
    %v391 = vunpack.c.h.b16 %v197
    %v392 = vunpack.c.l.b16 %v198
    %v393 = vunpack.c.h.b16 %v198
    %v394 = vunpack.c.l.b16 %v199
    %v395 = vunpack.c.h.b16 %v199
    %v396 = vunpack.c.l.b16 %v200
    %v397 = vunpack.c.h.b16 %v200
    %v398 = vunpack.c.l.b16 %v201
    %v399 = vunpack.c.h.b16 %v201
    %v400 = vunpack.c.l.b16 %v202
    %v401 = vunpack.c.h.b16 %v202
    %v402 = vunpack.c.l.b16 %v203
    %v403 = vunpack.c.h.b16 %v203
    %v404 = vunpack.c.l.b16 %v204
    %v405 = vunpack.c.h.b16 %v204
    %v406 = vunpack.c.l.b16 %v205
    %v407 = vunpack.c.h.b16 %v205
    %v408 = vunpack.c.l.b16 %v206
    %v409 = vunpack.c.h.b16 %v206
    %v410 = vunpack.c.l.b16 %v207
    %v411 = vunpack.c.h.b16 %v207
    %v412 = vunpack.c.l.b16 %v208
    %v413 = vunpack.c.h.b16 %v208
    %v414 = vunpack.c.l.b16 %v209
    %v415 = vunpack.c.h.b16 %v209
    %v416 = vunpack.c.l.b16 %v210
    %v417 = vunpack.c.h.b16 %v210
    %v418 = vunpack.c.l.b16 %v211
    %v419 = vunpack.c.h.b16 %v211
    %v420 = vunpack.c.l.b16 %v212
    %v421 = vunpack.c.h.b16 %v212
    %v422 = vunpack.c.l.b16 %v213
    %v423 = vunpack.c.h.b16 %v213
    %v424 = vunpack.c.l.b16 %v214
    %v425 = vunpack.c.h.b16 %v214
    %v426 = vunpack.c.l.b16 %v215
    %v427 = vunpack.c.h.b16 %v215
    %v428 = vunpack.c.l.b16 %v216
    %v429 = vunpack.c.h.b16 %v216
    %v430 = vunpack.c.l.b16 %v217
    %v431 = vunpack.c.h.b16 %v217
    %v432 = vunpack.c.l.b16 %v218
    %v433 = vunpack.c.h.b16 %v218
    %v434 = vunpack.c.l.b16 %v219
    %v435 = vunpack.c.h.b16 %v219
    %v436 = vunpack.c.l.b16 %v220
    %v437 = vunpack.c.h.b16 %v220
    %v438 = vunpack.c.l.b16 %v221
    %v439 = vunpack.c.h.b16 %v221
    %v440 = vunpack.c.l.b16 %v222
    %v441 = vunpack.c.h.b16 %v222
    %v442 = vunpack.c.l.b16 %v223
    %v443 = vunpack.c.h.b16 %v223
    %v444 = vunpack.c.l.b16 %v224
    %v445 = vunpack.c.h.b16 %v224
    %v446 = vunpack.c.l.b16 %v225
    %v447 = vunpack.c.h.b16 %v225
    %v448 = vunpack.c.l.b16 %v226
    %v449 = vunpack.c.h.b16 %v226
    %v450 = vunpack.c.l.b16 %v227
    %v451 = vunpack.c.h.b16 %v227
    %v452 = vunpack.c.l.b16 %v228
    %v453 = vunpack.c.h.b16 %v228
    %v454 = vunpack.c.l.b16 %v229
    %v455 = vunpack.c.h.b16 %v229
    %v456 = vunpack.c.l.b16 %v230
    %v457 = vunpack.c.h.b16 %v230
    %v458 = vunpack.c.l.b16 %v231
    %v459 = vunpack.c.h.b16 %v231
    %v460 = vunpack.c.l.b16 %v232
    %v461 = vunpack.c.h.b16 %v232
    %v462 = vunpack.c.l.b16 %v233
    %v463 = vunpack.c.h.b16 %v233
    %v464 = vunpack.c.l.b16 %v234
    %v465 = vunpack.c.h.b16 %v234
    %v466 = vunpack.c.l.b16 %v235
    %v467 = vunpack.c.h.b16 %v235
    %v468 = vunpack.c.l.b16 %v236
    %v469 = vunpack.c.h.b16 %v236
    %v470 = vunpack.c.l.b16 %v237
    %v471 = vunpack.c.h.b16 %v237
    %v472 = vunpack.c.l.b16 %v238
    %v473 = vunpack.c.h.b16 %v238
    %v474 = vunpack.c.l.b16 %v239
    %v475 = vunpack.c.h.b16 %v239
    %v476 = vunpack.c.l.b16 %v240
    %v477 = vunpack.c.h.b16 %v240
    %v478 = vunpack.c.l.b16 %v241
    %v479 = vunpack.c.h.b16 %v241
    %v480 = vunpack.c.l.b16 %v242
    %v481 = vunpack.c.h.b16 %v242
    %v482 = vunpack.c.l.b16 %v243
    %v483 = vunpack.c.h.b16 %v243
    %v484 = vunpack.c.l.b16 %v244
    %v485 = vunpack.c.h.b16 %v244
    %v486 = vunpack.c.l.b16 %v245
    %v487 = vunpack.c.h.b16 %v245
    %v488 = vunpack.c.l.b16 %v246
    %v489 = vunpack.c.h.b16 %v246
    %v490 = vunpack.c.l.b16 %v247
    %v491 = vunpack.c.h.b16 %v247
    %v492 = vunpack.c.l.b16 %v248
    %v493 = vunpack.c.h.b16 %v248
    %v494 = vunpack.c.l.b16 %v249
    %v495 = vunpack.c.h.b16 %v249
    %v496 = vunpack.c.l.b16 %v250
    %v497 = vunpack.c.h.b16 %v250
    %v498 = vunpack.c.l.b16 %v251
    %v499 = vunpack.c.h.b16 %v251
    %v500 = vunpack.c.l.b16 %v252
    %v501 = vunpack.c.h.b16 %v252
    %v502 = vunpack.c.l.b16 %v253
    %v503 = vunpack.c.h.b16 %v253
    %v504 = vunpack.c.l.b16 %v254
    %v505 = vunpack.c.h.b16 %v254
    %v506 = vunpack.c.l.b16 %v255
    %v507 = vunpack.c.h.b16 %v255
    %v508 = vunpack.c.l.b16 %v256
    %v509 = vunpack.c.h.b16 %v256
    %v510 = vunpack.c.l.b16 %v257
    %v511 = vunpack.c.h.b16 %v257
    %v512 = vpack.c.b16 %v388, %v384
    %v513 = vpack.c.b16 %v389, %v385
    %v514 = vpack.c.b16 %v390, %v386
    %v515 = vpack.c.b16 %v391, %v387
    %v516 = vpack.c.b16 %v396, %v392
    %v517 = vpack.c.b16 %v397, %v393
    %v518 = vpack.c.b16 %v398, %v394
    %v519 = vpack.c.b16 %v399, %v395
    %v520 = vpack.c.b16 %v404, %v400
    %v521 = vpack.c.b16 %v405, %v401
    %v522 = vpack.c.b16 %v406, %v402
    %v523 = vpack.c.b16 %v407, %v403
    %v524 = vpack.c.b16 %v412, %v408
    %v525 = vpack.c.b16 %v413, %v409
    %v526 = vpack.c.b16 %v414, %v410
    %v527 = vpack.c.b16 %v415, %v411
    %v528 = vpack.c.b16 %v420, %v416
    %v529 = vpack.c.b16 %v421, %v417
    %v530 = vpack.c.b16 %v422, %v418
    %v531 = vpack.c.b16 %v423, %v419
    %v532 = vpack.c.b16 %v428, %v424
    %v533 = vpack.c.b16 %v429, %v425
    %v534 = vpack.c.b16 %v430, %v426
    %v535 = vpack.c.b16 %v431, %v427
    %v536 = vpack.c.b16 %v436, %v432
    %v537 = vpack.c.b16 %v437, %v433
    %v538 = vpack.c.b16 %v438, %v434
    %v539 = vpack.c.b16 %v439, %v435
    %v540 = vpack.c.b16 %v444, %v440
    %v541 = vpack.c.b16 %v445, %v441
    %v542 = vpack.c.b16 %v446, %v442
    %v543 = vpack.c.b16 %v447, %v443
    %v544 = vpack.c.b16 %v452, %v448
    %v545 = vpack.c.b16 %v453, %v449
    %v546 = vpack.c.b16 %v454, %v450
    %v547 = vpack.c.b16 %v455, %v451
    %v548 = vpack.c.b16 %v460, %v456
    %v549 = vpack.c.b16 %v461, %v457
    %v550 = vpack.c.b16 %v462, %v458
    %v551 = vpack.c.b16 %v463, %v459
    %v552 = vpack.c.b16 %v468, %v464
    %v553 = vpack.c.b16 %v469, %v465
    %v554 = vpack.c.b16 %v470, %v466
    %v555 = vpack.c.b16 %v471, %v467
    %v556 = vpack.c.b16 %v476, %v472
    %v557 = vpack.c.b16 %v477, %v473
    %v558 = vpack.c.b16 %v478, %v474
    %v559 = vpack.c.b16 %v479, %v475
    %v560 = vpack.c.b16 %v484, %v480
    %v561 = vpack.c.b16 %v485, %v481
    %v562 = vpack.c.b16 %v486, %v482
    %v563 = vpack.c.b16 %v487, %v483
    %v564 = vpack.c.b16 %v492, %v488
    %v565 = vpack.c.b16 %v493, %v489
    %v566 = vpack.c.b16 %v494, %v490
    %v567 = vpack.c.b16 %v495, %v491
    %v568 = vpack.c.b16 %v500, %v496
    %v569 = vpack.c.b16 %v501, %v497
    %v570 = vpack.c.b16 %v502, %v498
    %v571 = vpack.c.b16 %v503, %v499
    %v572 = vpack.c.b16 %v508, %v504
    %v573 = vpack.c.b16 %v509, %v505
    %v574 = vpack.c.b16 %v510, %v506
    %v575 = vpack.c.b16 %v511, %v507
    %640 = vmatprep.subr.bf16.mxu0 %v513
    %641 = vmatpush1.bf16.msra.mxu0 %v512
    %642 = vmatprep.subr.bf16.mxu0 %v517
    %643 = vmatpush1.bf16.msra.mxu0 %v516
    %644 = vmatprep.subr.bf16.mxu0 %v521
    %645 = vmatpush1.bf16.msra.mxu0 %v520
    %646 = vmatprep.subr.bf16.mxu0 %v525
    %647 = vmatpush1.bf16.msra.mxu0 %v524
    %648 = vmatprep.subr.bf16.mxu0 %v529
    %649 = vmatpush1.bf16.msra.mxu0 %v528
    %650 = vmatprep.subr.bf16.mxu0 %v533
    %651 = vmatpush1.bf16.msra.mxu0 %v532
    %652 = vmatprep.subr.bf16.mxu0 %v537
    %653 = vmatpush1.bf16.msra.mxu0 %v536
    %654 = vmatprep.subr.bf16.mxu0 %v541
    %655 = vmatpush1.bf16.msra.mxu0 %v540
    %656 = vmatprep.subr.bf16.mxu0 %v545
    %657 = vmatpush1.bf16.msra.mxu0 %v544
    %658 = vmatprep.subr.bf16.mxu0 %v549
    %659 = vmatpush1.bf16.msra.mxu0 %v548
    %660 = vmatprep.subr.bf16.mxu0 %v553
    %661 = vmatpush1.bf16.msra.mxu0 %v552
    %662 = vmatprep.subr.bf16.mxu0 %v557
    %663 = vmatpush1.bf16.msra.mxu0 %v556
    %664 = vmatprep.subr.bf16.mxu0 %v561
    %665 = vmatpush1.bf16.msra.mxu0 %v560
    %666 = vmatprep.subr.bf16.mxu0 %v565
    %667 = vmatpush1.bf16.msra.mxu0 %v564
    %668 = vmatprep.subr.bf16.mxu0 %v569
    %669 = vmatpush1.bf16.msra.mxu0 %v568
    %670 = vmatprep.subr.bf16.mxu0 %v573
    %671 = vmatpush1.bf16.msra.mxu0 %v572
    %672 = vmatprep.mubr.bf16.mxu0 %v305
    %673 = vmatmul.mubr.bf16.gmra.mrb[0].mxu0 %v304
    %v674 = vpop.f32.mrb[0].mxu0
    %v675 = vadd.f32 %v263, %v674
    %v676 = vpop.f32.mrb[0].mxu0
    %v677 = vadd.f32 %v267, %v676
    %v678 = vpop.f32.mrb[0].mxu0
    %v679 = vadd.f32 %v263, %v678
    %v680 = vpop.f32.mrb[0].mxu0
    %v681 = vadd.f32 %v267, %v680
    %682 = vmatprep.mubr.bf16.mxu0 %v307
    %683 = vmatmul.mubr.bf16.gmra.mrb[0].mxu0 %v306
    %v684 = vpop.f32.mrb[0].mxu0
    %v685 = vadd.f32 %v263, %v684
    %v686 = vpop.f32.mrb[0].mxu0
    %v687 = vadd.f32 %v267, %v686
    %v688 = vpop.f32.mrb[0].mxu0
    %v689 = vadd.f32 %v263, %v688
    %v690 = vpop.f32.mrb[0].mxu0
    %v691 = vadd.f32 %v267, %v690
    %692 = vmatprep.mubr.bf16.mxu0 %v309
    %693 = vmatmul.mubr.bf16.gmra.mrb[0].mxu0 %v308
    %v694 = vpop.f32.mrb[0].mxu0
    %v695 = vadd.f32 %v263, %v694
    %v696 = vpop.f32.mrb[0].mxu0
    %v697 = vadd.f32 %v267, %v696
    %v698 = vpop.f32.mrb[0].mxu0
    %v699 = vadd.f32 %v263, %v698
    %v700 = vpop.f32.mrb[0].mxu0
    %v701 = vadd.f32 %v267, %v700
    %702 = vmatprep.mubr.bf16.mxu0 %v311
    %703 = vmatmul.mubr.bf16.gmra.mrb[0].mxu0 %v310
    %v704 = vpop.f32.mrb[0].mxu0
    %v705 = vadd.f32 %v263, %v704
    %v706 = vpop.f32.mrb[0].mxu0
    %v707 = vadd.f32 %v267, %v706
    %v708 = vpop.f32.mrb[0].mxu0
    %v709 = vadd.f32 %v263, %v708
    %v710 = vpop.f32.mrb[0].mxu0
    %v711 = vadd.f32 %v267, %v710
    %712 = vdwg.mxu0
    %713 = vmatprep.subr.bf16.mxu0 %v515
    %714 = vmatpush1.bf16.msra.mxu0 %v514
    %715 = vmatprep.subr.bf16.mxu0 %v519
    %716 = vmatpush1.bf16.msra.mxu0 %v518
    %717 = vmatprep.subr.bf16.mxu0 %v523
    %718 = vmatpush1.bf16.msra.mxu0 %v522
    %719 = vmatprep.subr.bf16.mxu0 %v527
    %720 = vmatpush1.bf16.msra.mxu0 %v526
    %721 = vmatprep.subr.bf16.mxu0 %v531
    %722 = vmatpush1.bf16.msra.mxu0 %v530
    %723 = vmatprep.subr.bf16.mxu0 %v535
    %724 = vmatpush1.bf16.msra.mxu0 %v534
    %725 = vmatprep.subr.bf16.mxu0 %v539
    %726 = vmatpush1.bf16.msra.mxu0 %v538
    %727 = vmatprep.subr.bf16.mxu0 %v543
    %728 = vmatpush1.bf16.msra.mxu0 %v542
    %729 = vmatprep.subr.bf16.mxu0 %v547
    %730 = vmatpush1.bf16.msra.mxu0 %v546
    %731 = vmatprep.subr.bf16.mxu0 %v551
    %732 = vmatpush1.bf16.msra.mxu0 %v550
    %733 = vmatprep.subr.bf16.mxu0 %v555
    %734 = vmatpush1.bf16.msra.mxu0 %v554
    %735 = vmatprep.subr.bf16.mxu0 %v559
    %736 = vmatpush1.bf16.msra.mxu0 %v558
    %737 = vmatprep.subr.bf16.mxu0 %v563
    %738 = vmatpush1.bf16.msra.mxu0 %v562
    %739 = vmatprep.subr.bf16.mxu0 %v567
    %740 = vmatpush1.bf16.msra.mxu0 %v566
    %741 = vmatprep.subr.bf16.mxu0 %v571
    %742 = vmatpush1.bf16.msra.mxu0 %v570
    %743 = vmatprep.subr.bf16.mxu0 %v575
    %744 = vmatpush1.bf16.msra.mxu0 %v574
    %745 = vmatprep.mubr.bf16.mxu0 %v305
    %746 = vmatmul.mubr.bf16.gmra.mrb[0].mxu0 %v304
    %v747 = vpop.f32.mrb[0].mxu0
    %v748 = vadd.f32 %v271, %v747
    %v749 = vpop.f32.mrb[0].mxu0
    %v750 = vadd.f32 %v275, %v749
    %v751 = vpop.f32.mrb[0].mxu0
    %v752 = vadd.f32 %v271, %v751
    %v753 = vpop.f32.mrb[0].mxu0
    %v754 = vadd.f32 %v275, %v753
    %755 = vmatprep.mubr.bf16.mxu0 %v307
    %756 = vmatmul.mubr.bf16.gmra.mrb[0].mxu0 %v306
    %v757 = vpop.f32.mrb[0].mxu0
    %v758 = vadd.f32 %v271, %v757
    %v759 = vpop.f32.mrb[0].mxu0
    %v760 = vadd.f32 %v275, %v759
    %v761 = vpop.f32.mrb[0].mxu0
    %v762 = vadd.f32 %v271, %v761
    %v763 = vpop.f32.mrb[0].mxu0
    %v764 = vadd.f32 %v275, %v763
    %765 = vmatprep.mubr.bf16.mxu0 %v309
    %766 = vmatmul.mubr.bf16.gmra.mrb[0].mxu0 %v308
    %v767 = vpop.f32.mrb[0].mxu0
    %v768 = vadd.f32 %v271, %v767
    %v769 = vpop.f32.mrb[0].mxu0
    %v770 = vadd.f32 %v275, %v769
    %v771 = vpop.f32.mrb[0].mxu0
    %v772 = vadd.f32 %v271, %v771
    %v773 = vpop.f32.mrb[0].mxu0
    %v774 = vadd.f32 %v275, %v773
    %775 = vmatprep.mubr.bf16.mxu0 %v311
    %776 = vmatmul.mubr.bf16.gmra.mrb[0].mxu0 %v310
    %v777 = vpop.f32.mrb[0].mxu0
    %v778 = vadd.f32 %v271, %v777
    %v779 = vpop.f32.mrb[0].mxu0
    %v780 = vadd.f32 %v275, %v779
    %v781 = vpop.f32.mrb[0].mxu0
    %v782 = vadd.f32 %v271, %v781
    %v783 = vpop.f32.mrb[0].mxu0
    %v784 = vadd.f32 %v275, %v783
    %785 = vdwg.mxu0
    %786 = vst [vmem:[#allocation2] sm:$0xff] %v675
    %787 = vst [vmem:[#allocation2 + $0x8] sm:$0xff] %v677
    %788 = vst [vmem:[#allocation2 + $0x10] sm:$0xff] %v748
    %789 = vst [vmem:[#allocation2 + $0x18] sm:$0xff] %v750
    %790 = vst [vmem:[#allocation2 + $0x20] sm:$0xff] %v679
    %791 = vst [vmem:[#allocation2 + $0x28] sm:$0xff] %v681
    %792 = vst [vmem:[#allocation2 + $0x30] sm:$0xff] %v752
    %793 = vst [vmem:[#allocation2 + $0x38] sm:$0xff] %v754
    %794 = vst [vmem:[#allocation2 + $0x40] sm:$0xff] %v685
    %795 = vst [vmem:[#allocation2 + $0x48] sm:$0xff] %v687
    %796 = vst [vmem:[#allocation2 + $0x50] sm:$0xff] %v758
    %797 = vst [vmem:[#allocation2 + $0x58] sm:$0xff] %v760
    %798 = vst [vmem:[#allocation2 + $0x60] sm:$0xff] %v689
    %799 = vst [vmem:[#allocation2 + $0x68] sm:$0xff] %v691
    %800 = vst [vmem:[#allocation2 + $0x70] sm:$0xff] %v762
    %801 = vst [vmem:[#allocation2 + $0x78] sm:$0xff] %v764
    %802 = vst [vmem:[#allocation2 + $0x80] sm:$0xff] %v695
    %803 = vst [vmem:[#allocation2 + $0x88] sm:$0xff] %v697
    %804 = vst [vmem:[#allocation2 + $0x90] sm:$0xff] %v768
    %805 = vst [vmem:[#allocation2 + $0x98] sm:$0xff] %v770
    %806 = vst [vmem:[#allocation2 + $0xa0] sm:$0xff] %v699
    %807 = vst [vmem:[#allocation2 + $0xa8] sm:$0xff] %v701
    %808 = vst [vmem:[#allocation2 + $0xb0] sm:$0xff] %v772
    %809 = vst [vmem:[#allocation2 + $0xb8] sm:$0xff] %v774
    %810 = vst [vmem:[#allocation2 + $0xc0] sm:$0xff] %v705
    %811 = vst [vmem:[#allocation2 + $0xc8] sm:$0xff] %v707
    %812 = vst [vmem:[#allocation2 + $0xd0] sm:$0xff] %v778
    %813 = vst [vmem:[#allocation2 + $0xd8] sm:$0xff] %v780
    %814 = vst [vmem:[#allocation2 + $0xe0] sm:$0xff] %v709
    %815 = vst [vmem:[#allocation2 + $0xe8] sm:$0xff] %v711
    %816 = vst [vmem:[#allocation2 + $0xf0] sm:$0xff] %v782
    %817 = vst [vmem:[#allocation2 + $0xf8] sm:$0xff] %v784
    %v818 = vld [vmem:[#allocation2] sm:$0xff]
    %v819 = vld [vmem:[#allocation2 + $0x8] sm:$0xff]
    %v820 = vld [vmem:[#allocation2 + $0x10] sm:$0xff]
    %v821 = vld [vmem:[#allocation2 + $0x18] sm:$0xff]
    %v822 = vld [vmem:[#allocation13] sm:$0xff]
    %v823 = vld [vmem:[#allocation13 + $0x8] sm:$0xff]
    %v824 = vld [vmem:[#allocation13 + $0x10] sm:$0xff]
    %v825 = vld [vmem:[#allocation13 + $0x18] sm:$0xff]
    %v826 = vld [vmem:[#allocation13 + $0x20] sm:$0xff]
    %v827 = vld [vmem:[#allocation13 + $0x28] sm:$0xff]
    %v828 = vld [vmem:[#allocation13 + $0x30] sm:$0xff]
    %v829 = vld [vmem:[#allocation13 + $0x38] sm:$0xff]
    %v830 = vld [vmem:[#allocation13 + $0x40] sm:$0xff]
    %v831 = vld [vmem:[#allocation13 + $0x48] sm:$0xff]
    %v832 = vld [vmem:[#allocation13 + $0x50] sm:$0xff]
    %v833 = vld [vmem:[#allocation13 + $0x58] sm:$0xff]
    %v834 = vld [vmem:[#allocation13 + $0x60] sm:$0xff]
    %v835 = vld [vmem:[#allocation13 + $0x68] sm:$0xff]
    %v836 = vld [vmem:[#allocation13 + $0x70] sm:$0xff]
    %v837 = vld [vmem:[#allocation13 + $0x78] sm:$0xff]
    %v838 = vld [vmem:[#allocation13 + $0x80] sm:$0xff]
    %v839 = vld [vmem:[#allocation13 + $0x88] sm:$0xff]
    %v840 = vld [vmem:[#allocation13 + $0x90] sm:$0xff]
    %v841 = vld [vmem:[#allocation13 + $0x98] sm:$0xff]
    %v842 = vld [vmem:[#allocation13 + $0xa0] sm:$0xff]
    %v843 = vld [vmem:[#allocation13 + $0xa8] sm:$0xff]
    %v844 = vld [vmem:[#allocation13 + $0xb0] sm:$0xff]
    %v845 = vld [vmem:[#allocation13 + $0xb8] sm:$0xff]
    %v846 = vld [vmem:[#allocation13 + $0xc0] sm:$0xff]
    %v847 = vld [vmem:[#allocation13 + $0xc8] sm:$0xff]
    %v848 = vld [vmem:[#allocation13 + $0xd0] sm:$0xff]
    %v849 = vld [vmem:[#allocation13 + $0xd8] sm:$0xff]
    %v850 = vld [vmem:[#allocation13 + $0xe0] sm:$0xff]
    %v851 = vld [vmem:[#allocation13 + $0xe8] sm:$0xff]
    %v852 = vld [vmem:[#allocation13 + $0xf0] sm:$0xff]
    %v853 = vld [vmem:[#allocation13 + $0xf8] sm:$0xff]
    %v886 = vunpack.c.l.b16 %v822
    %v887 = vunpack.c.h.b16 %v822
    %v888 = vunpack.c.l.b16 %v823
    %v889 = vunpack.c.h.b16 %v823
    %v890 = vunpack.c.l.b16 %v824
    %v891 = vunpack.c.h.b16 %v824
    %v892 = vunpack.c.l.b16 %v825
    %v893 = vunpack.c.h.b16 %v825
    %v894 = vunpack.c.l.b16 %v826
    %v895 = vunpack.c.h.b16 %v826
    %v896 = vunpack.c.l.b16 %v827
    %v897 = vunpack.c.h.b16 %v827
    %v898 = vunpack.c.l.b16 %v828
    %v899 = vunpack.c.h.b16 %v828
    %v900 = vunpack.c.l.b16 %v829
    %v901 = vunpack.c.h.b16 %v829
    %v902 = vunpack.c.l.b16 %v830
    %v903 = vunpack.c.h.b16 %v830
    %v904 = vunpack.c.l.b16 %v831
    %v905 = vunpack.c.h.b16 %v831
    %v906 = vunpack.c.l.b16 %v832
    %v907 = vunpack.c.h.b16 %v832
    %v908 = vunpack.c.l.b16 %v833
    %v909 = vunpack.c.h.b16 %v833
    %v910 = vunpack.c.l.b16 %v834
    %v911 = vunpack.c.h.b16 %v834
    %v912 = vunpack.c.l.b16 %v835
    %v913 = vunpack.c.h.b16 %v835
    %v914 = vunpack.c.l.b16 %v836
    %v915 = vunpack.c.h.b16 %v836
    %v916 = vunpack.c.l.b16 %v837
    %v917 = vunpack.c.h.b16 %v837
    %v918 = vunpack.c.l.b16 %v838
    %v919 = vunpack.c.h.b16 %v838
    %v920 = vunpack.c.l.b16 %v839
    %v921 = vunpack.c.h.b16 %v839
    %v922 = vunpack.c.l.b16 %v840
    %v923 = vunpack.c.h.b16 %v840
    %v924 = vunpack.c.l.b16 %v841
    %v925 = vunpack.c.h.b16 %v841
    %v926 = vunpack.c.l.b16 %v842
    %v927 = vunpack.c.h.b16 %v842
    %v928 = vunpack.c.l.b16 %v843
    %v929 = vunpack.c.h.b16 %v843
    %v930 = vunpack.c.l.b16 %v844
    %v931 = vunpack.c.h.b16 %v844
    %v932 = vunpack.c.l.b16 %v845
    %v933 = vunpack.c.h.b16 %v845
    %v934 = vunpack.c.l.b16 %v846
    %v935 = vunpack.c.h.b16 %v846
    %v936 = vunpack.c.l.b16 %v847
    %v937 = vunpack.c.h.b16 %v847
    %v938 = vunpack.c.l.b16 %v848
    %v939 = vunpack.c.h.b16 %v848
    %v940 = vunpack.c.l.b16 %v849
    %v941 = vunpack.c.h.b16 %v849
    %v942 = vunpack.c.l.b16 %v850
    %v943 = vunpack.c.h.b16 %v850
    %v944 = vunpack.c.l.b16 %v851
    %v945 = vunpack.c.h.b16 %v851
    %v946 = vunpack.c.l.b16 %v852
    %v947 = vunpack.c.h.b16 %v852
    %v948 = vunpack.c.l.b16 %v853
    %v949 = vunpack.c.h.b16 %v853
    %v950 = vpack.c.b16 %v890, %v886
    %v951 = vpack.c.b16 %v891, %v887
    %v952 = vpack.c.b16 %v892, %v888
    %v953 = vpack.c.b16 %v893, %v889
    %v954 = vpack.c.b16 %v898, %v894
    %v955 = vpack.c.b16 %v899, %v895
    %v956 = vpack.c.b16 %v900, %v896
    %v957 = vpack.c.b16 %v901, %v897
    %v958 = vpack.c.b16 %v906, %v902
    %v959 = vpack.c.b16 %v907, %v903
    %v960 = vpack.c.b16 %v908, %v904
    %v961 = vpack.c.b16 %v909, %v905
    %v962 = vpack.c.b16 %v914, %v910
    %v963 = vpack.c.b16 %v915, %v911
    %v964 = vpack.c.b16 %v916, %v912
    %v965 = vpack.c.b16 %v917, %v913
    %v966 = vpack.c.b16 %v922, %v918
    %v967 = vpack.c.b16 %v923, %v919
    %v968 = vpack.c.b16 %v924, %v920
    %v969 = vpack.c.b16 %v925, %v921
    %v970 = vpack.c.b16 %v930, %v926
    %v971 = vpack.c.b16 %v931, %v927
    %v972 = vpack.c.b16 %v932, %v928
    %v973 = vpack.c.b16 %v933, %v929
    %v974 = vpack.c.b16 %v938, %v934
    %v975 = vpack.c.b16 %v939, %v935
    %v976 = vpack.c.b16 %v940, %v936
    %v977 = vpack.c.b16 %v941, %v937
    %v978 = vpack.c.b16 %v946, %v942
    %v979 = vpack.c.b16 %v947, %v943
    %v980 = vpack.c.b16 %v948, %v944
    %v981 = vpack.c.b16 %v949, %v945
    %1014 = vmatprep.subr.bf16.mxu0 %v951
    %1015 = vmatpush1.bf16.msra.mxu0 %v950
    %1016 = vmatprep.subr.bf16.mxu0 %v955
    %1017 = vmatpush1.bf16.msra.mxu0 %v954
    %1018 = vmatprep.subr.bf16.mxu0 %v959
    %1019 = vmatpush1.bf16.msra.mxu0 %v958
    %1020 = vmatprep.subr.bf16.mxu0 %v963
    %1021 = vmatpush1.bf16.msra.mxu0 %v962
    %1022 = vmatprep.subr.bf16.mxu0 %v967
    %1023 = vmatpush1.bf16.msra.mxu0 %v966
    %1024 = vmatprep.subr.bf16.mxu0 %v971
    %1025 = vmatpush1.bf16.msra.mxu0 %v970
    %1026 = vmatprep.subr.bf16.mxu0 %v975
    %1027 = vmatpush1.bf16.msra.mxu0 %v974
    %1028 = vmatprep.subr.bf16.mxu0 %v979
    %1029 = vmatpush1.bf16.msra.mxu0 %v978
    %1030 = vmatprep.subr.bf16.mxu0 0
    %1031 = vmatpush1.bf16.msra.mxu0 0
    %1032 = vmatprep.subr.bf16.mxu0 0
    %1033 = vmatpush1.bf16.msra.mxu0 0
    %1034 = vmatprep.subr.bf16.mxu0 0
    %1035 = vmatpush1.bf16.msra.mxu0 0
    %1036 = vmatprep.subr.bf16.mxu0 0
    %1037 = vmatpush1.bf16.msra.mxu0 0
    %1038 = vmatprep.subr.bf16.mxu0 0
    %1039 = vmatpush1.bf16.msra.mxu0 0
    %1040 = vmatprep.subr.bf16.mxu0 0
    %1041 = vmatpush1.bf16.msra.mxu0 0
    %1042 = vmatprep.subr.bf16.mxu0 0
    %1043 = vmatpush1.bf16.msra.mxu0 0
    %1044 = vmatprep.subr.bf16.mxu0 0
    %1045 = vmatpush1.bf16.msra.mxu0 0
    %1046 = vmatprep.mubr.bf16.mxu0 0
    %1047 = vmatmul.mubr.bf16.gmra.mrb[0].mxu0 0
    %v1048 = vpop.f32.mrb[0].mxu0
    %v1049 = vadd.f32 0.0, %v1048
    %v1050 = vpop.f32.mrb[0].mxu0
    %v1051 = vadd.f32 0.0, %v1050
    %v1052 = vpop.f32.mrb[0].mxu0
    %v1053 = vpop.f32.mrb[0].mxu0
    %1054 = vdwg.mxu0
    %1055 = vmatprep.subr.bf16.mxu0 %v953
    %1056 = vmatpush1.bf16.msra.mxu0 %v952
    %1057 = vmatprep.subr.bf16.mxu0 %v957
    %1058 = vmatpush1.bf16.msra.mxu0 %v956
    %1059 = vmatprep.subr.bf16.mxu0 %v961
    %1060 = vmatpush1.bf16.msra.mxu0 %v960
    %1061 = vmatprep.subr.bf16.mxu0 %v965
    %1062 = vmatpush1.bf16.msra.mxu0 %v964
    %1063 = vmatprep.subr.bf16.mxu0 %v969
    %1064 = vmatpush1.bf16.msra.mxu0 %v968
    %1065 = vmatprep.subr.bf16.mxu0 %v973
    %1066 = vmatpush1.bf16.msra.mxu0 %v972
    %1067 = vmatprep.subr.bf16.mxu0 %v977
    %1068 = vmatpush1.bf16.msra.mxu0 %v976
    %1069 = vmatprep.subr.bf16.mxu0 %v981
    %1070 = vmatpush1.bf16.msra.mxu0 %v980
    %1071 = vmatprep.subr.bf16.mxu0 0
    %1072 = vmatpush1.bf16.msra.mxu0 0
    %1073 = vmatprep.subr.bf16.mxu0 0
    %1074 = vmatpush1.bf16.msra.mxu0 0
    %1075 = vmatprep.subr.bf16.mxu0 0
    %1076 = vmatpush1.bf16.msra.mxu0 0
    %1077 = vmatprep.subr.bf16.mxu0 0
    %1078 = vmatpush1.bf16.msra.mxu0 0
    %1079 = vmatprep.subr.bf16.mxu0 0
    %1080 = vmatpush1.bf16.msra.mxu0 0
    %1081 = vmatprep.subr.bf16.mxu0 0
    %1082 = vmatpush1.bf16.msra.mxu0 0
    %1083 = vmatprep.subr.bf16.mxu0 0
    %1084 = vmatpush1.bf16.msra.mxu0 0
    %1085 = vmatprep.subr.bf16.mxu0 0
    %1086 = vmatpush1.bf16.msra.mxu0 0
    %1087 = vmatprep.mubr.bf16.mxu0 0
    %1088 = vmatmul.mubr.bf16.gmra.mrb[0].mxu0 0
    %v1089 = vpop.f32.mrb[0].mxu0
    %v1090 = vadd.f32 0.0, %v1089
    %v1091 = vpop.f32.mrb[0].mxu0
    %v1092 = vadd.f32 0.0, %v1091
    %v1093 = vpop.f32.mrb[0].mxu0
    %v1094 = vpop.f32.mrb[0].mxu0
    %1095 = vdwg.mxu0
    %v1096 = vadd.f32 %v818, %v1049
    %v1097 = vadd.f32 %v819, %v1051
    %v1098 = vadd.f32 %v820, %v1090
    %v1099 = vadd.f32 %v821, %v1092
    %v1100 = vxor.u32 %v1096, 2147483648
    %v1101 = vxor.u32 %v1097, 2147483648
    %v1102 = vxor.u32 %v1098, 2147483648
    %v1103 = vmul.f32 %v1100, 1.442695
    %v1104 = vpow.pop %v1103
    %v1105 = vmul.f32 %v1101, 1.442695
    %v1106 = vpow.pop %v1105
    %v1107 = vmul.f32 %v1102, 1.442695
    %v1108 = vpow.pop %v1107
    %v1109 = vadd.f32 %v1104, 1.0
    %v1110 = vadd.f32 %v1106, 1.0
    %v1111 = vadd.f32 %v1108, 1.0
    %v1112 = vrcp.pop %v1109
    %v1113 = vmul.f32 1.0, %v1112
    %v1114 = vrcp.pop %v1110
    %v1115 = vmul.f32 1.0, %v1114
    %v1116 = vrcp.pop %v1111
    %v1117 = vmul.f32 1.0, %v1116
    %v1118 = vtanh.pop %v1099
    %v1119 = vmul.f32 %v1115, 0.0
    %v1120 = vmul.f32 %v1113, %v1118
    %v1121 = vadd.f32 %v1119, %v1120
    %v1122 = vtanh.pop %v1121
    %v1123 = vmul.f32 %v1117, %v1122
    %v1124 = vpack.c.bf16 %v1123, %v1123
    %1125 = vst [vmem:[#allocation3] sm:$0xf] %v1124
    %v1126 = vld [vmem:[#allocation2 + $0x20] sm:$0xff]
    %v1127 = vld [vmem:[#allocation2 + $0x28] sm:$0xff]
    %v1128 = vld [vmem:[#allocation2 + $0x30] sm:$0xff]
    %v1129 = vld [vmem:[#allocation2 + $0x38] sm:$0xff]
    %v1130 = vld [vmem:[#allocation13] sm:$0xff]
    %v1131 = vld [vmem:[#allocation13 + $0x8] sm:$0xff]
    %v1132 = vld [vmem:[#allocation13 + $0x10] sm:$0xff]
    %v1133 = vld [vmem:[#allocation13 + $0x18] sm:$0xff]
    %v1134 = vld [vmem:[#allocation13 + $0x20] sm:$0xff]
    %v1135 = vld [vmem:[#allocation13 + $0x28] sm:$0xff]
    %v1136 = vld [vmem:[#allocation13 + $0x30] sm:$0xff]
    %v1137 = vld [vmem:[#allocation13 + $0x38] sm:$0xff]
    %v1138 = vld [vmem:[#allocation13 + $0x40] sm:$0xff]
    %v1139 = vld [vmem:[#allocation13 + $0x48] sm:$0xff]
    %v1140 = vld [vmem:[#allocation13 + $0x50] sm:$0xff]
    %v1141 = vld [vmem:[#allocation13 + $0x58] sm:$0xff]
    %v1142 = vld [vmem:[#allocation13 + $0x60] sm:$0xff]
    %v1143 = vld [vmem:[#allocation13 + $0x68] sm:$0xff]
    %v1144 = vld [vmem:[#allocation13 + $0x70] sm:$0xff]
    %v1145 = vld [vmem:[#allocation13 + $0x78] sm:$0xff]
    %v1146 = vld [vmem:[#allocation13 + $0x80] sm:$0xff]
    %v1147 = vld [vmem:[#allocation13 + $0x88] sm:$0xff]
    %v1148 = vld [vmem:[#allocation13 + $0x90] sm:$0xff]
    %v1149 = vld [vmem:[#allocation13 + $0x98] sm:$0xff]
    %v1150 = vld [vmem:[#allocation13 + $0xa0] sm:$0xff]
    %v1151 = vld [vmem:[#allocation13 + $0xa8] sm:$0xff]
    %v1152 = vld [vmem:[#allocation13 + $0xb0] sm:$0xff]
    %v1153 = vld [vmem:[#allocation13 + $0xb8] sm:$0xff]
    %v1154 = vld [vmem:[#allocation13 + $0xc0] sm:$0xff]
    %v1155 = vld [vmem:[#allocation13 + $0xc8] sm:$0xff]
    %v1156 = vld [vmem:[#allocation13 + $0xd0] sm:$0xff]
    %v1157 = vld [vmem:[#allocation13 + $0xd8] sm:$0xff]
    %v1158 = vld [vmem:[#allocation13 + $0xe0] sm:$0xff]
    %v1159 = vld [vmem:[#allocation13 + $0xe8] sm:$0xff]
    %v1160 = vld [vmem:[#allocation13 + $0xf0] sm:$0xff]
    %v1161 = vld [vmem:[#allocation13 + $0xf8] sm:$0xff]
    %v1194 = vunpack.c.l.b16 %v1130
    %v1195 = vunpack.c.h.b16 %v1130
    %v1196 = vunpack.c.l.b16 %v1131
    %v1197 = vunpack.c.h.b16 %v1131
    %v1198 = vunpack.c.l.b16 %v1132
    %v1199 = vunpack.c.h.b16 %v1132
    %v1200 = vunpack.c.l.b16 %v1133
    %v1201 = vunpack.c.h.b16 %v1133
    %v1202 = vunpack.c.l.b16 %v1134
    %v1203 = vunpack.c.h.b16 %v1134
    %v1204 = vunpack.c.l.b16 %v1135
    %v1205 = vunpack.c.h.b16 %v1135
    %v1206 = vunpack.c.l.b16 %v1136
    %v1207 = vunpack.c.h.b16 %v1136
    %v1208 = vunpack.c.l.b16 %v1137
    %v1209 = vunpack.c.h.b16 %v1137
    %v1210 = vunpack.c.l.b16 %v1138
    %v1211 = vunpack.c.h.b16 %v1138
    %v1212 = vunpack.c.l.b16 %v1139
    %v1213 = vunpack.c.h.b16 %v1139
    %v1214 = vunpack.c.l.b16 %v1140
    %v1215 = vunpack.c.h.b16 %v1140
    %v1216 = vunpack.c.l.b16 %v1141
    %v1217 = vunpack.c.h.b16 %v1141
    %v1218 = vunpack.c.l.b16 %v1142
    %v1219 = vunpack.c.h.b16 %v1142
    %v1220 = vunpack.c.l.b16 %v1143
    %v1221 = vunpack.c.h.b16 %v1143
    %v1222 = vunpack.c.l.b16 %v1144
    %v1223 = vunpack.c.h.b16 %v1144
    %v1224 = vunpack.c.l.b16 %v1145
    %v1225 = vunpack.c.h.b16 %v1145
    %v1226 = vunpack.c.l.b16 %v1146
    %v1227 = vunpack.c.h.b16 %v1146
    %v1228 = vunpack.c.l.b16 %v1147
    %v1229 = vunpack.c.h.b16 %v1147
    %v1230 = vunpack.c.l.b16 %v1148
    %v1231 = vunpack.c.h.b16 %v1148
    %v1232 = vunpack.c.l.b16 %v1149
    %v1233 = vunpack.c.h.b16 %v1149
    %v1234 = vunpack.c.l.b16 %v1150
    %v1235 = vunpack.c.h.b16 %v1150
    %v1236 = vunpack.c.l.b16 %v1151
    %v1237 = vunpack.c.h.b16 %v1151
    %v1238 = vunpack.c.l.b16 %v1152
    %v1239 = vunpack.c.h.b16 %v1152
    %v1240 = vunpack.c.l.b16 %v1153
    %v1241 = vunpack.c.h.b16 %v1153
    %v1242 = vunpack.c.l.b16 %v1154
    %v1243 = vunpack.c.h.b16 %v1154
    %v1244 = vunpack.c.l.b16 %v1155
    %v1245 = vunpack.c.h.b16 %v1155
    %v1246 = vunpack.c.l.b16 %v1156
    %v1247 = vunpack.c.h.b16 %v1156
    %v1248 = vunpack.c.l.b16 %v1157
    %v1249 = vunpack.c.h.b16 %v1157
    %v1250 = vunpack.c.l.b16 %v1158
    %v1251 = vunpack.c.h.b16 %v1158
    %v1252 = vunpack.c.l.b16 %v1159
    %v1253 = vunpack.c.h.b16 %v1159
    %v1254 = vunpack.c.l.b16 %v1160
    %v1255 = vunpack.c.h.b16 %v1160
    %v1256 = vunpack.c.l.b16 %v1161
    %v1257 = vunpack.c.h.b16 %v1161
    %v1258 = vpack.c.b16 %v1198, %v1194
    %v1259 = vpack.c.b16 %v1199, %v1195
    %v1260 = vpack.c.b16 %v1200, %v1196
    %v1261 = vpack.c.b16 %v1201, %v1197
    %v1262 = vpack.c.b16 %v1206, %v1202
    %v1263 = vpack.c.b16 %v1207, %v1203
    %v1264 = vpack.c.b16 %v1208, %v1204
    %v1265 = vpack.c.b16 %v1209, %v1205
    %v1266 = vpack.c.b16 %v1214, %v1210
    %v1267 = vpack.c.b16 %v1215, %v1211
    %v1268 = vpack.c.b16 %v1216, %v1212
    %v1269 = vpack.c.b16 %v1217, %v1213
    %v1270 = vpack.c.b16 %v1222, %v1218
    %v1271 = vpack.c.b16 %v1223, %v1219
    %v1272 = vpack.c.b16 %v1224, %v1220
    %v1273 = vpack.c.b16 %v1225, %v1221
    %v1274 = vpack.c.b16 %v1230, %v1226
    %v1275 = vpack.c.b16 %v1231, %v1227
    %v1276 = vpack.c.b16 %v1232, %v1228
    %v1277 = vpack.c.b16 %v1233, %v1229
    %v1278 = vpack.c.b16 %v1238, %v1234
    %v1279 = vpack.c.b16 %v1239, %v1235
    %v1280 = vpack.c.b16 %v1240, %v1236
    %v1281 = vpack.c.b16 %v1241, %v1237
    %v1282 = vpack.c.b16 %v1246, %v1242
    %v1283 = vpack.c.b16 %v1247, %v1243
    %v1284 = vpack.c.b16 %v1248, %v1244
    %v1285 = vpack.c.b16 %v1249, %v1245
    %v1286 = vpack.c.b16 %v1254, %v1250
    %v1287 = vpack.c.b16 %v1255, %v1251
    %v1288 = vpack.c.b16 %v1256, %v1252
    %v1289 = vpack.c.b16 %v1257, %v1253
    %1322 = vmatprep.subr.bf16.mxu0 %v1259
    %1323 = vmatpush1.bf16.msra.mxu0 %v1258
    %1324 = vmatprep.subr.bf16.mxu0 %v1263
    %1325 = vmatpush1.bf16.msra.mxu0 %v1262
    %1326 = vmatprep.subr.bf16.mxu0 %v1267
    %1327 = vmatpush1.bf16.msra.mxu0 %v1266
    %1328 = vmatprep.subr.bf16.mxu0 %v1271
    %1329 = vmatpush1.bf16.msra.mxu0 %v1270
    %1330 = vmatprep.subr.bf16.mxu0 %v1275
    %1331 = vmatpush1.bf16.msra.mxu0 %v1274
    %1332 = vmatprep.subr.bf16.mxu0 %v1279
    %1333 = vmatpush1.bf16.msra.mxu0 %v1278
    %1334 = vmatprep.subr.bf16.mxu0 %v1283
    %1335 = vmatpush1.bf16.msra.mxu0 %v1282
    %1336 = vmatprep.subr.bf16.mxu0 %v1287
    %1337 = vmatpush1.bf16.msra.mxu0 %v1286
    %1338 = vmatprep.subr.bf16.mxu0 0
    %1339 = vmatpush1.bf16.msra.mxu0 0
    %1340 = vmatprep.subr.bf16.mxu0 0
    %1341 = vmatpush1.bf16.msra.mxu0 0
    %1342 = vmatprep.subr.bf16.mxu0 0
    %1343 = vmatpush1.bf16.msra.mxu0 0
    %1344 = vmatprep.subr.bf16.mxu0 0
    %1345 = vmatpush1.bf16.msra.mxu0 0
    %1346 = vmatprep.subr.bf16.mxu0 0
    %1347 = vmatpush1.bf16.msra.mxu0 0
    %1348 = vmatprep.subr.bf16.mxu0 0
    %1349 = vmatpush1.bf16.msra.mxu0 0
    %1350 = vmatprep.subr.bf16.mxu0 0
    %1351 = vmatpush1.bf16.msra.mxu0 0
    %1352 = vmatprep.subr.bf16.mxu0 0
    %1353 = vmatpush1.bf16.msra.mxu0 0
    %1354 = vmatprep.mubr.bf16.mxu0 0
    %1355 = vmatmul.mubr.bf16.gmra.mrb[0].mxu0 %v1124
    %v1356 = vpop.f32.mrb[0].mxu0
    %v1357 = vadd.f32 0.0, %v1356
    %v1358 = vpop.f32.mrb[0].mxu0
    %v1359 = vadd.f32 0.0, %v1358
    %v1360 = vpop.f32.mrb[0].mxu0
    %v1361 = vpop.f32.mrb[0].mxu0
    %1362 = vdwg.mxu0
    %1363 = vmatprep.subr.bf16.mxu0 %v1261
    %1364 = vmatpush1.bf16.msra.mxu0 %v1260
    %1365 = vmatprep.subr.bf16.mxu0 %v1265
    %1366 = vmatpush1.bf16.msra.mxu0 %v1264
    %1367 = vmatprep.subr.bf16.mxu0 %v1269
    %1368 = vmatpush1.bf16.msra.mxu0 %v1268
    %1369 = vmatprep.subr.bf16.mxu0 %v1273
    %1370 = vmatpush1.bf16.msra.mxu0 %v1272
    %1371 = vmatprep.subr.bf16.mxu0 %v1277
    %1372 = vmatpush1.bf16.msra.mxu0 %v1276
    %1373 = vmatprep.subr.bf16.mxu0 %v1281
    %1374 = vmatpush1.bf16.msra.mxu0 %v1280
    %1375 = vmatprep.subr.bf16.mxu0 %v1285
    %1376 = vmatpush1.bf16.msra.mxu0 %v1284
    %1377 = vmatprep.subr.bf16.mxu0 %v1289
    %1378 = vmatpush1.bf16.msra.mxu0 %v1288
    %1379 = vmatprep.subr.bf16.mxu0 0
    %1380 = vmatpush1.bf16.msra.mxu0 0
    %1381 = vmatprep.subr.bf16.mxu0 0
    %1382 = vmatpush1.bf16.msra.mxu0 0
    %1383 = vmatprep.subr.bf16.mxu0 0
    %1384 = vmatpush1.bf16.msra.mxu0 0
    %1385 = vmatprep.subr.bf16.mxu0 0
    %1386 = vmatpush1.bf16.msra.mxu0 0
    %1387 = vmatprep.subr.bf16.mxu0 0
    %1388 = vmatpush1.bf16.msra.mxu0 0
    %1389 = vmatprep.subr.bf16.mxu0 0
    %1390 = vmatpush1.bf16.msra.mxu0 0
    %1391 = vmatprep.subr.bf16.mxu0 0
    %1392 = vmatpush1.bf16.msra.mxu0 0
    %1393 = vmatprep.subr.bf16.mxu0 0
    %1394 = vmatpush1.bf16.msra.mxu0 0
    %1395 = vmatprep.mubr.bf16.mxu0 0
    %1396 = vmatmul.mubr.bf16.gmra.mrb[0].mxu0 %v1124
    %v1397 = vpop.f32.mrb[0].mxu0
    %v1398 = vadd.f32 0.0, %v1397
    %v1399 = vpop.f32.mrb[0].mxu0
    %v1400 = vadd.f32 0.0, %v1399
    %v1401 = vpop.f32.mrb[0].mxu0
    %v1402 = vpop.f32.mrb[0].mxu0
    %1403 = vdwg.mxu0
    %v1404 = vadd.f32 %v1126, %v1357
    %v1405 = vadd.f32 %v1127, %v1359
    %v1406 = vadd.f32 %v1128, %v1398
    %v1407 = vadd.f32 %v1129, %v1400
    %v1408 = vxor.u32 %v1404, 2147483648
    %v1409 = vxor.u32 %v1405, 2147483648
    %v1410 = vxor.u32 %v1406, 2147483648
    %v1411 = vmul.f32 %v1408, 1.442695
    %v1412 = vpow.pop %v1411
    %v1413 = vmul.f32 %v1409, 1.442695
    %v1414 = vpow.pop %v1413
    %v1415 = vmul.f32 %v1410, 1.442695
    %v1416 = vpow.pop %v1415
    %v1417 = vadd.f32 %v1412, 1.0
    %v1418 = vadd.f32 %v1414, 1.0
    %v1419 = vadd.f32 %v1416, 1.0
    %v1420 = vrcp.pop %v1417
    %v1421 = vmul.f32 1.0, %v1420
    %v1422 = vrcp.pop %v1418
    %v1423 = vmul.f32 1.0, %v1422
    %v1424 = vrcp.pop %v1419
    %v1425 = vmul.f32 1.0, %v1424
    %v1426 = vtanh.pop %v1407
    %v1427 = vmul.f32 %v1423, %v1121
    %v1428 = vmul.f32 %v1421, %v1426
    %v1429 = vadd.f32 %v1427, %v1428
    %v1430 = vtanh.pop %v1429
    %v1431 = vmul.f32 %v1425, %v1430
    %v1432 = vpack.c.bf16 %v1431, %v1431
    %v1434 = vrot.slane %v1432, 4
    %1436 = vst [vmem:[#allocation3] sm:$0xf0] %v1434
    %v1437 = vld [vmem:[#allocation2 + $0x40] sm:$0xff]
    %v1438 = vld [vmem:[#allocation2 + $0x48] sm:$0xff]
    %v1439 = vld [vmem:[#allocation2 + $0x50] sm:$0xff]
    %v1440 = vld [vmem:[#allocation2 + $0x58] sm:$0xff]
    %v1441 = vld [vmem:[#allocation13] sm:$0xff]
    %v1442 = vld [vmem:[#allocation13 + $0x8] sm:$0xff]
    %v1443 = vld [vmem:[#allocation13 + $0x10] sm:$0xff]
    %v1444 = vld [vmem:[#allocation13 + $0x18] sm:$0xff]
    %v1445 = vld [vmem:[#allocation13 + $0x20] sm:$0xff]
    %v1446 = vld [vmem:[#allocation13 + $0x28] sm:$0xff]
    %v1447 = vld [vmem:[#allocation13 + $0x30] sm:$0xff]
    %v1448 = vld [vmem:[#allocation13 + $0x38] sm:$0xff]
    %v1449 = vld [vmem:[#allocation13 + $0x40] sm:$0xff]
    %v1450 = vld [vmem:[#allocation13 + $0x48] sm:$0xff]
    %v1451 = vld [vmem:[#allocation13 + $0x50] sm:$0xff]
    %v1452 = vld [vmem:[#allocation13 + $0x58] sm:$0xff]
    %v1453 = vld [vmem:[#allocation13 + $0x60] sm:$0xff]
    %v1454 = vld [vmem:[#allocation13 + $0x68] sm:$0xff]
    %v1455 = vld [vmem:[#allocation13 + $0x70] sm:$0xff]
    %v1456 = vld [vmem:[#allocation13 + $0x78] sm:$0xff]
    %v1457 = vld [vmem:[#allocation13 + $0x80] sm:$0xff]
    %v1458 = vld [vmem:[#allocation13 + $0x88] sm:$0xff]
    %v1459 = vld [vmem:[#allocation13 + $0x90] sm:$0xff]
    %v1460 = vld [vmem:[#allocation13 + $0x98] sm:$0xff]
    %v1461 = vld [vmem:[#allocation13 + $0xa0] sm:$0xff]
    %v1462 = vld [vmem:[#allocation13 + $0xa8] sm:$0xff]
    %v1463 = vld [vmem:[#allocation13 + $0xb0] sm:$0xff]
    %v1464 = vld [vmem:[#allocation13 + $0xb8] sm:$0xff]
    %v1465 = vld [vmem:[#allocation13 + $0xc0] sm:$0xff]
    %v1466 = vld [vmem:[#allocation13 + $0xc8] sm:$0xff]
    %v1467 = vld [vmem:[#allocation13 + $0xd0] sm:$0xff]
    %v1468 = vld [vmem:[#allocation13 + $0xd8] sm:$0xff]
    %v1469 = vld [vmem:[#allocation13 + $0xe0] sm:$0xff]
    %v1470 = vld [vmem:[#allocation13 + $0xe8] sm:$0xff]
    %v1471 = vld [vmem:[#allocation13 + $0xf0] sm:$0xff]
    %v1472 = vld [vmem:[#allocation13 + $0xf8] sm:$0xff]
    %v1505 = vunpack.c.l.b16 %v1441
    %v1506 = vunpack.c.h.b16 %v1441
    %v1507 = vunpack.c.l.b16 %v1442
    %v1508 = vunpack.c.h.b16 %v1442
    %v1509 = vunpack.c.l.b16 %v1443
    %v1510 = vunpack.c.h.b16 %v1443
    %v1511 = vunpack.c.l.b16 %v1444
    %v1512 = vunpack.c.h.b16 %v1444
    %v1513 = vunpack.c.l.b16 %v1445
    %v1514 = vunpack.c.h.b16 %v1445
    %v1515 = vunpack.c.l.b16 %v1446
    %v1516 = vunpack.c.h.b16 %v1446
    %v1517 = vunpack.c.l.b16 %v1447
    %v1518 = vunpack.c.h.b16 %v1447
    %v1519 = vunpack.c.l.b16 %v1448
    %v1520 = vunpack.c.h.b16 %v1448
    %v1521 = vunpack.c.l.b16 %v1449
    %v1522 = vunpack.c.h.b16 %v1449
    %v1523 = vunpack.c.l.b16 %v1450
    %v1524 = vunpack.c.h.b16 %v1450
    %v1525 = vunpack.c.l.b16 %v1451
    %v1526 = vunpack.c.h.b16 %v1451
    %v1527 = vunpack.c.l.b16 %v1452
    %v1528 = vunpack.c.h.b16 %v1452
    %v1529 = vunpack.c.l.b16 %v1453
    %v1530 = vunpack.c.h.b16 %v1453
    %v1531 = vunpack.c.l.b16 %v1454
    %v1532 = vunpack.c.h.b16 %v1454
    %v1533 = vunpack.c.l.b16 %v1455
    %v1534 = vunpack.c.h.b16 %v1455
    %v1535 = vunpack.c.l.b16 %v1456
    %v1536 = vunpack.c.h.b16 %v1456
    %v1537 = vunpack.c.l.b16 %v1457
    %v1538 = vunpack.c.h.b16 %v1457
    %v1539 = vunpack.c.l.b16 %v1458
    %v1540 = vunpack.c.h.b16 %v1458
    %v1541 = vunpack.c.l.b16 %v1459
    %v1542 = vunpack.c.h.b16 %v1459
    %v1543 = vunpack.c.l.b16 %v1460
    %v1544 = vunpack.c.h.b16 %v1460
    %v1545 = vunpack.c.l.b16 %v1461
    %v1546 = vunpack.c.h.b16 %v1461
    %v1547 = vunpack.c.l.b16 %v1462
    %v1548 = vunpack.c.h.b16 %v1462
    %v1549 = vunpack.c.l.b16 %v1463
    %v1550 = vunpack.c.h.b16 %v1463
    %v1551 = vunpack.c.l.b16 %v1464
    %v1552 = vunpack.c.h.b16 %v1464
    %v1553 = vunpack.c.l.b16 %v1465
    %v1554 = vunpack.c.h.b16 %v1465
    %v1555 = vunpack.c.l.b16 %v1466
    %v1556 = vunpack.c.h.b16 %v1466
    %v1557 = vunpack.c.l.b16 %v1467
    %v1558 = vunpack.c.h.b16 %v1467
    %v1559 = vunpack.c.l.b16 %v1468
    %v1560 = vunpack.c.h.b16 %v1468
    %v1561 = vunpack.c.l.b16 %v1469
    %v1562 = vunpack.c.h.b16 %v1469
    %v1563 = vunpack.c.l.b16 %v1470
    %v1564 = vunpack.c.h.b16 %v1470
    %v1565 = vunpack.c.l.b16 %v1471
    %v1566 = vunpack.c.h.b16 %v1471
    %v1567 = vunpack.c.l.b16 %v1472
    %v1568 = vunpack.c.h.b16 %v1472
    %v1569 = vpack.c.b16 %v1509, %v1505
    %v1570 = vpack.c.b16 %v1510, %v1506
    %v1571 = vpack.c.b16 %v1511, %v1507
    %v1572 = vpack.c.b16 %v1512, %v1508
    %v1573 = vpack.c.b16 %v1517, %v1513
    %v1574 = vpack.c.b16 %v1518, %v1514
    %v1575 = vpack.c.b16 %v1519, %v1515
    %v1576 = vpack.c.b16 %v1520, %v1516
    %v1577 = vpack.c.b16 %v1525, %v1521
    %v1578 = vpack.c.b16 %v1526, %v1522
    %v1579 = vpack.c.b16 %v1527, %v1523
    %v1580 = vpack.c.b16 %v1528, %v1524
    %v1581 = vpack.c.b16 %v1533, %v1529
    %v1582 = vpack.c.b16 %v1534, %v1530
    %v1583 = vpack.c.b16 %v1535, %v1531
    %v1584 = vpack.c.b16 %v1536, %v1532
    %v1585 = vpack.c.b16 %v1541, %v1537
    %v1586 = vpack.c.b16 %v1542, %v1538
    %v1587 = vpack.c.b16 %v1543, %v1539
    %v1588 = vpack.c.b16 %v1544, %v1540
    %v1589 = vpack.c.b16 %v1549, %v1545
    %v1590 = vpack.c.b16 %v1550, %v1546
    %v1591 = vpack.c.b16 %v1551, %v1547
    %v1592 = vpack.c.b16 %v1552, %v1548
    %v1593 = vpack.c.b16 %v1557, %v1553
    %v1594 = vpack.c.b16 %v1558, %v1554
    %v1595 = vpack.c.b16 %v1559, %v1555
    %v1596 = vpack.c.b16 %v1560, %v1556
    %v1597 = vpack.c.b16 %v1565, %v1561
    %v1598 = vpack.c.b16 %v1566, %v1562
    %v1599 = vpack.c.b16 %v1567, %v1563
    %v1600 = vpack.c.b16 %v1568, %v1564
    %1633 = vmatprep.subr.bf16.mxu0 %v1570
    %1634 = vmatpush1.bf16.msra.mxu0 %v1569
    %1635 = vmatprep.subr.bf16.mxu0 %v1574
    %1636 = vmatpush1.bf16.msra.mxu0 %v1573
    %1637 = vmatprep.subr.bf16.mxu0 %v1578
    %1638 = vmatpush1.bf16.msra.mxu0 %v1577
    %1639 = vmatprep.subr.bf16.mxu0 %v1582
    %1640 = vmatpush1.bf16.msra.mxu0 %v1581
    %1641 = vmatprep.subr.bf16.mxu0 %v1586
    %1642 = vmatpush1.bf16.msra.mxu0 %v1585
    %1643 = vmatprep.subr.bf16.mxu0 %v1590
    %1644 = vmatpush1.bf16.msra.mxu0 %v1589
    %1645 = vmatprep.subr.bf16.mxu0 %v1594
    %1646 = vmatpush1.bf16.msra.mxu0 %v1593
    %1647 = vmatprep.subr.bf16.mxu0 %v1598
    %1648 = vmatpush1.bf16.msra.mxu0 %v1597
    %1649 = vmatprep.subr.bf16.mxu0 0
    %1650 = vmatpush1.bf16.msra.mxu0 0
    %1651 = vmatprep.subr.bf16.mxu0 0
    %1652 = vmatpush1.bf16.msra.mxu0 0
    %1653 = vmatprep.subr.bf16.mxu0 0
    %1654 = vmatpush1.bf16.msra.mxu0 0
    %1655 = vmatprep.subr.bf16.mxu0 0
    %1656 = vmatpush1.bf16.msra.mxu0 0
    %1657 = vmatprep.subr.bf16.mxu0 0
    %1658 = vmatpush1.bf16.msra.mxu0 0
    %1659 = vmatprep.subr.bf16.mxu0 0
    %1660 = vmatpush1.bf16.msra.mxu0 0
    %1661 = vmatprep.subr.bf16.mxu0 0
    %1662 = vmatpush1.bf16.msra.mxu0 0
    %1663 = vmatprep.subr.bf16.mxu0 0
    %1664 = vmatpush1.bf16.msra.mxu0 0
    %1665 = vmatprep.mubr.bf16.mxu0 0
    %1666 = vmatmul.mubr.bf16.gmra.mrb[0].mxu0 %v1432
    %v1667 = vpop.f32.mrb[0].mxu0
    %v1668 = vadd.f32 0.0, %v1667
    %v1669 = vpop.f32.mrb[0].mxu0
    %v1670 = vadd.f32 0.0, %v1669
    %v1671 = vpop.f32.mrb[0].mxu0
    %v1672 = vpop.f32.mrb[0].mxu0
    %1673 = vdwg.mxu0
    %1674 = vmatprep.subr.bf16.mxu0 %v1572
    %1675 = vmatpush1.bf16.msra.mxu0 %v1571
    %1676 = vmatprep.subr.bf16.mxu0 %v1576
    %1677 = vmatpush1.bf16.msra.mxu0 %v1575
    %1678 = vmatprep.subr.bf16.mxu0 %v1580
    %1679 = vmatpush1.bf16.msra.mxu0 %v1579
    %1680 = vmatprep.subr.bf16.mxu0 %v1584
    %1681 = vmatpush1.bf16.msra.mxu0 %v1583
    %1682 = vmatprep.subr.bf16.mxu0 %v1588
    %1683 = vmatpush1.bf16.msra.mxu0 %v1587
    %1684 = vmatprep.subr.bf16.mxu0 %v1592
    %1685 = vmatpush1.bf16.msra.mxu0 %v1591
    %1686 = vmatprep.subr.bf16.mxu0 %v1596
    %1687 = vmatpush1.bf16.msra.mxu0 %v1595
    %1688 = vmatprep.subr.bf16.mxu0 %v1600
    %1689 = vmatpush1.bf16.msra.mxu0 %v1599
    %1690 = vmatprep.subr.bf16.mxu0 0
    %1691 = vmatpush1.bf16.msra.mxu0 0
    %1692 = vmatprep.subr.bf16.mxu0 0
    %1693 = vmatpush1.bf16.msra.mxu0 0
    %1694 = vmatprep.subr.bf16.mxu0 0
    %1695 = vmatpush1.bf16.msra.mxu0 0
    %1696 = vmatprep.subr.bf16.mxu0 0
    %1697 = vmatpush1.bf16.msra.mxu0 0
    %1698 = vmatprep.subr.bf16.mxu0 0
    %1699 = vmatpush1.bf16.msra.mxu0 0
    %1700 = vmatprep.subr.bf16.mxu0 0
    %1701 = vmatpush1.bf16.msra.mxu0 0
    %1702 = vmatprep.subr.bf16.mxu0 0
    %1703 = vmatpush1.bf16.msra.mxu0 0
    %1704 = vmatprep.subr.bf16.mxu0 0
    %1705 = vmatpush1.bf16.msra.mxu0 0
    %1706 = vmatprep.mubr.bf16.mxu0 0
    %1707 = vmatmul.mubr.bf16.gmra.mrb[0].mxu0 %v1432
    %v1708 = vpop.f32.mrb[0].mxu0
    %v1709 = vadd.f32 0.0, %v1708
    %v1710 = vpop.f32.mrb[0].mxu0
    %v1711 = vadd.f32 0.0, %v1710
    %v1712 = vpop.f32.mrb[0].mxu0
    %v1713 = vpop.f32.mrb[0].mxu0
    %1714 = vdwg.mxu0
    %v1715 = vadd.f32 %v1437, %v1668
    %v1716 = vadd.f32 %v1438, %v1670
    %v1717 = vadd.f32 %v1439, %v1709
    %v1718 = vadd.f32 %v1440, %v1711
    %v1719 = vxor.u32 %v1715, 2147483648
    %v1720 = vxor.u32 %v1716, 2147483648
    %v1721 = vxor.u32 %v1717, 2147483648
    %v1722 = vmul.f32 %v1719, 1.442695
    %v1723 = vpow.pop %v1722
    %v1724 = vmul.f32 %v1720, 1.442695
    %v1725 = vpow.pop %v1724
    %v1726 = vmul.f32 %v1721, 1.442695
    %v1727 = vpow.pop %v1726
    %v1728 = vadd.f32 %v1723, 1.0
    %v1729 = vadd.f32 %v1725, 1.0
    %v1730 = vadd.f32 %v1727, 1.0
    %v1731 = vrcp.pop %v1728
    %v1732 = vmul.f32 1.0, %v1731
    %v1733 = vrcp.pop %v1729
    %v1734 = vmul.f32 1.0, %v1733
    %v1735 = vrcp.pop %v1730
    %v1736 = vmul.f32 1.0, %v1735
    %v1737 = vtanh.pop %v1718
    %v1738 = vmul.f32 %v1734, %v1429
    %v1739 = vmul.f32 %v1732, %v1737
    %v1740 = vadd.f32 %v1738, %v1739
    %v1741 = vtanh.pop %v1740
    %v1742 = vmul.f32 %v1736, %v1741
    %v1743 = vpack.c.bf16 %v1742, %v1742
    %1744 = vst [vmem:[#allocation3 + $0x8] sm:$0xf] %v1743
    %v1745 = vld [vmem:[#allocation2 + $0x60] sm:$0xff]
    %v1746 = vld [vmem:[#allocation2 + $0x68] sm:$0xff]
    %v1747 = vld [vmem:[#allocation2 + $0x70] sm:$0xff]
    %v1748 = vld [vmem:[#allocation2 + $0x78] sm:$0xff]
    %v1749 = vld [vmem:[#allocation13] sm:$0xff]
    %v1750 = vld [vmem:[#allocation13 + $0x8] sm:$0xff]
    %v1751 = vld [vmem:[#allocation13 + $0x10] sm:$0xff]
    %v1752 = vld [vmem:[#allocation13 + $0x18] sm:$0xff]
    %v1753 = vld [vmem:[#allocation13 + $0x20] sm:$0xff]
    %v1754 = vld [vmem:[#allocation13 + $0x28] sm:$0xff]
    %v1755 = vld [vmem:[#allocation13 + $0x30] sm:$0xff]
    %v1756 = vld [vmem:[#allocation13 + $0x38] sm:$0xff]
    %v1757 = vld [vmem:[#allocation13 + $0x40] sm:$0xff]
    %v1758 = vld [vmem:[#allocation13 + $0x48] sm:$0xff]
    %v1759 = vld [vmem:[#allocation13 + $0x50] sm:$0xff]
    %v1760 = vld [vmem:[#allocation13 + $0x58] sm:$0xff]
    %v1761 = vld [vmem:[#allocation13 + $0x60] sm:$0xff]
    %v1762 = vld [vmem:[#allocation13 + $0x68] sm:$0xff]
    %v1763 = vld [vmem:[#allocation13 + $0x70] sm:$0xff]
    %v1764 = vld [vmem:[#allocation13 + $0x78] sm:$0xff]
    %v1765 = vld [vmem:[#allocation13 + $0x80] sm:$0xff]
    %v1766 = vld [vmem:[#allocation13 + $0x88] sm:$0xff]
    %v1767 = vld [vmem:[#allocation13 + $0x90] sm:$0xff]
    %v1768 = vld [vmem:[#allocation13 + $0x98] sm:$0xff]
    %v1769 = vld [vmem:[#allocation13 + $0xa0] sm:$0xff]
    %v1770 = vld [vmem:[#allocation13 + $0xa8] sm:$0xff]
    %v1771 = vld [vmem:[#allocation13 + $0xb0] sm:$0xff]
    %v1772 = vld [vmem:[#allocation13 + $0xb8] sm:$0xff]
    %v1773 = vld [vmem:[#allocation13 + $0xc0] sm:$0xff]
    %v1774 = vld [vmem:[#allocation13 + $0xc8] sm:$0xff]
    %v1775 = vld [vmem:[#allocation13 + $0xd0] sm:$0xff]
    %v1776 = vld [vmem:[#allocation13 + $0xd8] sm:$0xff]
    %v1777 = vld [vmem:[#allocation13 + $0xe0] sm:$0xff]
    %v1778 = vld [vmem:[#allocation13 + $0xe8] sm:$0xff]
    %v1779 = vld [vmem:[#allocation13 + $0xf0] sm:$0xff]
    %v1780 = vld [vmem:[#allocation13 + $0xf8] sm:$0xff]
    %v1813 = vunpack.c.l.b16 %v1749
    %v1814 = vunpack.c.h.b16 %v1749
    %v1815 = vunpack.c.l.b16 %v1750
    %v1816 = vunpack.c.h.b16 %v1750
    %v1817 = vunpack.c.l.b16 %v1751
    %v1818 = vunpack.c.h.b16 %v1751
    %v1819 = vunpack.c.l.b16 %v1752
    %v1820 = vunpack.c.h.b16 %v1752
    %v1821 = vunpack.c.l.b16 %v1753
    %v1822 = vunpack.c.h.b16 %v1753
    %v1823 = vunpack.c.l.b16 %v1754
    %v1824 = vunpack.c.h.b16 %v1754
    %v1825 = vunpack.c.l.b16 %v1755
    %v1826 = vunpack.c.h.b16 %v1755
    %v1827 = vunpack.c.l.b16 %v1756
    %v1828 = vunpack.c.h.b16 %v1756
    %v1829 = vunpack.c.l.b16 %v1757
    %v1830 = vunpack.c.h.b16 %v1757
    %v1831 = vunpack.c.l.b16 %v1758
    %v1832 = vunpack.c.h.b16 %v1758
    %v1833 = vunpack.c.l.b16 %v1759
    %v1834 = vunpack.c.h.b16 %v1759
    %v1835 = vunpack.c.l.b16 %v1760
    %v1836 = vunpack.c.h.b16 %v1760
    %v1837 = vunpack.c.l.b16 %v1761
    %v1838 = vunpack.c.h.b16 %v1761
    %v1839 = vunpack.c.l.b16 %v1762
    %v1840 = vunpack.c.h.b16 %v1762
    %v1841 = vunpack.c.l.b16 %v1763
    %v1842 = vunpack.c.h.b16 %v1763
    %v1843 = vunpack.c.l.b16 %v1764
    %v1844 = vunpack.c.h.b16 %v1764
    %v1845 = vunpack.c.l.b16 %v1765
    %v1846 = vunpack.c.h.b16 %v1765
    %v1847 = vunpack.c.l.b16 %v1766
    %v1848 = vunpack.c.h.b16 %v1766
    %v1849 = vunpack.c.l.b16 %v1767
    %v1850 = vunpack.c.h.b16 %v1767
    %v1851 = vunpack.c.l.b16 %v1768
    %v1852 = vunpack.c.h.b16 %v1768
    %v1853 = vunpack.c.l.b16 %v1769
    %v1854 = vunpack.c.h.b16 %v1769
    %v1855 = vunpack.c.l.b16 %v1770
    %v1856 = vunpack.c.h.b16 %v1770
    %v1857 = vunpack.c.l.b16 %v1771
    %v1858 = vunpack.c.h.b16 %v1771
    %v1859 = vunpack.c.l.b16 %v1772
    %v1860 = vunpack.c.h.b16 %v1772
    %v1861 = vunpack.c.l.b16 %v1773
    %v1862 = vunpack.c.h.b16 %v1773
    %v1863 = vunpack.c.l.b16 %v1774
    %v1864 = vunpack.c.h.b16 %v1774
    %v1865 = vunpack.c.l.b16 %v1775
    %v1866 = vunpack.c.h.b16 %v1775
    %v1867 = vunpack.c.l.b16 %v1776
    %v1868 = vunpack.c.h.b16 %v1776
    %v1869 = vunpack.c.l.b16 %v1777
    %v1870 = vunpack.c.h.b16 %v1777
    %v1871 = vunpack.c.l.b16 %v1778
    %v1872 = vunpack.c.h.b16 %v1778
    %v1873 = vunpack.c.l.b16 %v1779
    %v1874 = vunpack.c.h.b16 %v1779
    %v1875 = vunpack.c.l.b16 %v1780
    %v1876 = vunpack.c.h.b16 %v1780
    %v1877 = vpack.c.b16 %v1817, %v1813
    %v1878 = vpack.c.b16 %v1818, %v1814
    %v1879 = vpack.c.b16 %v1819, %v1815
    %v1880 = vpack.c.b16 %v1820, %v1816
    %v1881 = vpack.c.b16 %v1825, %v1821
    %v1882 = vpack.c.b16 %v1826, %v1822
    %v1883 = vpack.c.b16 %v1827, %v1823
    %v1884 = vpack.c.b16 %v1828, %v1824
    %v1885 = vpack.c.b16 %v1833, %v1829
    %v1886 = vpack.c.b16 %v1834, %v1830
    %v1887 = vpack.c.b16 %v1835, %v1831
    %v1888 = vpack.c.b16 %v1836, %v1832
    %v1889 = vpack.c.b16 %v1841, %v1837
    %v1890 = vpack.c.b16 %v1842, %v1838
    %v1891 = vpack.c.b16 %v1843, %v1839
    %v1892 = vpack.c.b16 %v1844, %v1840
    %v1893 = vpack.c.b16 %v1849, %v1845
    %v1894 = vpack.c.b16 %v1850, %v1846
    %v1895 = vpack.c.b16 %v1851, %v1847
    %v1896 = vpack.c.b16 %v1852, %v1848
    %v1897 = vpack.c.b16 %v1857, %v1853
    %v1898 = vpack.c.b16 %v1858, %v1854
    %v1899 = vpack.c.b16 %v1859, %v1855
    %v1900 = vpack.c.b16 %v1860, %v1856
    %v1901 = vpack.c.b16 %v1865, %v1861
    %v1902 = vpack.c.b16 %v1866, %v1862
    %v1903 = vpack.c.b16 %v1867, %v1863
    %v1904 = vpack.c.b16 %v1868, %v1864
    %v1905 = vpack.c.b16 %v1873, %v1869
    %v1906 = vpack.c.b16 %v1874, %v1870
    %v1907 = vpack.c.b16 %v1875, %v1871
    %v1908 = vpack.c.b16 %v1876, %v1872
    %1941 = vmatprep.subr.bf16.mxu0 %v1878
    %1942 = vmatpush1.bf16.msra.mxu0 %v1877
    %1943 = vmatprep.subr.bf16.mxu0 %v1882
    %1944 = vmatpush1.bf16.msra.mxu0 %v1881
    %1945 = vmatprep.subr.bf16.mxu0 %v1886
    %1946 = vmatpush1.bf16.msra.mxu0 %v1885
    %1947 = vmatprep.subr.bf16.mxu0 %v1890
    %1948 = vmatpush1.bf16.msra.mxu0 %v1889
    %1949 = vmatprep.subr.bf16.mxu0 %v1894
    %1950 = vmatpush1.bf16.msra.mxu0 %v1893
    %1951 = vmatprep.subr.bf16.mxu0 %v1898
    %1952 = vmatpush1.bf16.msra.mxu0 %v1897
    %1953 = vmatprep.subr.bf16.mxu0 %v1902
    %1954 = vmatpush1.bf16.msra.mxu0 %v1901
    %1955 = vmatprep.subr.bf16.mxu0 %v1906
    %1956 = vmatpush1.bf16.msra.mxu0 %v1905
    %1957 = vmatprep.subr.bf16.mxu0 0
    %1958 = vmatpush1.bf16.msra.mxu0 0
    %1959 = vmatprep.subr.bf16.mxu0 0
    %1960 = vmatpush1.bf16.msra.mxu0 0
    %1961 = vmatprep.subr.bf16.mxu0 0
    %1962 = vmatpush1.bf16.msra.mxu0 0
    %1963 = vmatprep.subr.bf16.mxu0 0
    %1964 = vmatpush1.bf16.msra.mxu0 0
    %1965 = vmatprep.subr.bf16.mxu0 0
    %1966 = vmatpush1.bf16.msra.mxu0 0
    %1967 = vmatprep.subr.bf16.mxu0 0
    %1968 = vmatpush1.bf16.msra.mxu0 0
    %1969 = vmatprep.subr.bf16.mxu0 0
    %1970 = vmatpush1.bf16.msra.mxu0 0
    %1971 = vmatprep.subr.bf16.mxu0 0
    %1972 = vmatpush1.bf16.msra.mxu0 0
    %1973 = vmatprep.mubr.bf16.mxu0 0
    %1974 = vmatmul.mubr.bf16.gmra.mrb[0].mxu0 %v1743
    %v1975 = vpop.f32.mrb[0].mxu0
    %v1976 = vadd.f32 0.0, %v1975
    %v1977 = vpop.f32.mrb[0].mxu0
    %v1978 = vadd.f32 0.0, %v1977
    %v1979 = vpop.f32.mrb[0].mxu0
    %v1980 = vpop.f32.mrb[0].mxu0
    %1981 = vdwg.mxu0
    %1982 = vmatprep.subr.bf16.mxu0 %v1880
    %1983 = vmatpush1.bf16.msra.mxu0 %v1879
    %1984 = vmatprep.subr.bf16.mxu0 %v1884
    %1985 = vmatpush1.bf16.msra.mxu0 %v1883
    %1986 = vmatprep.subr.bf16.mxu0 %v1888
    %1987 = vmatpush1.bf16.msra.mxu0 %v1887
    %1988 = vmatprep.subr.bf16.mxu0 %v1892
    %1989 = vmatpush1.bf16.msra.mxu0 %v1891
    %1990 = vmatprep.subr.bf16.mxu0 %v1896
    %1991 = vmatpush1.bf16.msra.mxu0 %v1895
    %1992 = vmatprep.subr.bf16.mxu0 %v1900
    %1993 = vmatpush1.bf16.msra.mxu0 %v1899
    %1994 = vmatprep.subr.bf16.mxu0 %v1904
    %1995 = vmatpush1.bf16.msra.mxu0 %v1903
    %1996 = vmatprep.subr.bf16.mxu0 %v1908
    %1997 = vmatpush1.bf16.msra.mxu0 %v1907
    %1998 = vmatprep.subr.bf16.mxu0 0
    %1999 = vmatpush1.bf16.msra.mxu0 0
    %2000 = vmatprep.subr.bf16.mxu0 0
    %2001 = vmatpush1.bf16.msra.mxu0 0
    %2002 = vmatprep.subr.bf16.mxu0 0
    %2003 = vmatpush1.bf16.msra.mxu0 0
    %2004 = vmatprep.subr.bf16.mxu0 0
    %2005 = vmatpush1.bf16.msra.mxu0 0
    %2006 = vmatprep.subr.bf16.mxu0 0
    %2007 = vmatpush1.bf16.msra.mxu0 0
    %2008 = vmatprep.subr.bf16.mxu0 0
    %2009 = vmatpush1.bf16.msra.mxu0 0
    %2010 = vmatprep.subr.bf16.mxu0 0
    %2011 = vmatpush1.bf16.msra.mxu0 0
    %2012 = vmatprep.subr.bf16.mxu0 0
    %2013 = vmatpush1.bf16.msra.mxu0 0
    %2014 = vmatprep.mubr.bf16.mxu0 0
    %2015 = vmatmul.mubr.bf16.gmra.mrb[0].mxu0 %v1743
    %v2016 = vpop.f32.mrb[0].mxu0
    %v2017 = vadd.f32 0.0, %v2016
    %v2018 = vpop.f32.mrb[0].mxu0
    %v2019 = vadd.f32 0.0, %v2018
    %v2020 = vpop.f32.mrb[0].mxu0
    %v2021 = vpop.f32.mrb[0].mxu0
    %2022 = vdwg.mxu0
    %v2023 = vadd.f32 %v1745, %v1976
    %v2024 = vadd.f32 %v1746, %v1978
    %v2025 = vadd.f32 %v1747, %v2017
    %v2026 = vadd.f32 %v1748, %v2019
    %v2027 = vxor.u32 %v2023, 2147483648
    %v2028 = vxor.u32 %v2024, 2147483648
    %v2029 = vxor.u32 %v2025, 2147483648
    %v2030 = vmul.f32 %v2027, 1.442695
    %v2031 = vpow.pop %v2030
    %v2032 = vmul.f32 %v2028, 1.442695
    %v2033 = vpow.pop %v2032
    %v2034 = vmul.f32 %v2029, 1.442695
    %v2035 = vpow.pop %v2034
    %v2036 = vadd.f32 %v2031, 1.0
    %v2037 = vadd.f32 %v2033, 1.0
    %v2038 = vadd.f32 %v2035, 1.0
    %v2039 = vrcp.pop %v2036
    %v2040 = vmul.f32 1.0, %v2039
    %v2041 = vrcp.pop %v2037
    %v2042 = vmul.f32 1.0, %v2041
    %v2043 = vrcp.pop %v2038
    %v2044 = vmul.f32 1.0, %v2043
    %v2045 = vtanh.pop %v2026
    %v2046 = vmul.f32 %v2042, %v1740
    %v2047 = vmul.f32 %v2040, %v2045
    %v2048 = vadd.f32 %v2046, %v2047
    %v2049 = vtanh.pop %v2048
    %v2050 = vmul.f32 %v2044, %v2049
    %v2051 = vpack.c.bf16 %v2050, %v2050
    %v2053 = vrot.slane %v2051, 4
    %2055 = vst [vmem:[#allocation3 + $0x8] sm:$0xf0] %v2053
    %v2056 = vld [vmem:[#allocation2 + $0x80] sm:$0xff]
    %v2057 = vld [vmem:[#allocation2 + $0x88] sm:$0xff]
    %v2058 = vld [vmem:[#allocation2 + $0x90] sm:$0xff]
    %v2059 = vld [vmem:[#allocation2 + $0x98] sm:$0xff]
    %v2060 = vld [vmem:[#allocation13] sm:$0xff]
    %v2061 = vld [vmem:[#allocation13 + $0x8] sm:$0xff]
    %v2062 = vld [vmem:[#allocation13 + $0x10] sm:$0xff]
    %v2063 = vld [vmem:[#allocation13 + $0x18] sm:$0xff]
    %v2064 = vld [vmem:[#allocation13 + $0x20] sm:$0xff]
    %v2065 = vld [vmem:[#allocation13 + $0x28] sm:$0xff]
    %v2066 = vld [vmem:[#allocation13 + $0x30] sm:$0xff]
    %v2067 = vld [vmem:[#allocation13 + $0x38] sm:$0xff]
    %v2068 = vld [vmem:[#allocation13 + $0x40] sm:$0xff]
    %v2069 = vld [vmem:[#allocation13 + $0x48] sm:$0xff]
    %v2070 = vld [vmem:[#allocation13 + $0x50] sm:$0xff]
    %v2071 = vld [vmem:[#allocation13 + $0x58] sm:$0xff]
    %v2072 = vld [vmem:[#allocation13 + $0x60] sm:$0xff]
    %v2073 = vld [vmem:[#allocation13 + $0x68] sm:$0xff]
    %v2074 = vld [vmem:[#allocation13 + $0x70] sm:$0xff]
    %v2075 = vld [vmem:[#allocation13 + $0x78] sm:$0xff]
    %v2076 = vld [vmem:[#allocation13 + $0x80] sm:$0xff]
    %v2077 = vld [vmem:[#allocation13 + $0x88] sm:$0xff]
    %v2078 = vld [vmem:[#allocation13 + $0x90] sm:$0xff]
    %v2079 = vld [vmem:[#allocation13 + $0x98] sm:$0xff]
    %v2080 = vld [vmem:[#allocation13 + $0xa0] sm:$0xff]
    %v2081 = vld [vmem:[#allocation13 + $0xa8] sm:$0xff]
    %v2082 = vld [vmem:[#allocation13 + $0xb0] sm:$0xff]
    %v2083 = vld [vmem:[#allocation13 + $0xb8] sm:$0xff]
    %v2084 = vld [vmem:[#allocation13 + $0xc0] sm:$0xff]
    %v2085 = vld [vmem:[#allocation13 + $0xc8] sm:$0xff]
    %v2086 = vld [vmem:[#allocation13 + $0xd0] sm:$0xff]
    %v2087 = vld [vmem:[#allocation13 + $0xd8] sm:$0xff]
    %v2088 = vld [vmem:[#allocation13 + $0xe0] sm:$0xff]
    %v2089 = vld [vmem:[#allocation13 + $0xe8] sm:$0xff]
    %v2090 = vld [vmem:[#allocation13 + $0xf0] sm:$0xff]
    %v2091 = vld [vmem:[#allocation13 + $0xf8] sm:$0xff]
    %v2124 = vunpack.c.l.b16 %v2060
    %v2125 = vunpack.c.h.b16 %v2060
    %v2126 = vunpack.c.l.b16 %v2061
    %v2127 = vunpack.c.h.b16 %v2061
    %v2128 = vunpack.c.l.b16 %v2062
    %v2129 = vunpack.c.h.b16 %v2062
    %v2130 = vunpack.c.l.b16 %v2063
    %v2131 = vunpack.c.h.b16 %v2063
    %v2132 = vunpack.c.l.b16 %v2064
    %v2133 = vunpack.c.h.b16 %v2064
    %v2134 = vunpack.c.l.b16 %v2065
    %v2135 = vunpack.c.h.b16 %v2065
    %v2136 = vunpack.c.l.b16 %v2066
    %v2137 = vunpack.c.h.b16 %v2066
    %v2138 = vunpack.c.l.b16 %v2067
    %v2139 = vunpack.c.h.b16 %v2067
    %v2140 = vunpack.c.l.b16 %v2068
    %v2141 = vunpack.c.h.b16 %v2068
    %v2142 = vunpack.c.l.b16 %v2069
    %v2143 = vunpack.c.h.b16 %v2069
    %v2144 = vunpack.c.l.b16 %v2070
    %v2145 = vunpack.c.h.b16 %v2070
    %v2146 = vunpack.c.l.b16 %v2071
    %v2147 = vunpack.c.h.b16 %v2071
    %v2148 = vunpack.c.l.b16 %v2072
    %v2149 = vunpack.c.h.b16 %v2072
    %v2150 = vunpack.c.l.b16 %v2073
    %v2151 = vunpack.c.h.b16 %v2073
    %v2152 = vunpack.c.l.b16 %v2074
    %v2153 = vunpack.c.h.b16 %v2074
    %v2154 = vunpack.c.l.b16 %v2075
    %v2155 = vunpack.c.h.b16 %v2075
    %v2156 = vunpack.c.l.b16 %v2076
    %v2157 = vunpack.c.h.b16 %v2076
    %v2158 = vunpack.c.l.b16 %v2077
    %v2159 = vunpack.c.h.b16 %v2077
    %v2160 = vunpack.c.l.b16 %v2078
    %v2161 = vunpack.c.h.b16 %v2078
    %v2162 = vunpack.c.l.b16 %v2079
    %v2163 = vunpack.c.h.b16 %v2079
    %v2164 = vunpack.c.l.b16 %v2080
    %v2165 = vunpack.c.h.b16 %v2080
    %v2166 = vunpack.c.l.b16 %v2081
    %v2167 = vunpack.c.h.b16 %v2081
    %v2168 = vunpack.c.l.b16 %v2082
    %v2169 = vunpack.c.h.b16 %v2082
    %v2170 = vunpack.c.l.b16 %v2083
    %v2171 = vunpack.c.h.b16 %v2083
    %v2172 = vunpack.c.l.b16 %v2084
    %v2173 = vunpack.c.h.b16 %v2084
    %v2174 = vunpack.c.l.b16 %v2085
    %v2175 = vunpack.c.h.b16 %v2085
    %v2176 = vunpack.c.l.b16 %v2086
    %v2177 = vunpack.c.h.b16 %v2086
    %v2178 = vunpack.c.l.b16 %v2087
    %v2179 = vunpack.c.h.b16 %v2087
    %v2180 = vunpack.c.l.b16 %v2088
    %v2181 = vunpack.c.h.b16 %v2088
    %v2182 = vunpack.c.l.b16 %v2089
    %v2183 = vunpack.c.h.b16 %v2089
    %v2184 = vunpack.c.l.b16 %v2090
    %v2185 = vunpack.c.h.b16 %v2090
    %v2186 = vunpack.c.l.b16 %v2091
    %v2187 = vunpack.c.h.b16 %v2091
    %v2188 = vpack.c.b16 %v2128, %v2124
    %v2189 = vpack.c.b16 %v2129, %v2125
    %v2190 = vpack.c.b16 %v2130, %v2126
    %v2191 = vpack.c.b16 %v2131, %v2127
    %v2192 = vpack.c.b16 %v2136, %v2132
    %v2193 = vpack.c.b16 %v2137, %v2133
    %v2194 = vpack.c.b16 %v2138, %v2134
    %v2195 = vpack.c.b16 %v2139, %v2135
    %v2196 = vpack.c.b16 %v2144, %v2140
    %v2197 = vpack.c.b16 %v2145, %v2141
    %v2198 = vpack.c.b16 %v2146, %v2142
    %v2199 = vpack.c.b16 %v2147, %v2143
    %v2200 = vpack.c.b16 %v2152, %v2148
    %v2201 = vpack.c.b16 %v2153, %v2149
    %v2202 = vpack.c.b16 %v2154, %v2150
    %v2203 = vpack.c.b16 %v2155, %v2151
    %v2204 = vpack.c.b16 %v2160, %v2156
    %v2205 = vpack.c.b16 %v2161, %v2157
    %v2206 = vpack.c.b16 %v2162, %v2158
    %v2207 = vpack.c.b16 %v2163, %v2159
    %v2208 = vpack.c.b16 %v2168, %v2164
    %v2209 = vpack.c.b16 %v2169, %v2165
    %v2210 = vpack.c.b16 %v2170, %v2166
    %v2211 = vpack.c.b16 %v2171, %v2167
    %v2212 = vpack.c.b16 %v2176, %v2172
    %v2213 = vpack.c.b16 %v2177, %v2173
    %v2214 = vpack.c.b16 %v2178, %v2174
    %v2215 = vpack.c.b16 %v2179, %v2175
    %v2216 = vpack.c.b16 %v2184, %v2180
    %v2217 = vpack.c.b16 %v2185, %v2181
    %v2218 = vpack.c.b16 %v2186, %v2182
    %v2219 = vpack.c.b16 %v2187, %v2183
    %2252 = vmatprep.subr.bf16.mxu0 %v2189
    %2253 = vmatpush1.bf16.msra.mxu0 %v2188
    %2254 = vmatprep.subr.bf16.mxu0 %v2193
    %2255 = vmatpush1.bf16.msra.mxu0 %v2192
    %2256 = vmatprep.subr.bf16.mxu0 %v2197
    %2257 = vmatpush1.bf16.msra.mxu0 %v2196
    %2258 = vmatprep.subr.bf16.mxu0 %v2201
    %2259 = vmatpush1.bf16.msra.mxu0 %v2200
    %2260 = vmatprep.subr.bf16.mxu0 %v2205
    %2261 = vmatpush1.bf16.msra.mxu0 %v2204
    %2262 = vmatprep.subr.bf16.mxu0 %v2209
    %2263 = vmatpush1.bf16.msra.mxu0 %v2208
    %2264 = vmatprep.subr.bf16.mxu0 %v2213
    %2265 = vmatpush1.bf16.msra.mxu0 %v2212
    %2266 = vmatprep.subr.bf16.mxu0 %v2217
    %2267 = vmatpush1.bf16.msra.mxu0 %v2216
    %2268 = vmatprep.subr.bf16.mxu0 0
    %2269 = vmatpush1.bf16.msra.mxu0 0
    %2270 = vmatprep.subr.bf16.mxu0 0
    %2271 = vmatpush1.bf16.msra.mxu0 0
    %2272 = vmatprep.subr.bf16.mxu0 0
    %2273 = vmatpush1.bf16.msra.mxu0 0
    %2274 = vmatprep.subr.bf16.mxu0 0
    %2275 = vmatpush1.bf16.msra.mxu0 0
    %2276 = vmatprep.subr.bf16.mxu0 0
    %2277 = vmatpush1.bf16.msra.mxu0 0
    %2278 = vmatprep.subr.bf16.mxu0 0
    %2279 = vmatpush1.bf16.msra.mxu0 0
    %2280 = vmatprep.subr.bf16.mxu0 0
    %2281 = vmatpush1.bf16.msra.mxu0 0
    %2282 = vmatprep.subr.bf16.mxu0 0
    %2283 = vmatpush1.bf16.msra.mxu0 0
    %2284 = vmatprep.mubr.bf16.mxu0 0
    %2285 = vmatmul.mubr.bf16.gmra.mrb[0].mxu0 %v2051
    %v2286 = vpop.f32.mrb[0].mxu0
    %v2287 = vadd.f32 0.0, %v2286
    %v2288 = vpop.f32.mrb[0].mxu0
    %v2289 = vadd.f32 0.0, %v2288
    %v2290 = vpop.f32.mrb[0].mxu0
    %v2291 = vpop.f32.mrb[0].mxu0
    %2292 = vdwg.mxu0
    %2293 = vmatprep.subr.bf16.mxu0 %v2191
    %2294 = vmatpush1.bf16.msra.mxu0 %v2190
    %2295 = vmatprep.subr.bf16.mxu0 %v2195
    %2296 = vmatpush1.bf16.msra.mxu0 %v2194
    %2297 = vmatprep.subr.bf16.mxu0 %v2199
    %2298 = vmatpush1.bf16.msra.mxu0 %v2198
    %2299 = vmatprep.subr.bf16.mxu0 %v2203
    %2300 = vmatpush1.bf16.msra.mxu0 %v2202
    %2301 = vmatprep.subr.bf16.mxu0 %v2207
    %2302 = vmatpush1.bf16.msra.mxu0 %v2206
    %2303 = vmatprep.subr.bf16.mxu0 %v2211
    %2304 = vmatpush1.bf16.msra.mxu0 %v2210
    %2305 = vmatprep.subr.bf16.mxu0 %v2215
    %2306 = vmatpush1.bf16.msra.mxu0 %v2214
    %2307 = vmatprep.subr.bf16.mxu0 %v2219
    %2308 = vmatpush1.bf16.msra.mxu0 %v2218
    %2309 = vmatprep.subr.bf16.mxu0 0
    %2310 = vmatpush1.bf16.msra.mxu0 0
    %2311 = vmatprep.subr.bf16.mxu0 0
    %2312 = vmatpush1.bf16.msra.mxu0 0
    %2313 = vmatprep.subr.bf16.mxu0 0
    %2314 = vmatpush1.bf16.msra.mxu0 0
    %2315 = vmatprep.subr.bf16.mxu0 0
    %2316 = vmatpush1.bf16.msra.mxu0 0
    %2317 = vmatprep.subr.bf16.mxu0 0
    %2318 = vmatpush1.bf16.msra.mxu0 0
    %2319 = vmatprep.subr.bf16.mxu0 0
    %2320 = vmatpush1.bf16.msra.mxu0 0
    %2321 = vmatprep.subr.bf16.mxu0 0
    %2322 = vmatpush1.bf16.msra.mxu0 0
    %2323 = vmatprep.subr.bf16.mxu0 0
    %2324 = vmatpush1.bf16.msra.mxu0 0
    %2325 = vmatprep.mubr.bf16.mxu0 0
    %2326 = vmatmul.mubr.bf16.gmra.mrb[0].mxu0 %v2051
    %v2327 = vpop.f32.mrb[0].mxu0
    %v2328 = vadd.f32 0.0, %v2327
    %v2329 = vpop.f32.mrb[0].mxu0
    %v2330 = vadd.f32 0.0, %v2329
    %v2331 = vpop.f32.mrb[0].mxu0
    %v2332 = vpop.f32.mrb[0].mxu0
    %2333 = vdwg.mxu0
    %v2334 = vadd.f32 %v2056, %v2287
    %v2335 = vadd.f32 %v2057, %v2289
    %v2336 = vadd.f32 %v2058, %v2328
    %v2337 = vadd.f32 %v2059, %v2330
    %v2338 = vxor.u32 %v2334, 2147483648
    %v2339 = vxor.u32 %v2335, 2147483648
    %v2340 = vxor.u32 %v2336, 2147483648
    %v2341 = vmul.f32 %v2338, 1.442695
    %v2342 = vpow.pop %v2341
    %v2343 = vmul.f32 %v2339, 1.442695
    %v2344 = vpow.pop %v2343
    %v2345 = vmul.f32 %v2340, 1.442695
    %v2346 = vpow.pop %v2345
    %v2347 = vadd.f32 %v2342, 1.0
    %v2348 = vadd.f32 %v2344, 1.0
    %v2349 = vadd.f32 %v2346, 1.0
    %v2350 = vrcp.pop %v2347
    %v2351 = vmul.f32 1.0, %v2350
    %v2352 = vrcp.pop %v2348
    %v2353 = vmul.f32 1.0, %v2352
    %v2354 = vrcp.pop %v2349
    %v2355 = vmul.f32 1.0, %v2354
    %v2356 = vtanh.pop %v2337
    %v2357 = vmul.f32 %v2353, %v2048
    %v2358 = vmul.f32 %v2351, %v2356
    %v2359 = vadd.f32 %v2357, %v2358
    %v2360 = vtanh.pop %v2359
    %v2361 = vmul.f32 %v2355, %v2360
    %v2362 = vpack.c.bf16 %v2361, %v2361
    %2363 = vst [vmem:[#allocation3 + $0x10] sm:$0xf] %v2362
    %v2364 = vld [vmem:[#allocation2 + $0xa0] sm:$0xff]
    %v2365 = vld [vmem:[#allocation2 + $0xa8] sm:$0xff]
    %v2366 = vld [vmem:[#allocation2 + $0xb0] sm:$0xff]
    %v2367 = vld [vmem:[#allocation2 + $0xb8] sm:$0xff]
    %v2368 = vld [vmem:[#allocation13] sm:$0xff]
    %v2369 = vld [vmem:[#allocation13 + $0x8] sm:$0xff]
    %v2370 = vld [vmem:[#allocation13 + $0x10] sm:$0xff]
    %v2371 = vld [vmem:[#allocation13 + $0x18] sm:$0xff]
    %v2372 = vld [vmem:[#allocation13 + $0x20] sm:$0xff]
    %v2373 = vld [vmem:[#allocation13 + $0x28] sm:$0xff]
    %v2374 = vld [vmem:[#allocation13 + $0x30] sm:$0xff]
    %v2375 = vld [vmem:[#allocation13 + $0x38] sm:$0xff]
    %v2376 = vld [vmem:[#allocation13 + $0x40] sm:$0xff]
    %v2377 = vld [vmem:[#allocation13 + $0x48] sm:$0xff]
    %v2378 = vld [vmem:[#allocation13 + $0x50] sm:$0xff]
    %v2379 = vld [vmem:[#allocation13 + $0x58] sm:$0xff]
    %v2380 = vld [vmem:[#allocation13 + $0x60] sm:$0xff]
    %v2381 = vld [vmem:[#allocation13 + $0x68] sm:$0xff]
    %v2382 = vld [vmem:[#allocation13 + $0x70] sm:$0xff]
    %v2383 = vld [vmem:[#allocation13 + $0x78] sm:$0xff]
    %v2384 = vld [vmem:[#allocation13 + $0x80] sm:$0xff]
    %v2385 = vld [vmem:[#allocation13 + $0x88] sm:$0xff]
    %v2386 = vld [vmem:[#allocation13 + $0x90] sm:$0xff]
    %v2387 = vld [vmem:[#allocation13 + $0x98] sm:$0xff]
    %v2388 = vld [vmem:[#allocation13 + $0xa0] sm:$0xff]
    %v2389 = vld [vmem:[#allocation13 + $0xa8] sm:$0xff]
    %v2390 = vld [vmem:[#allocation13 + $0xb0] sm:$0xff]
    %v2391 = vld [vmem:[#allocation13 + $0xb8] sm:$0xff]
    %v2392 = vld [vmem:[#allocation13 + $0xc0] sm:$0xff]
    %v2393 = vld [vmem:[#allocation13 + $0xc8] sm:$0xff]
    %v2394 = vld [vmem:[#allocation13 + $0xd0] sm:$0xff]
    %v2395 = vld [vmem:[#allocation13 + $0xd8] sm:$0xff]
    %v2396 = vld [vmem:[#allocation13 + $0xe0] sm:$0xff]
    %v2397 = vld [vmem:[#allocation13 + $0xe8] sm:$0xff]
    %v2398 = vld [vmem:[#allocation13 + $0xf0] sm:$0xff]
    %v2399 = vld [vmem:[#allocation13 + $0xf8] sm:$0xff]
    %v2432 = vunpack.c.l.b16 %v2368
    %v2433 = vunpack.c.h.b16 %v2368
    %v2434 = vunpack.c.l.b16 %v2369
    %v2435 = vunpack.c.h.b16 %v2369
    %v2436 = vunpack.c.l.b16 %v2370
    %v2437 = vunpack.c.h.b16 %v2370
    %v2438 = vunpack.c.l.b16 %v2371
    %v2439 = vunpack.c.h.b16 %v2371
    %v2440 = vunpack.c.l.b16 %v2372
    %v2441 = vunpack.c.h.b16 %v2372
    %v2442 = vunpack.c.l.b16 %v2373
    %v2443 = vunpack.c.h.b16 %v2373
    %v2444 = vunpack.c.l.b16 %v2374
    %v2445 = vunpack.c.h.b16 %v2374
    %v2446 = vunpack.c.l.b16 %v2375
    %v2447 = vunpack.c.h.b16 %v2375
    %v2448 = vunpack.c.l.b16 %v2376
    %v2449 = vunpack.c.h.b16 %v2376
    %v2450 = vunpack.c.l.b16 %v2377
    %v2451 = vunpack.c.h.b16 %v2377
    %v2452 = vunpack.c.l.b16 %v2378
    %v2453 = vunpack.c.h.b16 %v2378
    %v2454 = vunpack.c.l.b16 %v2379
    %v2455 = vunpack.c.h.b16 %v2379
    %v2456 = vunpack.c.l.b16 %v2380
    %v2457 = vunpack.c.h.b16 %v2380
    %v2458 = vunpack.c.l.b16 %v2381
    %v2459 = vunpack.c.h.b16 %v2381
    %v2460 = vunpack.c.l.b16 %v2382
    %v2461 = vunpack.c.h.b16 %v2382
    %v2462 = vunpack.c.l.b16 %v2383
    %v2463 = vunpack.c.h.b16 %v2383
    %v2464 = vunpack.c.l.b16 %v2384
    %v2465 = vunpack.c.h.b16 %v2384
    %v2466 = vunpack.c.l.b16 %v2385
    %v2467 = vunpack.c.h.b16 %v2385
    %v2468 = vunpack.c.l.b16 %v2386
    %v2469 = vunpack.c.h.b16 %v2386
    %v2470 = vunpack.c.l.b16 %v2387
    %v2471 = vunpack.c.h.b16 %v2387
    %v2472 = vunpack.c.l.b16 %v2388
    %v2473 = vunpack.c.h.b16 %v2388
    %v2474 = vunpack.c.l.b16 %v2389
    %v2475 = vunpack.c.h.b16 %v2389
    %v2476 = vunpack.c.l.b16 %v2390
    %v2477 = vunpack.c.h.b16 %v2390
    %v2478 = vunpack.c.l.b16 %v2391
    %v2479 = vunpack.c.h.b16 %v2391
    %v2480 = vunpack.c.l.b16 %v2392
    %v2481 = vunpack.c.h.b16 %v2392
    %v2482 = vunpack.c.l.b16 %v2393
    %v2483 = vunpack.c.h.b16 %v2393
    %v2484 = vunpack.c.l.b16 %v2394
    %v2485 = vunpack.c.h.b16 %v2394
    %v2486 = vunpack.c.l.b16 %v2395
    %v2487 = vunpack.c.h.b16 %v2395
    %v2488 = vunpack.c.l.b16 %v2396
    %v2489 = vunpack.c.h.b16 %v2396
    %v2490 = vunpack.c.l.b16 %v2397
    %v2491 = vunpack.c.h.b16 %v2397
    %v2492 = vunpack.c.l.b16 %v2398
    %v2493 = vunpack.c.h.b16 %v2398
    %v2494 = vunpack.c.l.b16 %v2399
    %v2495 = vunpack.c.h.b16 %v2399
    %v2496 = vpack.c.b16 %v2436, %v2432
    %v2497 = vpack.c.b16 %v2437, %v2433
    %v2498 = vpack.c.b16 %v2438, %v2434
    %v2499 = vpack.c.b16 %v2439, %v2435
    %v2500 = vpack.c.b16 %v2444, %v2440
    %v2501 = vpack.c.b16 %v2445, %v2441
    %v2502 = vpack.c.b16 %v2446, %v2442
    %v2503 = vpack.c.b16 %v2447, %v2443
    %v2504 = vpack.c.b16 %v2452, %v2448
    %v2505 = vpack.c.b16 %v2453, %v2449
    %v2506 = vpack.c.b16 %v2454, %v2450
    %v2507 = vpack.c.b16 %v2455, %v2451
    %v2508 = vpack.c.b16 %v2460, %v2456
    %v2509 = vpack.c.b16 %v2461, %v2457
    %v2510 = vpack.c.b16 %v2462, %v2458
    %v2511 = vpack.c.b16 %v2463, %v2459
    %v2512 = vpack.c.b16 %v2468, %v2464
    %v2513 = vpack.c.b16 %v2469, %v2465
    %v2514 = vpack.c.b16 %v2470, %v2466
    %v2515 = vpack.c.b16 %v2471, %v2467
    %v2516 = vpack.c.b16 %v2476, %v2472
    %v2517 = vpack.c.b16 %v2477, %v2473
    %v2518 = vpack.c.b16 %v2478, %v2474
    %v2519 = vpack.c.b16 %v2479, %v2475
    %v2520 = vpack.c.b16 %v2484, %v2480
    %v2521 = vpack.c.b16 %v2485, %v2481
    %v2522 = vpack.c.b16 %v2486, %v2482
    %v2523 = vpack.c.b16 %v2487, %v2483
    %v2524 = vpack.c.b16 %v2492, %v2488
    %v2525 = vpack.c.b16 %v2493, %v2489
    %v2526 = vpack.c.b16 %v2494, %v2490
    %v2527 = vpack.c.b16 %v2495, %v2491
    %2560 = vmatprep.subr.bf16.mxu0 %v2497
    %2561 = vmatpush1.bf16.msra.mxu0 %v2496
    %2562 = vmatprep.subr.bf16.mxu0 %v2501
    %2563 = vmatpush1.bf16.msra.mxu0 %v2500
    %2564 = vmatprep.subr.bf16.mxu0 %v2505
    %2565 = vmatpush1.bf16.msra.mxu0 %v2504
    %2566 = vmatprep.subr.bf16.mxu0 %v2509
    %2567 = vmatpush1.bf16.msra.mxu0 %v2508
    %2568 = vmatprep.subr.bf16.mxu0 %v2513
    %2569 = vmatpush1.bf16.msra.mxu0 %v2512
    %2570 = vmatprep.subr.bf16.mxu0 %v2517
    %2571 = vmatpush1.bf16.msra.mxu0 %v2516
    %2572 = vmatprep.subr.bf16.mxu0 %v2521
    %2573 = vmatpush1.bf16.msra.mxu0 %v2520
    %2574 = vmatprep.subr.bf16.mxu0 %v2525
    %2575 = vmatpush1.bf16.msra.mxu0 %v2524
    %2576 = vmatprep.subr.bf16.mxu0 0
    %2577 = vmatpush1.bf16.msra.mxu0 0
    %2578 = vmatprep.subr.bf16.mxu0 0
    %2579 = vmatpush1.bf16.msra.mxu0 0
    %2580 = vmatprep.subr.bf16.mxu0 0
    %2581 = vmatpush1.bf16.msra.mxu0 0
    %2582 = vmatprep.subr.bf16.mxu0 0
    %2583 = vmatpush1.bf16.msra.mxu0 0
    %2584 = vmatprep.subr.bf16.mxu0 0
    %2585 = vmatpush1.bf16.msra.mxu0 0
    %2586 = vmatprep.subr.bf16.mxu0 0
    %2587 = vmatpush1.bf16.msra.mxu0 0
    %2588 = vmatprep.subr.bf16.mxu0 0
    %2589 = vmatpush1.bf16.msra.mxu0 0
    %2590 = vmatprep.subr.bf16.mxu0 0
    %2591 = vmatpush1.bf16.msra.mxu0 0
    %2592 = vmatprep.mubr.bf16.mxu0 0
    %2593 = vmatmul.mubr.bf16.gmra.mrb[0].mxu0 %v2362
    %v2594 = vpop.f32.mrb[0].mxu0
    %v2595 = vadd.f32 0.0, %v2594
    %v2596 = vpop.f32.mrb[0].mxu0
    %v2597 = vadd.f32 0.0, %v2596
    %v2598 = vpop.f32.mrb[0].mxu0
    %v2599 = vpop.f32.mrb[0].mxu0
    %2600 = vdwg.mxu0
    %2601 = vmatprep.subr.bf16.mxu0 %v2499
    %2602 = vmatpush1.bf16.msra.mxu0 %v2498
    %2603 = vmatprep.subr.bf16.mxu0 %v2503
    %2604 = vmatpush1.bf16.msra.mxu0 %v2502
    %2605 = vmatprep.subr.bf16.mxu0 %v2507
    %2606 = vmatpush1.bf16.msra.mxu0 %v2506
    %2607 = vmatprep.subr.bf16.mxu0 %v2511
    %2608 = vmatpush1.bf16.msra.mxu0 %v2510
    %2609 = vmatprep.subr.bf16.mxu0 %v2515
    %2610 = vmatpush1.bf16.msra.mxu0 %v2514
    %2611 = vmatprep.subr.bf16.mxu0 %v2519
    %2612 = vmatpush1.bf16.msra.mxu0 %v2518
    %2613 = vmatprep.subr.bf16.mxu0 %v2523
    %2614 = vmatpush1.bf16.msra.mxu0 %v2522
    %2615 = vmatprep.subr.bf16.mxu0 %v2527
    %2616 = vmatpush1.bf16.msra.mxu0 %v2526
    %2617 = vmatprep.subr.bf16.mxu0 0
    %2618 = vmatpush1.bf16.msra.mxu0 0
    %2619 = vmatprep.subr.bf16.mxu0 0
    %2620 = vmatpush1.bf16.msra.mxu0 0
    %2621 = vmatprep.subr.bf16.mxu0 0
    %2622 = vmatpush1.bf16.msra.mxu0 0
    %2623 = vmatprep.subr.bf16.mxu0 0
    %2624 = vmatpush1.bf16.msra.mxu0 0
    %2625 = vmatprep.subr.bf16.mxu0 0
    %2626 = vmatpush1.bf16.msra.mxu0 0
    %2627 = vmatprep.subr.bf16.mxu0 0
    %2628 = vmatpush1.bf16.msra.mxu0 0
    %2629 = vmatprep.subr.bf16.mxu0 0
    %2630 = vmatpush1.bf16.msra.mxu0 0
    %2631 = vmatprep.subr.bf16.mxu0 0
    %2632 = vmatpush1.bf16.msra.mxu0 0
    %2633 = vmatprep.mubr.bf16.mxu0 0
    %2634 = vmatmul.mubr.bf16.gmra.mrb[0].mxu0 %v2362
    %v2635 = vpop.f32.mrb[0].mxu0
    %v2636 = vadd.f32 0.0, %v2635
    %v2637 = vpop.f32.mrb[0].mxu0
    %v2638 = vadd.f32 0.0, %v2637
    %v2639 = vpop.f32.mrb[0].mxu0
    %v2640 = vpop.f32.mrb[0].mxu0
    %2641 = vdwg.mxu0
    %v2642 = vadd.f32 %v2364, %v2595
    %v2643 = vadd.f32 %v2365, %v2597
    %v2644 = vadd.f32 %v2366, %v2636
    %v2645 = vadd.f32 %v2367, %v2638
    %v2646 = vxor.u32 %v2642, 2147483648
    %v2647 = vxor.u32 %v2643, 2147483648
    %v2648 = vxor.u32 %v2644, 2147483648
    %v2649 = vmul.f32 %v2646, 1.442695
    %v2650 = vpow.pop %v2649
    %v2651 = vmul.f32 %v2647, 1.442695
    %v2652 = vpow.pop %v2651
    %v2653 = vmul.f32 %v2648, 1.442695
    %v2654 = vpow.pop %v2653
    %v2655 = vadd.f32 %v2650, 1.0
    %v2656 = vadd.f32 %v2652, 1.0
    %v2657 = vadd.f32 %v2654, 1.0
    %v2658 = vrcp.pop %v2655
    %v2659 = vmul.f32 1.0, %v2658
    %v2660 = vrcp.pop %v2656
    %v2661 = vmul.f32 1.0, %v2660
    %v2662 = vrcp.pop %v2657
    %v2663 = vmul.f32 1.0, %v2662
    %v2664 = vtanh.pop %v2645
    %v2665 = vmul.f32 %v2661, %v2359
    %v2666 = vmul.f32 %v2659, %v2664
    %v2667 = vadd.f32 %v2665, %v2666
    %v2668 = vtanh.pop %v2667
    %v2669 = vmul.f32 %v2663, %v2668
    %v2670 = vpack.c.bf16 %v2669, %v2669
    %v2672 = vrot.slane %v2670, 4
    %2674 = vst [vmem:[#allocation3 + $0x10] sm:$0xf0] %v2672
    %v2675 = vld [vmem:[#allocation2 + $0xc0] sm:$0xff]
    %v2676 = vld [vmem:[#allocation2 + $0xc8] sm:$0xff]
    %v2677 = vld [vmem:[#allocation2 + $0xd0] sm:$0xff]
    %v2678 = vld [vmem:[#allocation2 + $0xd8] sm:$0xff]
    %v2679 = vld [vmem:[#allocation13] sm:$0xff]
    %v2680 = vld [vmem:[#allocation13 + $0x8] sm:$0xff]
    %v2681 = vld [vmem:[#allocation13 + $0x10] sm:$0xff]
    %v2682 = vld [vmem:[#allocation13 + $0x18] sm:$0xff]
    %v2683 = vld [vmem:[#allocation13 + $0x20] sm:$0xff]
    %v2684 = vld [vmem:[#allocation13 + $0x28] sm:$0xff]
    %v2685 = vld [vmem:[#allocation13 + $0x30] sm:$0xff]
    %v2686 = vld [vmem:[#allocation13 + $0x38] sm:$0xff]
    %v2687 = vld [vmem:[#allocation13 + $0x40] sm:$0xff]
    %v2688 = vld [vmem:[#allocation13 + $0x48] sm:$0xff]
    %v2689 = vld [vmem:[#allocation13 + $0x50] sm:$0xff]
    %v2690 = vld [vmem:[#allocation13 + $0x58] sm:$0xff]
    %v2691 = vld [vmem:[#allocation13 + $0x60] sm:$0xff]
    %v2692 = vld [vmem:[#allocation13 + $0x68] sm:$0xff]
    %v2693 = vld [vmem:[#allocation13 + $0x70] sm:$0xff]
    %v2694 = vld [vmem:[#allocation13 + $0x78] sm:$0xff]
    %v2695 = vld [vmem:[#allocation13 + $0x80] sm:$0xff]
    %v2696 = vld [vmem:[#allocation13 + $0x88] sm:$0xff]
    %v2697 = vld [vmem:[#allocation13 + $0x90] sm:$0xff]
    %v2698 = vld [vmem:[#allocation13 + $0x98] sm:$0xff]
    %v2699 = vld [vmem:[#allocation13 + $0xa0] sm:$0xff]
    %v2700 = vld [vmem:[#allocation13 + $0xa8] sm:$0xff]
    %v2701 = vld [vmem:[#allocation13 + $0xb0] sm:$0xff]
    %v2702 = vld [vmem:[#allocation13 + $0xb8] sm:$0xff]
    %v2703 = vld [vmem:[#allocation13 + $0xc0] sm:$0xff]
    %v2704 = vld [vmem:[#allocation13 + $0xc8] sm:$0xff]
    %v2705 = vld [vmem:[#allocation13 + $0xd0] sm:$0xff]
    %v2706 = vld [vmem:[#allocation13 + $0xd8] sm:$0xff]
    %v2707 = vld [vmem:[#allocation13 + $0xe0] sm:$0xff]
    %v2708 = vld [vmem:[#allocation13 + $0xe8] sm:$0xff]
    %v2709 = vld [vmem:[#allocation13 + $0xf0] sm:$0xff]
    %v2710 = vld [vmem:[#allocation13 + $0xf8] sm:$0xff]
    %v2743 = vunpack.c.l.b16 %v2679
    %v2744 = vunpack.c.h.b16 %v2679
    %v2745 = vunpack.c.l.b16 %v2680
    %v2746 = vunpack.c.h.b16 %v2680
    %v2747 = vunpack.c.l.b16 %v2681
    %v2748 = vunpack.c.h.b16 %v2681
    %v2749 = vunpack.c.l.b16 %v2682
    %v2750 = vunpack.c.h.b16 %v2682
    %v2751 = vunpack.c.l.b16 %v2683
    %v2752 = vunpack.c.h.b16 %v2683
    %v2753 = vunpack.c.l.b16 %v2684
    %v2754 = vunpack.c.h.b16 %v2684
    %v2755 = vunpack.c.l.b16 %v2685
    %v2756 = vunpack.c.h.b16 %v2685
    %v2757 = vunpack.c.l.b16 %v2686
    %v2758 = vunpack.c.h.b16 %v2686
    %v2759 = vunpack.c.l.b16 %v2687
    %v2760 = vunpack.c.h.b16 %v2687
    %v2761 = vunpack.c.l.b16 %v2688
    %v2762 = vunpack.c.h.b16 %v2688
    %v2763 = vunpack.c.l.b16 %v2689
    %v2764 = vunpack.c.h.b16 %v2689
    %v2765 = vunpack.c.l.b16 %v2690
    %v2766 = vunpack.c.h.b16 %v2690
    %v2767 = vunpack.c.l.b16 %v2691
    %v2768 = vunpack.c.h.b16 %v2691
    %v2769 = vunpack.c.l.b16 %v2692
    %v2770 = vunpack.c.h.b16 %v2692
    %v2771 = vunpack.c.l.b16 %v2693
    %v2772 = vunpack.c.h.b16 %v2693
    %v2773 = vunpack.c.l.b16 %v2694
    %v2774 = vunpack.c.h.b16 %v2694
    %v2775 = vunpack.c.l.b16 %v2695
    %v2776 = vunpack.c.h.b16 %v2695
    %v2777 = vunpack.c.l.b16 %v2696
    %v2778 = vunpack.c.h.b16 %v2696
    %v2779 = vunpack.c.l.b16 %v2697
    %v2780 = vunpack.c.h.b16 %v2697
    %v2781 = vunpack.c.l.b16 %v2698
    %v2782 = vunpack.c.h.b16 %v2698
    %v2783 = vunpack.c.l.b16 %v2699
    %v2784 = vunpack.c.h.b16 %v2699
    %v2785 = vunpack.c.l.b16 %v2700
    %v2786 = vunpack.c.h.b16 %v2700
    %v2787 = vunpack.c.l.b16 %v2701
    %v2788 = vunpack.c.h.b16 %v2701
    %v2789 = vunpack.c.l.b16 %v2702
    %v2790 = vunpack.c.h.b16 %v2702
    %v2791 = vunpack.c.l.b16 %v2703
    %v2792 = vunpack.c.h.b16 %v2703
    %v2793 = vunpack.c.l.b16 %v2704
    %v2794 = vunpack.c.h.b16 %v2704
    %v2795 = vunpack.c.l.b16 %v2705
    %v2796 = vunpack.c.h.b16 %v2705
    %v2797 = vunpack.c.l.b16 %v2706
    %v2798 = vunpack.c.h.b16 %v2706
    %v2799 = vunpack.c.l.b16 %v2707
    %v2800 = vunpack.c.h.b16 %v2707
    %v2801 = vunpack.c.l.b16 %v2708
    %v2802 = vunpack.c.h.b16 %v2708
    %v2803 = vunpack.c.l.b16 %v2709
    %v2804 = vunpack.c.h.b16 %v2709
    %v2805 = vunpack.c.l.b16 %v2710
    %v2806 = vunpack.c.h.b16 %v2710
    %v2807 = vpack.c.b16 %v2747, %v2743
    %v2808 = vpack.c.b16 %v2748, %v2744
    %v2809 = vpack.c.b16 %v2749, %v2745
    %v2810 = vpack.c.b16 %v2750, %v2746
    %v2811 = vpack.c.b16 %v2755, %v2751
    %v2812 = vpack.c.b16 %v2756, %v2752
    %v2813 = vpack.c.b16 %v2757, %v2753
    %v2814 = vpack.c.b16 %v2758, %v2754
    %v2815 = vpack.c.b16 %v2763, %v2759
    %v2816 = vpack.c.b16 %v2764, %v2760
    %v2817 = vpack.c.b16 %v2765, %v2761
    %v2818 = vpack.c.b16 %v2766, %v2762
    %v2819 = vpack.c.b16 %v2771, %v2767
    %v2820 = vpack.c.b16 %v2772, %v2768
    %v2821 = vpack.c.b16 %v2773, %v2769
    %v2822 = vpack.c.b16 %v2774, %v2770
    %v2823 = vpack.c.b16 %v2779, %v2775
    %v2824 = vpack.c.b16 %v2780, %v2776
    %v2825 = vpack.c.b16 %v2781, %v2777
    %v2826 = vpack.c.b16 %v2782, %v2778
    %v2827 = vpack.c.b16 %v2787, %v2783
    %v2828 = vpack.c.b16 %v2788, %v2784
    %v2829 = vpack.c.b16 %v2789, %v2785
    %v2830 = vpack.c.b16 %v2790, %v2786
    %v2831 = vpack.c.b16 %v2795, %v2791
    %v2832 = vpack.c.b16 %v2796, %v2792
    %v2833 = vpack.c.b16 %v2797, %v2793
    %v2834 = vpack.c.b16 %v2798, %v2794
    %v2835 = vpack.c.b16 %v2803, %v2799
    %v2836 = vpack.c.b16 %v2804, %v2800
    %v2837 = vpack.c.b16 %v2805, %v2801
    %v2838 = vpack.c.b16 %v2806, %v2802
    %2871 = vmatprep.subr.bf16.mxu0 %v2808
    %2872 = vmatpush1.bf16.msra.mxu0 %v2807
    %2873 = vmatprep.subr.bf16.mxu0 %v2812
    %2874 = vmatpush1.bf16.msra.mxu0 %v2811
    %2875 = vmatprep.subr.bf16.mxu0 %v2816
    %2876 = vmatpush1.bf16.msra.mxu0 %v2815
    %2877 = vmatprep.subr.bf16.mxu0 %v2820
    %2878 = vmatpush1.bf16.msra.mxu0 %v2819
    %2879 = vmatprep.subr.bf16.mxu0 %v2824
    %2880 = vmatpush1.bf16.msra.mxu0 %v2823
    %2881 = vmatprep.subr.bf16.mxu0 %v2828
    %2882 = vmatpush1.bf16.msra.mxu0 %v2827
    %2883 = vmatprep.subr.bf16.mxu0 %v2832
    %2884 = vmatpush1.bf16.msra.mxu0 %v2831
    %2885 = vmatprep.subr.bf16.mxu0 %v2836
    %2886 = vmatpush1.bf16.msra.mxu0 %v2835
    %2887 = vmatprep.subr.bf16.mxu0 0
    %2888 = vmatpush1.bf16.msra.mxu0 0
    %2889 = vmatprep.subr.bf16.mxu0 0
    %2890 = vmatpush1.bf16.msra.mxu0 0
    %2891 = vmatprep.subr.bf16.mxu0 0
    %2892 = vmatpush1.bf16.msra.mxu0 0
    %2893 = vmatprep.subr.bf16.mxu0 0
    %2894 = vmatpush1.bf16.msra.mxu0 0
    %2895 = vmatprep.subr.bf16.mxu0 0
    %2896 = vmatpush1.bf16.msra.mxu0 0
    %2897 = vmatprep.subr.bf16.mxu0 0
    %2898 = vmatpush1.bf16.msra.mxu0 0
    %2899 = vmatprep.subr.bf16.mxu0 0
    %2900 = vmatpush1.bf16.msra.mxu0 0
    %2901 = vmatprep.subr.bf16.mxu0 0
    %2902 = vmatpush1.bf16.msra.mxu0 0
    %2903 = vmatprep.mubr.bf16.mxu0 0
    %2904 = vmatmul.mubr.bf16.gmra.mrb[0].mxu0 %v2670
    %v2905 = vpop.f32.mrb[0].mxu0
    %v2906 = vadd.f32 0.0, %v2905
    %v2907 = vpop.f32.mrb[0].mxu0
    %v2908 = vadd.f32 0.0, %v2907
    %v2909 = vpop.f32.mrb[0].mxu0
    %v2910 = vpop.f32.mrb[0].mxu0
    %2911 = vdwg.mxu0
    %2912 = vmatprep.subr.bf16.mxu0 %v2810
    %2913 = vmatpush1.bf16.msra.mxu0 %v2809
    %2914 = vmatprep.subr.bf16.mxu0 %v2814
    %2915 = vmatpush1.bf16.msra.mxu0 %v2813
    %2916 = vmatprep.subr.bf16.mxu0 %v2818
    %2917 = vmatpush1.bf16.msra.mxu0 %v2817
    %2918 = vmatprep.subr.bf16.mxu0 %v2822
    %2919 = vmatpush1.bf16.msra.mxu0 %v2821
    %2920 = vmatprep.subr.bf16.mxu0 %v2826
    %2921 = vmatpush1.bf16.msra.mxu0 %v2825
    %2922 = vmatprep.subr.bf16.mxu0 %v2830
    %2923 = vmatpush1.bf16.msra.mxu0 %v2829
    %2924 = vmatprep.subr.bf16.mxu0 %v2834
    %2925 = vmatpush1.bf16.msra.mxu0 %v2833
    %2926 = vmatprep.subr.bf16.mxu0 %v2838
    %2927 = vmatpush1.bf16.msra.mxu0 %v2837
    %2928 = vmatprep.subr.bf16.mxu0 0
    %2929 = vmatpush1.bf16.msra.mxu0 0
    %2930 = vmatprep.subr.bf16.mxu0 0
    %2931 = vmatpush1.bf16.msra.mxu0 0
    %2932 = vmatprep.subr.bf16.mxu0 0
    %2933 = vmatpush1.bf16.msra.mxu0 0
    %2934 = vmatprep.subr.bf16.mxu0 0
    %2935 = vmatpush1.bf16.msra.mxu0 0
    %2936 = vmatprep.subr.bf16.mxu0 0
    %2937 = vmatpush1.bf16.msra.mxu0 0
    %2938 = vmatprep.subr.bf16.mxu0 0
    %2939 = vmatpush1.bf16.msra.mxu0 0
    %2940 = vmatprep.subr.bf16.mxu0 0
    %2941 = vmatpush1.bf16.msra.mxu0 0
    %2942 = vmatprep.subr.bf16.mxu0 0
    %2943 = vmatpush1.bf16.msra.mxu0 0
    %2944 = vmatprep.mubr.bf16.mxu0 0
    %2945 = vmatmul.mubr.bf16.gmra.mrb[0].mxu0 %v2670
    %v2946 = vpop.f32.mrb[0].mxu0
    %v2947 = vadd.f32 0.0, %v2946
    %v2948 = vpop.f32.mrb[0].mxu0
    %v2949 = vadd.f32 0.0, %v2948
    %v2950 = vpop.f32.mrb[0].mxu0
    %v2951 = vpop.f32.mrb[0].mxu0
    %2952 = vdwg.mxu0
    %v2953 = vadd.f32 %v2675, %v2906
    %v2954 = vadd.f32 %v2676, %v2908
    %v2955 = vadd.f32 %v2677, %v2947
    %v2956 = vadd.f32 %v2678, %v2949
    %v2957 = vxor.u32 %v2953, 2147483648
    %v2958 = vxor.u32 %v2954, 2147483648
    %v2959 = vxor.u32 %v2955, 2147483648
    %v2960 = vmul.f32 %v2957, 1.442695
    %v2961 = vpow.pop %v2960
    %v2962 = vmul.f32 %v2958, 1.442695
    %v2963 = vpow.pop %v2962
    %v2964 = vmul.f32 %v2959, 1.442695
    %v2965 = vpow.pop %v2964
    %v2966 = vadd.f32 %v2961, 1.0
    %v2967 = vadd.f32 %v2963, 1.0
    %v2968 = vadd.f32 %v2965, 1.0
    %v2969 = vrcp.pop %v2966
    %v2970 = vmul.f32 1.0, %v2969
    %v2971 = vrcp.pop %v2967
    %v2972 = vmul.f32 1.0, %v2971
    %v2973 = vrcp.pop %v2968
    %v2974 = vmul.f32 1.0, %v2973
    %v2975 = vtanh.pop %v2956
    %v2976 = vmul.f32 %v2972, %v2667
    %v2977 = vmul.f32 %v2970, %v2975
    %v2978 = vadd.f32 %v2976, %v2977
    %v2979 = vtanh.pop %v2978
    %v2980 = vmul.f32 %v2974, %v2979
    %v2981 = vpack.c.bf16 %v2980, %v2980
    %2982 = vst [vmem:[#allocation3 + $0x18] sm:$0xf] %v2981
    %v2983 = vld [vmem:[#allocation2 + $0xe0] sm:$0xff]
    %v2984 = vld [vmem:[#allocation2 + $0xe8] sm:$0xff]
    %v2985 = vld [vmem:[#allocation2 + $0xf0] sm:$0xff]
    %v2986 = vld [vmem:[#allocation2 + $0xf8] sm:$0xff]
    %v2987 = vld [vmem:[#allocation13] sm:$0xff]
    %v2988 = vld [vmem:[#allocation13 + $0x8] sm:$0xff]
    %v2989 = vld [vmem:[#allocation13 + $0x10] sm:$0xff]
    %v2990 = vld [vmem:[#allocation13 + $0x18] sm:$0xff]
    %v2991 = vld [vmem:[#allocation13 + $0x20] sm:$0xff]
    %v2992 = vld [vmem:[#allocation13 + $0x28] sm:$0xff]
    %v2993 = vld [vmem:[#allocation13 + $0x30] sm:$0xff]
    %v2994 = vld [vmem:[#allocation13 + $0x38] sm:$0xff]
    %v2995 = vld [vmem:[#allocation13 + $0x40] sm:$0xff]
    %v2996 = vld [vmem:[#allocation13 + $0x48] sm:$0xff]
    %v2997 = vld [vmem:[#allocation13 + $0x50] sm:$0xff]
    %v2998 = vld [vmem:[#allocation13 + $0x58] sm:$0xff]
    %v2999 = vld [vmem:[#allocation13 + $0x60] sm:$0xff]
    %v3000 = vld [vmem:[#allocation13 + $0x68] sm:$0xff]
    %v3001 = vld [vmem:[#allocation13 + $0x70] sm:$0xff]
    %v3002 = vld [vmem:[#allocation13 + $0x78] sm:$0xff]
    %v3003 = vld [vmem:[#allocation13 + $0x80] sm:$0xff]
    %v3004 = vld [vmem:[#allocation13 + $0x88] sm:$0xff]
    %v3005 = vld [vmem:[#allocation13 + $0x90] sm:$0xff]
    %v3006 = vld [vmem:[#allocation13 + $0x98] sm:$0xff]
    %v3007 = vld [vmem:[#allocation13 + $0xa0] sm:$0xff]
    %v3008 = vld [vmem:[#allocation13 + $0xa8] sm:$0xff]
    %v3009 = vld [vmem:[#allocation13 + $0xb0] sm:$0xff]
    %v3010 = vld [vmem:[#allocation13 + $0xb8] sm:$0xff]
    %v3011 = vld [vmem:[#allocation13 + $0xc0] sm:$0xff]
    %v3012 = vld [vmem:[#allocation13 + $0xc8] sm:$0xff]
    %v3013 = vld [vmem:[#allocation13 + $0xd0] sm:$0xff]
    %v3014 = vld [vmem:[#allocation13 + $0xd8] sm:$0xff]
    %v3015 = vld [vmem:[#allocation13 + $0xe0] sm:$0xff]
    %v3016 = vld [vmem:[#allocation13 + $0xe8] sm:$0xff]
    %v3017 = vld [vmem:[#allocation13 + $0xf0] sm:$0xff]
    %v3018 = vld [vmem:[#allocation13 + $0xf8] sm:$0xff]
    %v3051 = vunpack.c.l.b16 %v2987
    %v3052 = vunpack.c.h.b16 %v2987
    %v3053 = vunpack.c.l.b16 %v2988
    %v3054 = vunpack.c.h.b16 %v2988
    %v3055 = vunpack.c.l.b16 %v2989
    %v3056 = vunpack.c.h.b16 %v2989
    %v3057 = vunpack.c.l.b16 %v2990
    %v3058 = vunpack.c.h.b16 %v2990
    %v3059 = vunpack.c.l.b16 %v2991
    %v3060 = vunpack.c.h.b16 %v2991
    %v3061 = vunpack.c.l.b16 %v2992
    %v3062 = vunpack.c.h.b16 %v2992
    %v3063 = vunpack.c.l.b16 %v2993
    %v3064 = vunpack.c.h.b16 %v2993
    %v3065 = vunpack.c.l.b16 %v2994
    %v3066 = vunpack.c.h.b16 %v2994
    %v3067 = vunpack.c.l.b16 %v2995
    %v3068 = vunpack.c.h.b16 %v2995
    %v3069 = vunpack.c.l.b16 %v2996
    %v3070 = vunpack.c.h.b16 %v2996
    %v3071 = vunpack.c.l.b16 %v2997
    %v3072 = vunpack.c.h.b16 %v2997
    %v3073 = vunpack.c.l.b16 %v2998
    %v3074 = vunpack.c.h.b16 %v2998
    %v3075 = vunpack.c.l.b16 %v2999
    %v3076 = vunpack.c.h.b16 %v2999
    %v3077 = vunpack.c.l.b16 %v3000
    %v3078 = vunpack.c.h.b16 %v3000
    %v3079 = vunpack.c.l.b16 %v3001
    %v3080 = vunpack.c.h.b16 %v3001
    %v3081 = vunpack.c.l.b16 %v3002
    %v3082 = vunpack.c.h.b16 %v3002
    %v3083 = vunpack.c.l.b16 %v3003
    %v3084 = vunpack.c.h.b16 %v3003
    %v3085 = vunpack.c.l.b16 %v3004
    %v3086 = vunpack.c.h.b16 %v3004
    %v3087 = vunpack.c.l.b16 %v3005
    %v3088 = vunpack.c.h.b16 %v3005
    %v3089 = vunpack.c.l.b16 %v3006
    %v3090 = vunpack.c.h.b16 %v3006
    %v3091 = vunpack.c.l.b16 %v3007
    %v3092 = vunpack.c.h.b16 %v3007
    %v3093 = vunpack.c.l.b16 %v3008
    %v3094 = vunpack.c.h.b16 %v3008
    %v3095 = vunpack.c.l.b16 %v3009
    %v3096 = vunpack.c.h.b16 %v3009
    %v3097 = vunpack.c.l.b16 %v3010
    %v3098 = vunpack.c.h.b16 %v3010
    %v3099 = vunpack.c.l.b16 %v3011
    %v3100 = vunpack.c.h.b16 %v3011
    %v3101 = vunpack.c.l.b16 %v3012
    %v3102 = vunpack.c.h.b16 %v3012
    %v3103 = vunpack.c.l.b16 %v3013
    %v3104 = vunpack.c.h.b16 %v3013
    %v3105 = vunpack.c.l.b16 %v3014
    %v3106 = vunpack.c.h.b16 %v3014
    %v3107 = vunpack.c.l.b16 %v3015
    %v3108 = vunpack.c.h.b16 %v3015
    %v3109 = vunpack.c.l.b16 %v3016
    %v3110 = vunpack.c.h.b16 %v3016
    %v3111 = vunpack.c.l.b16 %v3017
    %v3112 = vunpack.c.h.b16 %v3017
    %v3113 = vunpack.c.l.b16 %v3018
    %v3114 = vunpack.c.h.b16 %v3018
    %v3115 = vpack.c.b16 %v3055, %v3051
    %v3116 = vpack.c.b16 %v3056, %v3052
    %v3117 = vpack.c.b16 %v3057, %v3053
    %v3118 = vpack.c.b16 %v3058, %v3054
    %v3119 = vpack.c.b16 %v3063, %v3059
    %v3120 = vpack.c.b16 %v3064, %v3060
    %v3121 = vpack.c.b16 %v3065, %v3061
    %v3122 = vpack.c.b16 %v3066, %v3062
    %v3123 = vpack.c.b16 %v3071, %v3067
    %v3124 = vpack.c.b16 %v3072, %v3068
    %v3125 = vpack.c.b16 %v3073, %v3069
    %v3126 = vpack.c.b16 %v3074, %v3070
    %v3127 = vpack.c.b16 %v3079, %v3075
    %v3128 = vpack.c.b16 %v3080, %v3076
    %v3129 = vpack.c.b16 %v3081, %v3077
    %v3130 = vpack.c.b16 %v3082, %v3078
    %v3131 = vpack.c.b16 %v3087, %v3083
    %v3132 = vpack.c.b16 %v3088, %v3084
    %v3133 = vpack.c.b16 %v3089, %v3085
    %v3134 = vpack.c.b16 %v3090, %v3086
    %v3135 = vpack.c.b16 %v3095, %v3091
    %v3136 = vpack.c.b16 %v3096, %v3092
    %v3137 = vpack.c.b16 %v3097, %v3093
    %v3138 = vpack.c.b16 %v3098, %v3094
    %v3139 = vpack.c.b16 %v3103, %v3099
    %v3140 = vpack.c.b16 %v3104, %v3100
    %v3141 = vpack.c.b16 %v3105, %v3101
    %v3142 = vpack.c.b16 %v3106, %v3102
    %v3143 = vpack.c.b16 %v3111, %v3107
    %v3144 = vpack.c.b16 %v3112, %v3108
    %v3145 = vpack.c.b16 %v3113, %v3109
    %v3146 = vpack.c.b16 %v3114, %v3110
    %3179 = vmatprep.subr.bf16.mxu0 %v3116
    %3180 = vmatpush1.bf16.msra.mxu0 %v3115
    %3181 = vmatprep.subr.bf16.mxu0 %v3120
    %3182 = vmatpush1.bf16.msra.mxu0 %v3119
    %3183 = vmatprep.subr.bf16.mxu0 %v3124
    %3184 = vmatpush1.bf16.msra.mxu0 %v3123
    %3185 = vmatprep.subr.bf16.mxu0 %v3128
    %3186 = vmatpush1.bf16.msra.mxu0 %v3127
    %3187 = vmatprep.subr.bf16.mxu0 %v3132
    %3188 = vmatpush1.bf16.msra.mxu0 %v3131
    %3189 = vmatprep.subr.bf16.mxu0 %v3136
    %3190 = vmatpush1.bf16.msra.mxu0 %v3135
    %3191 = vmatprep.subr.bf16.mxu0 %v3140
    %3192 = vmatpush1.bf16.msra.mxu0 %v3139
    %3193 = vmatprep.subr.bf16.mxu0 %v3144
    %3194 = vmatpush1.bf16.msra.mxu0 %v3143
    %3195 = vmatprep.subr.bf16.mxu0 0
    %3196 = vmatpush1.bf16.msra.mxu0 0
    %3197 = vmatprep.subr.bf16.mxu0 0
    %3198 = vmatpush1.bf16.msra.mxu0 0
    %3199 = vmatprep.subr.bf16.mxu0 0
    %3200 = vmatpush1.bf16.msra.mxu0 0
    %3201 = vmatprep.subr.bf16.mxu0 0
    %3202 = vmatpush1.bf16.msra.mxu0 0
    %3203 = vmatprep.subr.bf16.mxu0 0
    %3204 = vmatpush1.bf16.msra.mxu0 0
    %3205 = vmatprep.subr.bf16.mxu0 0
    %3206 = vmatpush1.bf16.msra.mxu0 0
    %3207 = vmatprep.subr.bf16.mxu0 0
    %3208 = vmatpush1.bf16.msra.mxu0 0
    %3209 = vmatprep.subr.bf16.mxu0 0
    %3210 = vmatpush1.bf16.msra.mxu0 0
    %3211 = vmatprep.mubr.bf16.mxu0 0
    %3212 = vmatmul.mubr.bf16.gmra.mrb[0].mxu0 %v2981
    %v3213 = vpop.f32.mrb[0].mxu0
    %v3214 = vadd.f32 0.0, %v3213
    %v3215 = vpop.f32.mrb[0].mxu0
    %v3216 = vadd.f32 0.0, %v3215
    %v3217 = vpop.f32.mrb[0].mxu0
    %v3218 = vpop.f32.mrb[0].mxu0
    %3219 = vdwg.mxu0
    %3220 = vmatprep.subr.bf16.mxu0 %v3118
    %3221 = vmatpush1.bf16.msra.mxu0 %v3117
    %3222 = vmatprep.subr.bf16.mxu0 %v3122
    %3223 = vmatpush1.bf16.msra.mxu0 %v3121
    %3224 = vmatprep.subr.bf16.mxu0 %v3126
    %3225 = vmatpush1.bf16.msra.mxu0 %v3125
    %3226 = vmatprep.subr.bf16.mxu0 %v3130
    %3227 = vmatpush1.bf16.msra.mxu0 %v3129
    %3228 = vmatprep.subr.bf16.mxu0 %v3134
    %3229 = vmatpush1.bf16.msra.mxu0 %v3133
    %3230 = vmatprep.subr.bf16.mxu0 %v3138
    %3231 = vmatpush1.bf16.msra.mxu0 %v3137
    %3232 = vmatprep.subr.bf16.mxu0 %v3142
    %3233 = vmatpush1.bf16.msra.mxu0 %v3141
    %3234 = vmatprep.subr.bf16.mxu0 %v3146
    %3235 = vmatpush1.bf16.msra.mxu0 %v3145
    %3236 = vmatprep.subr.bf16.mxu0 0
    %3237 = vmatpush1.bf16.msra.mxu0 0
    %3238 = vmatprep.subr.bf16.mxu0 0
    %3239 = vmatpush1.bf16.msra.mxu0 0
    %3240 = vmatprep.subr.bf16.mxu0 0
    %3241 = vmatpush1.bf16.msra.mxu0 0
    %3242 = vmatprep.subr.bf16.mxu0 0
    %3243 = vmatpush1.bf16.msra.mxu0 0
    %3244 = vmatprep.subr.bf16.mxu0 0
    %3245 = vmatpush1.bf16.msra.mxu0 0
    %3246 = vmatprep.subr.bf16.mxu0 0
    %3247 = vmatpush1.bf16.msra.mxu0 0
    %3248 = vmatprep.subr.bf16.mxu0 0
    %3249 = vmatpush1.bf16.msra.mxu0 0
    %3250 = vmatprep.subr.bf16.mxu0 0
    %3251 = vmatpush1.bf16.msra.mxu0 0
    %3252 = vmatprep.mubr.bf16.mxu0 0
    %3253 = vmatmul.mubr.bf16.gmra.mrb[0].mxu0 %v2981
    %v3254 = vpop.f32.mrb[0].mxu0
    %v3255 = vadd.f32 0.0, %v3254
    %v3256 = vpop.f32.mrb[0].mxu0
    %v3257 = vadd.f32 0.0, %v3256
    %v3258 = vpop.f32.mrb[0].mxu0
    %v3259 = vpop.f32.mrb[0].mxu0
    %3260 = vdwg.mxu0
    %v3261 = vadd.f32 %v2983, %v3214
    %v3262 = vadd.f32 %v2984, %v3216
    %v3263 = vadd.f32 %v2985, %v3255
    %v3264 = vadd.f32 %v2986, %v3257
    %v3265 = vxor.u32 %v3261, 2147483648
    %v3266 = vxor.u32 %v3262, 2147483648
    %v3267 = vxor.u32 %v3263, 2147483648
    %v3268 = vmul.f32 %v3265, 1.442695
    %v3269 = vpow.pop %v3268
    %v3270 = vmul.f32 %v3266, 1.442695
    %v3271 = vpow.pop %v3270
    %v3272 = vmul.f32 %v3267, 1.442695
    %v3273 = vpow.pop %v3272
    %v3274 = vadd.f32 %v3269, 1.0
    %v3275 = vadd.f32 %v3271, 1.0
    %v3276 = vadd.f32 %v3273, 1.0
    %v3277 = vrcp.pop %v3274
    %v3278 = vmul.f32 1.0, %v3277
    %v3279 = vrcp.pop %v3275
    %v3280 = vmul.f32 1.0, %v3279
    %v3281 = vrcp.pop %v3276
    %v3282 = vmul.f32 1.0, %v3281
    %v3283 = vtanh.pop %v3264
    %v3284 = vmul.f32 %v3280, %v2978
    %v3285 = vmul.f32 %v3278, %v3283
    %v3286 = vadd.f32 %v3284, %v3285
    %v3287 = vtanh.pop %v3286
    %v3288 = vmul.f32 %v3282, %v3287
    %v3289 = vpack.c.bf16 %v3288, %v3288
    %v3291 = vrot.slane %v3289, 4
    %3293 = vst [vmem:[#allocation3 + $0x18] sm:$0xf0] %v3291
    %s3294 = smul.u32 4, 16
    %s3295 = smul.u32 %s3294, 4
    %s3296 = sshll.u32 %s3295, 4
    %3297 = dma.done [#allocation7], %s3296
    %v3298 = vld [vmem:[#allocation3] sm:$0xff]
    %v3299 = vld [vmem:[#allocation3 + $0x8] sm:$0xff]
    %v3300 = vld [vmem:[#allocation3 + $0x10] sm:$0xff]
    %v3301 = vld [vmem:[#allocation3 + $0x18] sm:$0xff]
    %v3302 = vld [vmem:[#allocation4] sm:$0xff]
    %v3303 = vld [vmem:[#allocation4 + $0x8] sm:$0xff]
    %v3304 = vld [vmem:[#allocation4 + $0x10] sm:$0xff]
    %v3305 = vld [vmem:[#allocation4 + $0x18] sm:$0xff]
    %v3306 = vld [vmem:[#allocation4 + $0x20] sm:$0xff]
    %v3307 = vld [vmem:[#allocation4 + $0x28] sm:$0xff]
    %v3308 = vld [vmem:[#allocation4 + $0x30] sm:$0xff]
    %v3309 = vld [vmem:[#allocation4 + $0x38] sm:$0xff]
    %v3310 = vld [vmem:[#allocation4 + $0x40] sm:$0xff]
    %v3311 = vld [vmem:[#allocation4 + $0x48] sm:$0xff]
    %v3312 = vld [vmem:[#allocation4 + $0x50] sm:$0xff]
    %v3313 = vld [vmem:[#allocation4 + $0x58] sm:$0xff]
    %v3314 = vld [vmem:[#allocation4 + $0x60] sm:$0xff]
    %v3315 = vld [vmem:[#allocation4 + $0x68] sm:$0xff]
    %v3316 = vld [vmem:[#allocation4 + $0x70] sm:$0xff]
    %v3317 = vld [vmem:[#allocation4 + $0x78] sm:$0xff]
    %v3318 = vld [vmem:[#allocation4 + $0x80] sm:$0xff]
    %v3319 = vld [vmem:[#allocation4 + $0x88] sm:$0xff]
    %v3320 = vld [vmem:[#allocation4 + $0x90] sm:$0xff]
    %v3321 = vld [vmem:[#allocation4 + $0x98] sm:$0xff]
    %v3322 = vld [vmem:[#allocation4 + $0xa0] sm:$0xff]
    %v3323 = vld [vmem:[#allocation4 + $0xa8] sm:$0xff]
    %v3324 = vld [vmem:[#allocation4 + $0xb0] sm:$0xff]
    %v3325 = vld [vmem:[#allocation4 + $0xb8] sm:$0xff]
    %v3326 = vld [vmem:[#allocation4 + $0xc0] sm:$0xff]
    %v3327 = vld [vmem:[#allocation4 + $0xc8] sm:$0xff]
    %v3328 = vld [vmem:[#allocation4 + $0xd0] sm:$0xff]
    %v3329 = vld [vmem:[#allocation4 + $0xd8] sm:$0xff]
    %v3330 = vld [vmem:[#allocation4 + $0xe0] sm:$0xff]
    %v3331 = vld [vmem:[#allocation4 + $0xe8] sm:$0xff]
    %v3332 = vld [vmem:[#allocation4 + $0xf0] sm:$0xff]
    %v3333 = vld [vmem:[#allocation4 + $0xf8] sm:$0xff]
    %v3334 = vld [vmem:[#allocation14] sm:$0xf]
    %v3336 = vlaneseq
    %v3337 = vshrl.u32 %v3336, 7
    %v3338 = vsub.s32 0, %v3337
    %v3339 = vrot.slane %v3334, %v3338
    %v3340 = vlaneseq
    %v3341 = vshrl.u32 %v3340, 7
    %v3342 = vsub.s32 1, %v3341
    %v3343 = vrot.slane %v3334, %v3342
    %v3344 = vlaneseq
    %v3345 = vshrl.u32 %v3344, 7
    %v3346 = vsub.s32 2, %v3345
    %v3347 = vrot.slane %v3334, %v3346
    %v3348 = vlaneseq
    %v3349 = vshrl.u32 %v3348, 7
    %v3350 = vsub.s32 3, %v3349
    %v3351 = vrot.slane %v3334, %v3350
    %3356 = vmatprep.subr.bf16.mxu0 %v3303
    %3357 = vmatpush1.bf16.msra.mxu0 %v3302
    %3358 = vmatprep.subr.bf16.mxu0 %v3307
    %3359 = vmatpush1.bf16.msra.mxu0 %v3306
    %3360 = vmatprep.subr.bf16.mxu0 %v3311
    %3361 = vmatpush1.bf16.msra.mxu0 %v3310
    %3362 = vmatprep.subr.bf16.mxu0 %v3315
    %3363 = vmatpush1.bf16.msra.mxu0 %v3314
    %3364 = vmatprep.subr.bf16.mxu0 %v3319
    %3365 = vmatpush1.bf16.msra.mxu0 %v3318
    %3366 = vmatprep.subr.bf16.mxu0 %v3323
    %3367 = vmatpush1.bf16.msra.mxu0 %v3322
    %3368 = vmatprep.subr.bf16.mxu0 %v3327
    %3369 = vmatpush1.bf16.msra.mxu0 %v3326
    %3370 = vmatprep.subr.bf16.mxu0 %v3331
    %3371 = vmatpush1.bf16.msra.mxu0 %v3330
    %3372 = vmatprep.subr.bf16.mxu0 0
    %3373 = vmatpush1.bf16.msra.mxu0 0
    %3374 = vmatprep.subr.bf16.mxu0 0
    %3375 = vmatpush1.bf16.msra.mxu0 0
    %3376 = vmatprep.subr.bf16.mxu0 0
    %3377 = vmatpush1.bf16.msra.mxu0 0
    %3378 = vmatprep.subr.bf16.mxu0 0
    %3379 = vmatpush1.bf16.msra.mxu0 0
    %3380 = vmatprep.subr.bf16.mxu0 0
    %3381 = vmatpush1.bf16.msra.mxu0 0
    %3382 = vmatprep.subr.bf16.mxu0 0
    %3383 = vmatpush1.bf16.msra.mxu0 0
    %3384 = vmatprep.subr.bf16.mxu0 0
    %3385 = vmatpush1.bf16.msra.mxu0 0
    %3386 = vmatprep.subr.bf16.mxu0 0
    %3387 = vmatpush1.bf16.msra.mxu0 0
    %3388 = vmatprep.mubr.bf16.mxu0 0
    %3389 = vmatmul.mubr.bf16.gmra.mrb[0].mxu0 %v3298
    %v3390 = vpop.f32.mrb[0].mxu0
    %v3391 = vadd.f32 %v3339, %v3390
    %v3392 = vpop.f32.mrb[0].mxu0
    %v3393 = vadd.f32 %v3343, %v3392
    %v3394 = vpop.f32.mrb[0].mxu0
    %v3395 = vadd.f32 %v3339, %v3394
    %v3396 = vpop.f32.mrb[0].mxu0
    %v3397 = vadd.f32 %v3343, %v3396
    %3398 = vmatprep.mubr.bf16.mxu0 0
    %3399 = vmatmul.mubr.bf16.gmra.mrb[0].mxu0 %v3299
    %v3400 = vpop.f32.mrb[0].mxu0
    %v3401 = vadd.f32 %v3339, %v3400
    %v3402 = vpop.f32.mrb[0].mxu0
    %v3403 = vadd.f32 %v3343, %v3402
    %v3404 = vpop.f32.mrb[0].mxu0
    %v3405 = vadd.f32 %v3339, %v3404
    %v3406 = vpop.f32.mrb[0].mxu0
    %v3407 = vadd.f32 %v3343, %v3406
    %3408 = vmatprep.mubr.bf16.mxu0 0
    %3409 = vmatmul.mubr.bf16.gmra.mrb[0].mxu0 %v3300
    %v3410 = vpop.f32.mrb[0].mxu0
    %v3411 = vadd.f32 %v3339, %v3410
    %v3412 = vpop.f32.mrb[0].mxu0
    %v3413 = vadd.f32 %v3343, %v3412
    %v3414 = vpop.f32.mrb[0].mxu0
    %v3415 = vadd.f32 %v3339, %v3414
    %v3416 = vpop.f32.mrb[0].mxu0
    %v3417 = vadd.f32 %v3343, %v3416
    %3418 = vmatprep.mubr.bf16.mxu0 0
    %3419 = vmatmul.mubr.bf16.gmra.mrb[0].mxu0 %v3301
    %v3420 = vpop.f32.mrb[0].mxu0
    %v3421 = vadd.f32 %v3339, %v3420
    %v3422 = vpop.f32.mrb[0].mxu0
    %v3423 = vadd.f32 %v3343, %v3422
    %v3424 = vpop.f32.mrb[0].mxu0
    %v3425 = vadd.f32 %v3339, %v3424
    %v3426 = vpop.f32.mrb[0].mxu0
    %v3427 = vadd.f32 %v3343, %v3426
    %3428 = vdwg.mxu0
    %3429 = vmatprep.subr.bf16.mxu0 %v3305
    %3430 = vmatpush1.bf16.msra.mxu0 %v3304
    %3431 = vmatprep.subr.bf16.mxu0 %v3309
    %3432 = vmatpush1.bf16.msra.mxu0 %v3308
    %3433 = vmatprep.subr.bf16.mxu0 %v3313
    %3434 = vmatpush1.bf16.msra.mxu0 %v3312
    %3435 = vmatprep.subr.bf16.mxu0 %v3317
    %3436 = vmatpush1.bf16.msra.mxu0 %v3316
    %3437 = vmatprep.subr.bf16.mxu0 %v3321
    %3438 = vmatpush1.bf16.msra.mxu0 %v3320
    %3439 = vmatprep.subr.bf16.mxu0 %v3325
    %3440 = vmatpush1.bf16.msra.mxu0 %v3324
    %3441 = vmatprep.subr.bf16.mxu0 %v3329
    %3442 = vmatpush1.bf16.msra.mxu0 %v3328
    %3443 = vmatprep.subr.bf16.mxu0 %v3333
    %3444 = vmatpush1.bf16.msra.mxu0 %v3332
    %3445 = vmatprep.subr.bf16.mxu0 0
    %3446 = vmatpush1.bf16.msra.mxu0 0
    %3447 = vmatprep.subr.bf16.mxu0 0
    %3448 = vmatpush1.bf16.msra.mxu0 0
    %3449 = vmatprep.subr.bf16.mxu0 0
    %3450 = vmatpush1.bf16.msra.mxu0 0
    %3451 = vmatprep.subr.bf16.mxu0 0
    %3452 = vmatpush1.bf16.msra.mxu0 0
    %3453 = vmatprep.subr.bf16.mxu0 0
    %3454 = vmatpush1.bf16.msra.mxu0 0
    %3455 = vmatprep.subr.bf16.mxu0 0
    %3456 = vmatpush1.bf16.msra.mxu0 0
    %3457 = vmatprep.subr.bf16.mxu0 0
    %3458 = vmatpush1.bf16.msra.mxu0 0
    %3459 = vmatprep.subr.bf16.mxu0 0
    %3460 = vmatpush1.bf16.msra.mxu0 0
    %3461 = vmatprep.mubr.bf16.mxu0 0
    %3462 = vmatmul.mubr.bf16.gmra.mrb[0].mxu0 %v3298
    %v3463 = vpop.f32.mrb[0].mxu0
    %v3464 = vadd.f32 %v3347, %v3463
    %v3465 = vpop.f32.mrb[0].mxu0
    %v3466 = vadd.f32 %v3351, %v3465
    %v3467 = vpop.f32.mrb[0].mxu0
    %v3468 = vadd.f32 %v3347, %v3467
    %v3469 = vpop.f32.mrb[0].mxu0
    %v3470 = vadd.f32 %v3351, %v3469
    %3471 = vmatprep.mubr.bf16.mxu0 0
    %3472 = vmatmul.mubr.bf16.gmra.mrb[0].mxu0 %v3299
    %v3473 = vpop.f32.mrb[0].mxu0
    %v3474 = vadd.f32 %v3347, %v3473
    %v3475 = vpop.f32.mrb[0].mxu0
    %v3476 = vadd.f32 %v3351, %v3475
    %v3477 = vpop.f32.mrb[0].mxu0
    %v3478 = vadd.f32 %v3347, %v3477
    %v3479 = vpop.f32.mrb[0].mxu0
    %v3480 = vadd.f32 %v3351, %v3479
    %3481 = vmatprep.mubr.bf16.mxu0 0
    %3482 = vmatmul.mubr.bf16.gmra.mrb[0].mxu0 %v3300
    %v3483 = vpop.f32.mrb[0].mxu0
    %v3484 = vadd.f32 %v3347, %v3483
    %v3485 = vpop.f32.mrb[0].mxu0
    %v3486 = vadd.f32 %v3351, %v3485
    %v3487 = vpop.f32.mrb[0].mxu0
    %v3488 = vadd.f32 %v3347, %v3487
    %v3489 = vpop.f32.mrb[0].mxu0
    %v3490 = vadd.f32 %v3351, %v3489
    %3491 = vmatprep.mubr.bf16.mxu0 0
    %3492 = vmatmul.mubr.bf16.gmra.mrb[0].mxu0 %v3301
    %v3493 = vpop.f32.mrb[0].mxu0
    %v3494 = vadd.f32 %v3347, %v3493
    %v3495 = vpop.f32.mrb[0].mxu0
    %v3496 = vadd.f32 %v3351, %v3495
    %v3497 = vpop.f32.mrb[0].mxu0
    %v3498 = vadd.f32 %v3347, %v3497
    %v3499 = vpop.f32.mrb[0].mxu0
    %v3500 = vadd.f32 %v3351, %v3499
    %3501 = vdwg.mxu0
    %3502 = vst [vmem:[#allocation2] sm:$0xff] %v3391
    %3503 = vst [vmem:[#allocation2 + $0x8] sm:$0xff] %v3393
    %3504 = vst [vmem:[#allocation2 + $0x10] sm:$0xff] %v3464
    %3505 = vst [vmem:[#allocation2 + $0x18] sm:$0xff] %v3466
    %3506 = vst [vmem:[#allocation2 + $0x20] sm:$0xff] %v3395
    %3507 = vst [vmem:[#allocation2 + $0x28] sm:$0xff] %v3397
    %3508 = vst [vmem:[#allocation2 + $0x30] sm:$0xff] %v3468
    %3509 = vst [vmem:[#allocation2 + $0x38] sm:$0xff] %v3470
    %3510 = vst [vmem:[#allocation2 + $0x40] sm:$0xff] %v3401
    %3511 = vst [vmem:[#allocation2 + $0x48] sm:$0xff] %v3403
    %3512 = vst [vmem:[#allocation2 + $0x50] sm:$0xff] %v3474
    %3513 = vst [vmem:[#allocation2 + $0x58] sm:$0xff] %v3476
    %3514 = vst [vmem:[#allocation2 + $0x60] sm:$0xff] %v3405
    %3515 = vst [vmem:[#allocation2 + $0x68] sm:$0xff] %v3407
    %3516 = vst [vmem:[#allocation2 + $0x70] sm:$0xff] %v3478
    %3517 = vst [vmem:[#allocation2 + $0x78] sm:$0xff] %v3480
    %3518 = vst [vmem:[#allocation2 + $0x80] sm:$0xff] %v3411
    %3519 = vst [vmem:[#allocation2 + $0x88] sm:$0xff] %v3413
    %3520 = vst [vmem:[#allocation2 + $0x90] sm:$0xff] %v3484
    %3521 = vst [vmem:[#allocation2 + $0x98] sm:$0xff] %v3486
    %3522 = vst [vmem:[#allocation2 + $0xa0] sm:$0xff] %v3415
    %3523 = vst [vmem:[#allocation2 + $0xa8] sm:$0xff] %v3417
    %3524 = vst [vmem:[#allocation2 + $0xb0] sm:$0xff] %v3488
    %3525 = vst [vmem:[#allocation2 + $0xb8] sm:$0xff] %v3490
    %3526 = vst [vmem:[#allocation2 + $0xc0] sm:$0xff] %v3421
    %3527 = vst [vmem:[#allocation2 + $0xc8] sm:$0xff] %v3423
    %3528 = vst [vmem:[#allocation2 + $0xd0] sm:$0xff] %v3494
    %3529 = vst [vmem:[#allocation2 + $0xd8] sm:$0xff] %v3496
    %3530 = vst [vmem:[#allocation2 + $0xe0] sm:$0xff] %v3425
    %3531 = vst [vmem:[#allocation2 + $0xe8] sm:$0xff] %v3427
    %3532 = vst [vmem:[#allocation2 + $0xf0] sm:$0xff] %v3498
    %3533 = vst [vmem:[#allocation2 + $0xf8] sm:$0xff] %v3500
    %s3534 = sshll.u32 %s3295, 4
    %3535 = dma.done %s116, %s3534
    %v3536 = vld [vmem:[#allocation2] sm:$0xff]
    %v3537 = vld [vmem:[#allocation2 + $0x8] sm:$0xff]
    %v3538 = vld [vmem:[#allocation2 + $0x10] sm:$0xff]
    %v3539 = vld [vmem:[#allocation2 + $0x18] sm:$0xff]
    %v3540 = vld [vmem:[#allocation5] sm:$0xff]
    %v3541 = vld [vmem:[#allocation5 + $0x8] sm:$0xff]
    %v3542 = vld [vmem:[#allocation5 + $0x10] sm:$0xff]
    %v3543 = vld [vmem:[#allocation5 + $0x18] sm:$0xff]
    %v3544 = vld [vmem:[#allocation5 + $0x20] sm:$0xff]
    %v3545 = vld [vmem:[#allocation5 + $0x28] sm:$0xff]
    %v3546 = vld [vmem:[#allocation5 + $0x30] sm:$0xff]
    %v3547 = vld [vmem:[#allocation5 + $0x38] sm:$0xff]
    %v3548 = vld [vmem:[#allocation5 + $0x40] sm:$0xff]
    %v3549 = vld [vmem:[#allocation5 + $0x48] sm:$0xff]
    %v3550 = vld [vmem:[#allocation5 + $0x50] sm:$0xff]
    %v3551 = vld [vmem:[#allocation5 + $0x58] sm:$0xff]
    %v3552 = vld [vmem:[#allocation5 + $0x60] sm:$0xff]
    %v3553 = vld [vmem:[#allocation5 + $0x68] sm:$0xff]
    %v3554 = vld [vmem:[#allocation5 + $0x70] sm:$0xff]
    %v3555 = vld [vmem:[#allocation5 + $0x78] sm:$0xff]
    %v3556 = vld [vmem:[#allocation5 + $0x80] sm:$0xff]
    %v3557 = vld [vmem:[#allocation5 + $0x88] sm:$0xff]
    %v3558 = vld [vmem:[#allocation5 + $0x90] sm:$0xff]
    %v3559 = vld [vmem:[#allocation5 + $0x98] sm:$0xff]
    %v3560 = vld [vmem:[#allocation5 + $0xa0] sm:$0xff]
    %v3561 = vld [vmem:[#allocation5 + $0xa8] sm:$0xff]
    %v3562 = vld [vmem:[#allocation5 + $0xb0] sm:$0xff]
    %v3563 = vld [vmem:[#allocation5 + $0xb8] sm:$0xff]
    %v3564 = vld [vmem:[#allocation5 + $0xc0] sm:$0xff]
    %v3565 = vld [vmem:[#allocation5 + $0xc8] sm:$0xff]
    %v3566 = vld [vmem:[#allocation5 + $0xd0] sm:$0xff]
    %v3567 = vld [vmem:[#allocation5 + $0xd8] sm:$0xff]
    %v3568 = vld [vmem:[#allocation5 + $0xe0] sm:$0xff]
    %v3569 = vld [vmem:[#allocation5 + $0xe8] sm:$0xff]
    %v3570 = vld [vmem:[#allocation5 + $0xf0] sm:$0xff]
    %v3571 = vld [vmem:[#allocation5 + $0xf8] sm:$0xff]
    %3572 = vmatprep.subr.bf16.mxu0 %v3541
    %3573 = vmatpush1.bf16.msra.mxu0 %v3540
    %3574 = vmatprep.subr.bf16.mxu0 %v3545
    %3575 = vmatpush1.bf16.msra.mxu0 %v3544
    %3576 = vmatprep.subr.bf16.mxu0 %v3549
    %3577 = vmatpush1.bf16.msra.mxu0 %v3548
    %3578 = vmatprep.subr.bf16.mxu0 %v3553
    %3579 = vmatpush1.bf16.msra.mxu0 %v3552
    %3580 = vmatprep.subr.bf16.mxu0 %v3557
    %3581 = vmatpush1.bf16.msra.mxu0 %v3556
    %3582 = vmatprep.subr.bf16.mxu0 %v3561
    %3583 = vmatpush1.bf16.msra.mxu0 %v3560
    %3584 = vmatprep.subr.bf16.mxu0 %v3565
    %3585 = vmatpush1.bf16.msra.mxu0 %v3564
    %3586 = vmatprep.subr.bf16.mxu0 %v3569
    %3587 = vmatpush1.bf16.msra.mxu0 %v3568
    %3588 = vmatprep.subr.bf16.mxu0 0
    %3589 = vmatpush1.bf16.msra.mxu0 0
    %3590 = vmatprep.subr.bf16.mxu0 0
    %3591 = vmatpush1.bf16.msra.mxu0 0
    %3592 = vmatprep.subr.bf16.mxu0 0
    %3593 = vmatpush1.bf16.msra.mxu0 0
    %3594 = vmatprep.subr.bf16.mxu0 0
    %3595 = vmatpush1.bf16.msra.mxu0 0
    %3596 = vmatprep.subr.bf16.mxu0 0
    %3597 = vmatpush1.bf16.msra.mxu0 0
    %3598 = vmatprep.subr.bf16.mxu0 0
    %3599 = vmatpush1.bf16.msra.mxu0 0
    %3600 = vmatprep.subr.bf16.mxu0 0
    %3601 = vmatpush1.bf16.msra.mxu0 0
    %3602 = vmatprep.subr.bf16.mxu0 0
    %3603 = vmatpush1.bf16.msra.mxu0 0
    %3604 = vmatprep.mubr.bf16.mxu0 0
    %3605 = vmatmul.mubr.bf16.gmra.mrb[0].mxu0 0
    %v3606 = vpop.f32.mrb[0].mxu0
    %v3607 = vadd.f32 0.0, %v3606
    %v3608 = vpop.f32.mrb[0].mxu0
    %v3609 = vadd.f32 0.0, %v3608
    %v3610 = vpop.f32.mrb[0].mxu0
    %v3611 = vpop.f32.mrb[0].mxu0
    %3612 = vdwg.mxu0
    %3613 = vmatprep.subr.bf16.mxu0 %v3543
    %3614 = vmatpush1.bf16.msra.mxu0 %v3542
    %3615 = vmatprep.subr.bf16.mxu0 %v3547
    %3616 = vmatpush1.bf16.msra.mxu0 %v3546
    %3617 = vmatprep.subr.bf16.mxu0 %v3551
    %3618 = vmatpush1.bf16.msra.mxu0 %v3550
    %3619 = vmatprep.subr.bf16.mxu0 %v3555
    %3620 = vmatpush1.bf16.msra.mxu0 %v3554
    %3621 = vmatprep.subr.bf16.mxu0 %v3559
    %3622 = vmatpush1.bf16.msra.mxu0 %v3558
    %3623 = vmatprep.subr.bf16.mxu0 %v3563
    %3624 = vmatpush1.bf16.msra.mxu0 %v3562
    %3625 = vmatprep.subr.bf16.mxu0 %v3567
    %3626 = vmatpush1.bf16.msra.mxu0 %v3566
    %3627 = vmatprep.subr.bf16.mxu0 %v3571
    %3628 = vmatpush1.bf16.msra.mxu0 %v3570
    %3629 = vmatprep.subr.bf16.mxu0 0
    %3630 = vmatpush1.bf16.msra.mxu0 0
    %3631 = vmatprep.subr.bf16.mxu0 0
    %3632 = vmatpush1.bf16.msra.mxu0 0
    %3633 = vmatprep.subr.bf16.mxu0 0
    %3634 = vmatpush1.bf16.msra.mxu0 0
    %3635 = vmatprep.subr.bf16.mxu0 0
    %3636 = vmatpush1.bf16.msra.mxu0 0
    %3637 = vmatprep.subr.bf16.mxu0 0
    %3638 = vmatpush1.bf16.msra.mxu0 0
    %3639 = vmatprep.subr.bf16.mxu0 0
    %3640 = vmatpush1.bf16.msra.mxu0 0
    %3641 = vmatprep.subr.bf16.mxu0 0
    %3642 = vmatpush1.bf16.msra.mxu0 0
    %3643 = vmatprep.subr.bf16.mxu0 0
    %3644 = vmatpush1.bf16.msra.mxu0 0
    %3645 = vmatprep.mubr.bf16.mxu0 0
    %3646 = vmatmul.mubr.bf16.gmra.mrb[0].mxu0 0
    %v3647 = vpop.f32.mrb[0].mxu0
    %v3648 = vadd.f32 0.0, %v3647
    %v3649 = vpop.f32.mrb[0].mxu0
    %v3650 = vadd.f32 0.0, %v3649
    %v3651 = vpop.f32.mrb[0].mxu0
    %v3652 = vpop.f32.mrb[0].mxu0
    %3653 = vdwg.mxu0
    %v3654 = vadd.f32 %v3536, %v3607
    %v3655 = vadd.f32 %v3537, %v3609
    %v3656 = vadd.f32 %v3538, %v3648
    %v3657 = vadd.f32 %v3539, %v3650
    %v3658 = vxor.u32 %v3654, 2147483648
    %v3659 = vxor.u32 %v3655, 2147483648
    %v3660 = vxor.u32 %v3656, 2147483648
    %v3661 = vmul.f32 %v3658, 1.442695
    %v3662 = vpow.pop %v3661
    %v3663 = vmul.f32 %v3659, 1.442695
    %v3664 = vpow.pop %v3663
    %v3665 = vmul.f32 %v3660, 1.442695
    %v3666 = vpow.pop %v3665
    %v3667 = vadd.f32 %v3662, 1.0
    %v3668 = vadd.f32 %v3664, 1.0
    %v3669 = vadd.f32 %v3666, 1.0
    %v3670 = vrcp.pop %v3667
    %v3671 = vmul.f32 1.0, %v3670
    %v3672 = vrcp.pop %v3668
    %v3673 = vmul.f32 1.0, %v3672
    %v3674 = vrcp.pop %v3669
    %v3675 = vmul.f32 1.0, %v3674
    %v3676 = vtanh.pop %v3657
    %v3677 = vmul.f32 %v3673, 0.0
    %v3678 = vmul.f32 %v3671, %v3676
    %v3679 = vadd.f32 %v3677, %v3678
    %v3680 = vtanh.pop %v3679
    %v3681 = vmul.f32 %v3675, %v3680
    %v3682 = vpack.c.bf16 %v3681, %v3681
    %3683 = vst [vmem:[#allocation3] sm:$0xf] %v3682
    %v3684 = vld [vmem:[#allocation2 + $0x20] sm:$0xff]
    %v3685 = vld [vmem:[#allocation2 + $0x28] sm:$0xff]
    %v3686 = vld [vmem:[#allocation2 + $0x30] sm:$0xff]
    %v3687 = vld [vmem:[#allocation2 + $0x38] sm:$0xff]
    %v3688 = vld [vmem:[#allocation5] sm:$0xff]
    %v3689 = vld [vmem:[#allocation5 + $0x8] sm:$0xff]
    %v3690 = vld [vmem:[#allocation5 + $0x10] sm:$0xff]
    %v3691 = vld [vmem:[#allocation5 + $0x18] sm:$0xff]
    %v3692 = vld [vmem:[#allocation5 + $0x20] sm:$0xff]
    %v3693 = vld [vmem:[#allocation5 + $0x28] sm:$0xff]
    %v3694 = vld [vmem:[#allocation5 + $0x30] sm:$0xff]
    %v3695 = vld [vmem:[#allocation5 + $0x38] sm:$0xff]
    %v3696 = vld [vmem:[#allocation5 + $0x40] sm:$0xff]
    %v3697 = vld [vmem:[#allocation5 + $0x48] sm:$0xff]
    %v3698 = vld [vmem:[#allocation5 + $0x50] sm:$0xff]
    %v3699 = vld [vmem:[#allocation5 + $0x58] sm:$0xff]
    %v3700 = vld [vmem:[#allocation5 + $0x60] sm:$0xff]
    %v3701 = vld [vmem:[#allocation5 + $0x68] sm:$0xff]
    %v3702 = vld [vmem:[#allocation5 + $0x70] sm:$0xff]
    %v3703 = vld [vmem:[#allocation5 + $0x78] sm:$0xff]
    %v3704 = vld [vmem:[#allocation5 + $0x80] sm:$0xff]
    %v3705 = vld [vmem:[#allocation5 + $0x88] sm:$0xff]
    %v3706 = vld [vmem:[#allocation5 + $0x90] sm:$0xff]
    %v3707 = vld [vmem:[#allocation5 + $0x98] sm:$0xff]
    %v3708 = vld [vmem:[#allocation5 + $0xa0] sm:$0xff]
    %v3709 = vld [vmem:[#allocation5 + $0xa8] sm:$0xff]
    %v3710 = vld [vmem:[#allocation5 + $0xb0] sm:$0xff]
    %v3711 = vld [vmem:[#allocation5 + $0xb8] sm:$0xff]
    %v3712 = vld [vmem:[#allocation5 + $0xc0] sm:$0xff]
    %v3713 = vld [vmem:[#allocation5 + $0xc8] sm:$0xff]
    %v3714 = vld [vmem:[#allocation5 + $0xd0] sm:$0xff]
    %v3715 = vld [vmem:[#allocation5 + $0xd8] sm:$0xff]
    %v3716 = vld [vmem:[#allocation5 + $0xe0] sm:$0xff]
    %v3717 = vld [vmem:[#allocation5 + $0xe8] sm:$0xff]
    %v3718 = vld [vmem:[#allocation5 + $0xf0] sm:$0xff]
    %v3719 = vld [vmem:[#allocation5 + $0xf8] sm:$0xff]
    %3720 = vmatprep.subr.bf16.mxu0 %v3689
    %3721 = vmatpush1.bf16.msra.mxu0 %v3688
    %3722 = vmatprep.subr.bf16.mxu0 %v3693
    %3723 = vmatpush1.bf16.msra.mxu0 %v3692
    %3724 = vmatprep.subr.bf16.mxu0 %v3697
    %3725 = vmatpush1.bf16.msra.mxu0 %v3696
    %3726 = vmatprep.subr.bf16.mxu0 %v3701
    %3727 = vmatpush1.bf16.msra.mxu0 %v3700
    %3728 = vmatprep.subr.bf16.mxu0 %v3705
    %3729 = vmatpush1.bf16.msra.mxu0 %v3704
    %3730 = vmatprep.subr.bf16.mxu0 %v3709
    %3731 = vmatpush1.bf16.msra.mxu0 %v3708
    %3732 = vmatprep.subr.bf16.mxu0 %v3713
    %3733 = vmatpush1.bf16.msra.mxu0 %v3712
    %3734 = vmatprep.subr.bf16.mxu0 %v3717
    %3735 = vmatpush1.bf16.msra.mxu0 %v3716
    %3736 = vmatprep.subr.bf16.mxu0 0
    %3737 = vmatpush1.bf16.msra.mxu0 0
    %3738 = vmatprep.subr.bf16.mxu0 0
    %3739 = vmatpush1.bf16.msra.mxu0 0
    %3740 = vmatprep.subr.bf16.mxu0 0
    %3741 = vmatpush1.bf16.msra.mxu0 0
    %3742 = vmatprep.subr.bf16.mxu0 0
    %3743 = vmatpush1.bf16.msra.mxu0 0
    %3744 = vmatprep.subr.bf16.mxu0 0
    %3745 = vmatpush1.bf16.msra.mxu0 0
    %3746 = vmatprep.subr.bf16.mxu0 0
    %3747 = vmatpush1.bf16.msra.mxu0 0
    %3748 = vmatprep.subr.bf16.mxu0 0
    %3749 = vmatpush1.bf16.msra.mxu0 0
    %3750 = vmatprep.subr.bf16.mxu0 0
    %3751 = vmatpush1.bf16.msra.mxu0 0
    %3752 = vmatprep.mubr.bf16.mxu0 0
    %3753 = vmatmul.mubr.bf16.gmra.mrb[0].mxu0 %v3682
    %v3754 = vpop.f32.mrb[0].mxu0
    %v3755 = vadd.f32 0.0, %v3754
    %v3756 = vpop.f32.mrb[0].mxu0
    %v3757 = vadd.f32 0.0, %v3756
    %v3758 = vpop.f32.mrb[0].mxu0
    %v3759 = vpop.f32.mrb[0].mxu0
    %3760 = vdwg.mxu0
    %3761 = vmatprep.subr.bf16.mxu0 %v3691
    %3762 = vmatpush1.bf16.msra.mxu0 %v3690
    %3763 = vmatprep.subr.bf16.mxu0 %v3695
    %3764 = vmatpush1.bf16.msra.mxu0 %v3694
    %3765 = vmatprep.subr.bf16.mxu0 %v3699
    %3766 = vmatpush1.bf16.msra.mxu0 %v3698
    %3767 = vmatprep.subr.bf16.mxu0 %v3703
    %3768 = vmatpush1.bf16.msra.mxu0 %v3702
    %3769 = vmatprep.subr.bf16.mxu0 %v3707
    %3770 = vmatpush1.bf16.msra.mxu0 %v3706
    %3771 = vmatprep.subr.bf16.mxu0 %v3711
    %3772 = vmatpush1.bf16.msra.mxu0 %v3710
    %3773 = vmatprep.subr.bf16.mxu0 %v3715
    %3774 = vmatpush1.bf16.msra.mxu0 %v3714
    %3775 = vmatprep.subr.bf16.mxu0 %v3719
    %3776 = vmatpush1.bf16.msra.mxu0 %v3718
    %3777 = vmatprep.subr.bf16.mxu0 0
    %3778 = vmatpush1.bf16.msra.mxu0 0
    %3779 = vmatprep.subr.bf16.mxu0 0
    %3780 = vmatpush1.bf16.msra.mxu0 0
    %3781 = vmatprep.subr.bf16.mxu0 0
    %3782 = vmatpush1.bf16.msra.mxu0 0
    %3783 = vmatprep.subr.bf16.mxu0 0
    %3784 = vmatpush1.bf16.msra.mxu0 0
    %3785 = vmatprep.subr.bf16.mxu0 0
    %3786 = vmatpush1.bf16.msra.mxu0 0
    %3787 = vmatprep.subr.bf16.mxu0 0
    %3788 = vmatpush1.bf16.msra.mxu0 0
    %3789 = vmatprep.subr.bf16.mxu0 0
    %3790 = vmatpush1.bf16.msra.mxu0 0
    %3791 = vmatprep.subr.bf16.mxu0 0
    %3792 = vmatpush1.bf16.msra.mxu0 0
    %3793 = vmatprep.mubr.bf16.mxu0 0
    %3794 = vmatmul.mubr.bf16.gmra.mrb[0].mxu0 %v3682
    %v3795 = vpop.f32.mrb[0].mxu0
    %v3796 = vadd.f32 0.0, %v3795
    %v3797 = vpop.f32.mrb[0].mxu0
    %v3798 = vadd.f32 0.0, %v3797
    %v3799 = vpop.f32.mrb[0].mxu0
    %v3800 = vpop.f32.mrb[0].mxu0
    %3801 = vdwg.mxu0
    %v3802 = vadd.f32 %v3684, %v3755
    %v3803 = vadd.f32 %v3685, %v3757
    %v3804 = vadd.f32 %v3686, %v3796
    %v3805 = vadd.f32 %v3687, %v3798
    %v3806 = vxor.u32 %v3802, 2147483648
    %v3807 = vxor.u32 %v3803, 2147483648
    %v3808 = vxor.u32 %v3804, 2147483648
    %v3809 = vmul.f32 %v3806, 1.442695
    %v3810 = vpow.pop %v3809
    %v3811 = vmul.f32 %v3807, 1.442695
    %v3812 = vpow.pop %v3811
    %v3813 = vmul.f32 %v3808, 1.442695
    %v3814 = vpow.pop %v3813
    %v3815 = vadd.f32 %v3810, 1.0
    %v3816 = vadd.f32 %v3812, 1.0
    %v3817 = vadd.f32 %v3814, 1.0
    %v3818 = vrcp.pop %v3815
    %v3819 = vmul.f32 1.0, %v3818
    %v3820 = vrcp.pop %v3816
    %v3821 = vmul.f32 1.0, %v3820
    %v3822 = vrcp.pop %v3817
    %v3823 = vmul.f32 1.0, %v3822
    %v3824 = vtanh.pop %v3805
    %v3825 = vmul.f32 %v3821, %v3679
    %v3826 = vmul.f32 %v3819, %v3824
    %v3827 = vadd.f32 %v3825, %v3826
    %v3828 = vtanh.pop %v3827
    %v3829 = vmul.f32 %v3823, %v3828
    %v3830 = vpack.c.bf16 %v3829, %v3829
    %v3832 = vrot.slane %v3830, 4
    %3834 = vst [vmem:[#allocation3] sm:$0xf0] %v3832
    %v3835 = vld [vmem:[#allocation2 + $0x40] sm:$0xff]
    %v3836 = vld [vmem:[#allocation2 + $0x48] sm:$0xff]
    %v3837 = vld [vmem:[#allocation2 + $0x50] sm:$0xff]
    %v3838 = vld [vmem:[#allocation2 + $0x58] sm:$0xff]
    %v3839 = vld [vmem:[#allocation5] sm:$0xff]
    %v3840 = vld [vmem:[#allocation5 + $0x8] sm:$0xff]
    %v3841 = vld [vmem:[#allocation5 + $0x10] sm:$0xff]
    %v3842 = vld [vmem:[#allocation5 + $0x18] sm:$0xff]
    %v3843 = vld [vmem:[#allocation5 + $0x20] sm:$0xff]
    %v3844 = vld [vmem:[#allocation5 + $0x28] sm:$0xff]
    %v3845 = vld [vmem:[#allocation5 + $0x30] sm:$0xff]
    %v3846 = vld [vmem:[#allocation5 + $0x38] sm:$0xff]
    %v3847 = vld [vmem:[#allocation5 + $0x40] sm:$0xff]
    %v3848 = vld [vmem:[#allocation5 + $0x48] sm:$0xff]
    %v3849 = vld [vmem:[#allocation5 + $0x50] sm:$0xff]
    %v3850 = vld [vmem:[#allocation5 + $0x58] sm:$0xff]
    %v3851 = vld [vmem:[#allocation5 + $0x60] sm:$0xff]
    %v3852 = vld [vmem:[#allocation5 + $0x68] sm:$0xff]
    %v3853 = vld [vmem:[#allocation5 + $0x70] sm:$0xff]
    %v3854 = vld [vmem:[#allocation5 + $0x78] sm:$0xff]
    %v3855 = vld [vmem:[#allocation5 + $0x80] sm:$0xff]
    %v3856 = vld [vmem:[#allocation5 + $0x88] sm:$0xff]
    %v3857 = vld [vmem:[#allocation5 + $0x90] sm:$0xff]
    %v3858 = vld [vmem:[#allocation5 + $0x98] sm:$0xff]
    %v3859 = vld [vmem:[#allocation5 + $0xa0] sm:$0xff]
    %v3860 = vld [vmem:[#allocation5 + $0xa8] sm:$0xff]
    %v3861 = vld [vmem:[#allocation5 + $0xb0] sm:$0xff]
    %v3862 = vld [vmem:[#allocation5 + $0xb8] sm:$0xff]
    %v3863 = vld [vmem:[#allocation5 + $0xc0] sm:$0xff]
    %v3864 = vld [vmem:[#allocation5 + $0xc8] sm:$0xff]
    %v3865 = vld [vmem:[#allocation5 + $0xd0] sm:$0xff]
    %v3866 = vld [vmem:[#allocation5 + $0xd8] sm:$0xff]
    %v3867 = vld [vmem:[#allocation5 + $0xe0] sm:$0xff]
    %v3868 = vld [vmem:[#allocation5 + $0xe8] sm:$0xff]
    %v3869 = vld [vmem:[#allocation5 + $0xf0] sm:$0xff]
    %v3870 = vld [vmem:[#allocation5 + $0xf8] sm:$0xff]
    %3871 = vmatprep.subr.bf16.mxu0 %v3840
    %3872 = vmatpush1.bf16.msra.mxu0 %v3839
    %3873 = vmatprep.subr.bf16.mxu0 %v3844
    %3874 = vmatpush1.bf16.msra.mxu0 %v3843
    %3875 = vmatprep.subr.bf16.mxu0 %v3848
    %3876 = vmatpush1.bf16.msra.mxu0 %v3847
    %3877 = vmatprep.subr.bf16.mxu0 %v3852
    %3878 = vmatpush1.bf16.msra.mxu0 %v3851
    %3879 = vmatprep.subr.bf16.mxu0 %v3856
    %3880 = vmatpush1.bf16.msra.mxu0 %v3855
    %3881 = vmatprep.subr.bf16.mxu0 %v3860
    %3882 = vmatpush1.bf16.msra.mxu0 %v3859
    %3883 = vmatprep.subr.bf16.mxu0 %v3864
    %3884 = vmatpush1.bf16.msra.mxu0 %v3863
    %3885 = vmatprep.subr.bf16.mxu0 %v3868
    %3886 = vmatpush1.bf16.msra.mxu0 %v3867
    %3887 = vmatprep.subr.bf16.mxu0 0
    %3888 = vmatpush1.bf16.msra.mxu0 0
    %3889 = vmatprep.subr.bf16.mxu0 0
    %3890 = vmatpush1.bf16.msra.mxu0 0
    %3891 = vmatprep.subr.bf16.mxu0 0
    %3892 = vmatpush1.bf16.msra.mxu0 0
    %3893 = vmatprep.subr.bf16.mxu0 0
    %3894 = vmatpush1.bf16.msra.mxu0 0
    %3895 = vmatprep.subr.bf16.mxu0 0
    %3896 = vmatpush1.bf16.msra.mxu0 0
    %3897 = vmatprep.subr.bf16.mxu0 0
    %3898 = vmatpush1.bf16.msra.mxu0 0
    %3899 = vmatprep.subr.bf16.mxu0 0
    %3900 = vmatpush1.bf16.msra.mxu0 0
    %3901 = vmatprep.subr.bf16.mxu0 0
    %3902 = vmatpush1.bf16.msra.mxu0 0
    %3903 = vmatprep.mubr.bf16.mxu0 0
    %3904 = vmatmul.mubr.bf16.gmra.mrb[0].mxu0 %v3830
    %v3905 = vpop.f32.mrb[0].mxu0
    %v3906 = vadd.f32 0.0, %v3905
    %v3907 = vpop.f32.mrb[0].mxu0
    %v3908 = vadd.f32 0.0, %v3907
    %v3909 = vpop.f32.mrb[0].mxu0
    %v3910 = vpop.f32.mrb[0].mxu0
    %3911 = vdwg.mxu0
    %3912 = vmatprep.subr.bf16.mxu0 %v3842
    %3913 = vmatpush1.bf16.msra.mxu0 %v3841
    %3914 = vmatprep.subr.bf16.mxu0 %v3846
    %3915 = vmatpush1.bf16.msra.mxu0 %v3845
    %3916 = vmatprep.subr.bf16.mxu0 %v3850
    %3917 = vmatpush1.bf16.msra.mxu0 %v3849
    %3918 = vmatprep.subr.bf16.mxu0 %v3854
    %3919 = vmatpush1.bf16.msra.mxu0 %v3853
    %3920 = vmatprep.subr.bf16.mxu0 %v3858
    %3921 = vmatpush1.bf16.msra.mxu0 %v3857
    %3922 = vmatprep.subr.bf16.mxu0 %v3862
    %3923 = vmatpush1.bf16.msra.mxu0 %v3861
    %3924 = vmatprep.subr.bf16.mxu0 %v3866
    %3925 = vmatpush1.bf16.msra.mxu0 %v3865
    %3926 = vmatprep.subr.bf16.mxu0 %v3870
    %3927 = vmatpush1.bf16.msra.mxu0 %v3869
    %3928 = vmatprep.subr.bf16.mxu0 0
    %3929 = vmatpush1.bf16.msra.mxu0 0
    %3930 = vmatprep.subr.bf16.mxu0 0
    %3931 = vmatpush1.bf16.msra.mxu0 0
    %3932 = vmatprep.subr.bf16.mxu0 0
    %3933 = vmatpush1.bf16.msra.mxu0 0
    %3934 = vmatprep.subr.bf16.mxu0 0
    %3935 = vmatpush1.bf16.msra.mxu0 0
    %3936 = vmatprep.subr.bf16.mxu0 0
    %3937 = vmatpush1.bf16.msra.mxu0 0
    %3938 = vmatprep.subr.bf16.mxu0 0
    %3939 = vmatpush1.bf16.msra.mxu0 0
    %3940 = vmatprep.subr.bf16.mxu0 0
    %3941 = vmatpush1.bf16.msra.mxu0 0
    %3942 = vmatprep.subr.bf16.mxu0 0
    %3943 = vmatpush1.bf16.msra.mxu0 0
    %3944 = vmatprep.mubr.bf16.mxu0 0
    %3945 = vmatmul.mubr.bf16.gmra.mrb[0].mxu0 %v3830
    %v3946 = vpop.f32.mrb[0].mxu0
    %v3947 = vadd.f32 0.0, %v3946
    %v3948 = vpop.f32.mrb[0].mxu0
    %v3949 = vadd.f32 0.0, %v3948
    %v3950 = vpop.f32.mrb[0].mxu0
    %v3951 = vpop.f32.mrb[0].mxu0
    %3952 = vdwg.mxu0
    %v3953 = vadd.f32 %v3835, %v3906
    %v3954 = vadd.f32 %v3836, %v3908
    %v3955 = vadd.f32 %v3837, %v3947
    %v3956 = vadd.f32 %v3838, %v3949
    %v3957 = vxor.u32 %v3953, 2147483648
    %v3958 = vxor.u32 %v3954, 2147483648
    %v3959 = vxor.u32 %v3955, 2147483648
    %v3960 = vmul.f32 %v3957, 1.442695
    %v3961 = vpow.pop %v3960
    %v3962 = vmul.f32 %v3958, 1.442695
    %v3963 = vpow.pop %v3962
    %v3964 = vmul.f32 %v3959, 1.442695
    %v3965 = vpow.pop %v3964
    %v3966 = vadd.f32 %v3961, 1.0
    %v3967 = vadd.f32 %v3963, 1.0
    %v3968 = vadd.f32 %v3965, 1.0
    %v3969 = vrcp.pop %v3966
    %v3970 = vmul.f32 1.0, %v3969
    %v3971 = vrcp.pop %v3967
    %v3972 = vmul.f32 1.0, %v3971
    %v3973 = vrcp.pop %v3968
    %v3974 = vmul.f32 1.0, %v3973
    %v3975 = vtanh.pop %v3956
    %v3976 = vmul.f32 %v3972, %v3827
    %v3977 = vmul.f32 %v3970, %v3975
    %v3978 = vadd.f32 %v3976, %v3977
    %v3979 = vtanh.pop %v3978
    %v3980 = vmul.f32 %v3974, %v3979
    %v3981 = vpack.c.bf16 %v3980, %v3980
    %3982 = vst [vmem:[#allocation3 + $0x8] sm:$0xf] %v3981
    %v3983 = vld [vmem:[#allocation2 + $0x60] sm:$0xff]
    %v3984 = vld [vmem:[#allocation2 + $0x68] sm:$0xff]
    %v3985 = vld [vmem:[#allocation2 + $0x70] sm:$0xff]
    %v3986 = vld [vmem:[#allocation2 + $0x78] sm:$0xff]
    %v3987 = vld [vmem:[#allocation5] sm:$0xff]
    %v3988 = vld [vmem:[#allocation5 + $0x8] sm:$0xff]
    %v3989 = vld [vmem:[#allocation5 + $0x10] sm:$0xff]
    %v3990 = vld [vmem:[#allocation5 + $0x18] sm:$0xff]
    %v3991 = vld [vmem:[#allocation5 + $0x20] sm:$0xff]
    %v3992 = vld [vmem:[#allocation5 + $0x28] sm:$0xff]
    %v3993 = vld [vmem:[#allocation5 + $0x30] sm:$0xff]
    %v3994 = vld [vmem:[#allocation5 + $0x38] sm:$0xff]
    %v3995 = vld [vmem:[#allocation5 + $0x40] sm:$0xff]
    %v3996 = vld [vmem:[#allocation5 + $0x48] sm:$0xff]
    %v3997 = vld [vmem:[#allocation5 + $0x50] sm:$0xff]
    %v3998 = vld [vmem:[#allocation5 + $0x58] sm:$0xff]
    %v3999 = vld [vmem:[#allocation5 + $0x60] sm:$0xff]
    %v4000 = vld [vmem:[#allocation5 + $0x68] sm:$0xff]
    %v4001 = vld [vmem:[#allocation5 + $0x70] sm:$0xff]
    %v4002 = vld [vmem:[#allocation5 + $0x78] sm:$0xff]
    %v4003 = vld [vmem:[#allocation5 + $0x80] sm:$0xff]
    %v4004 = vld [vmem:[#allocation5 + $0x88] sm:$0xff]
    %v4005 = vld [vmem:[#allocation5 + $0x90] sm:$0xff]
    %v4006 = vld [vmem:[#allocation5 + $0x98] sm:$0xff]
    %v4007 = vld [vmem:[#allocation5 + $0xa0] sm:$0xff]
    %v4008 = vld [vmem:[#allocation5 + $0xa8] sm:$0xff]
    %v4009 = vld [vmem:[#allocation5 + $0xb0] sm:$0xff]
    %v4010 = vld [vmem:[#allocation5 + $0xb8] sm:$0xff]
    %v4011 = vld [vmem:[#allocation5 + $0xc0] sm:$0xff]
    %v4012 = vld [vmem:[#allocation5 + $0xc8] sm:$0xff]
    %v4013 = vld [vmem:[#allocation5 + $0xd0] sm:$0xff]
    %v4014 = vld [vmem:[#allocation5 + $0xd8] sm:$0xff]
    %v4015 = vld [vmem:[#allocation5 + $0xe0] sm:$0xff]
    %v4016 = vld [vmem:[#allocation5 + $0xe8] sm:$0xff]
    %v4017 = vld [vmem:[#allocation5 + $0xf0] sm:$0xff]
    %v4018 = vld [vmem:[#allocation5 + $0xf8] sm:$0xff]
    %4019 = vmatprep.subr.bf16.mxu0 %v3988
    %4020 = vmatpush1.bf16.msra.mxu0 %v3987
    %4021 = vmatprep.subr.bf16.mxu0 %v3992
    %4022 = vmatpush1.bf16.msra.mxu0 %v3991
    %4023 = vmatprep.subr.bf16.mxu0 %v3996
    %4024 = vmatpush1.bf16.msra.mxu0 %v3995
    %4025 = vmatprep.subr.bf16.mxu0 %v4000
    %4026 = vmatpush1.bf16.msra.mxu0 %v3999
    %4027 = vmatprep.subr.bf16.mxu0 %v4004
    %4028 = vmatpush1.bf16.msra.mxu0 %v4003
    %4029 = vmatprep.subr.bf16.mxu0 %v4008
    %4030 = vmatpush1.bf16.msra.mxu0 %v4007
    %4031 = vmatprep.subr.bf16.mxu0 %v4012
    %4032 = vmatpush1.bf16.msra.mxu0 %v4011
    %4033 = vmatprep.subr.bf16.mxu0 %v4016
    %4034 = vmatpush1.bf16.msra.mxu0 %v4015
    %4035 = vmatprep.subr.bf16.mxu0 0
    %4036 = vmatpush1.bf16.msra.mxu0 0
    %4037 = vmatprep.subr.bf16.mxu0 0
    %4038 = vmatpush1.bf16.msra.mxu0 0
    %4039 = vmatprep.subr.bf16.mxu0 0
    %4040 = vmatpush1.bf16.msra.mxu0 0
    %4041 = vmatprep.subr.bf16.mxu0 0
    %4042 = vmatpush1.bf16.msra.mxu0 0
    %4043 = vmatprep.subr.bf16.mxu0 0
    %4044 = vmatpush1.bf16.msra.mxu0 0
    %4045 = vmatprep.subr.bf16.mxu0 0
    %4046 = vmatpush1.bf16.msra.mxu0 0
    %4047 = vmatprep.subr.bf16.mxu0 0
    %4048 = vmatpush1.bf16.msra.mxu0 0
    %4049 = vmatprep.subr.bf16.mxu0 0
    %4050 = vmatpush1.bf16.msra.mxu0 0
    %4051 = vmatprep.mubr.bf16.mxu0 0
    %4052 = vmatmul.mubr.bf16.gmra.mrb[0].mxu0 %v3981
    %v4053 = vpop.f32.mrb[0].mxu0
    %v4054 = vadd.f32 0.0, %v4053
    %v4055 = vpop.f32.mrb[0].mxu0
    %v4056 = vadd.f32 0.0, %v4055
    %v4057 = vpop.f32.mrb[0].mxu0
    %v4058 = vpop.f32.mrb[0].mxu0
    %4059 = vdwg.mxu0
    %4060 = vmatprep.subr.bf16.mxu0 %v3990
    %4061 = vmatpush1.bf16.msra.mxu0 %v3989
    %4062 = vmatprep.subr.bf16.mxu0 %v3994
    %4063 = vmatpush1.bf16.msra.mxu0 %v3993
    %4064 = vmatprep.subr.bf16.mxu0 %v3998
    %4065 = vmatpush1.bf16.msra.mxu0 %v3997
    %4066 = vmatprep.subr.bf16.mxu0 %v4002
    %4067 = vmatpush1.bf16.msra.mxu0 %v4001
    %4068 = vmatprep.subr.bf16.mxu0 %v4006
    %4069 = vmatpush1.bf16.msra.mxu0 %v4005
    %4070 = vmatprep.subr.bf16.mxu0 %v4010
    %4071 = vmatpush1.bf16.msra.mxu0 %v4009
    %4072 = vmatprep.subr.bf16.mxu0 %v4014
    %4073 = vmatpush1.bf16.msra.mxu0 %v4013
    %4074 = vmatprep.subr.bf16.mxu0 %v4018
    %4075 = vmatpush1.bf16.msra.mxu0 %v4017
    %4076 = vmatprep.subr.bf16.mxu0 0
    %4077 = vmatpush1.bf16.msra.mxu0 0
    %4078 = vmatprep.subr.bf16.mxu0 0
    %4079 = vmatpush1.bf16.msra.mxu0 0
    %4080 = vmatprep.subr.bf16.mxu0 0
    %4081 = vmatpush1.bf16.msra.mxu0 0
    %4082 = vmatprep.subr.bf16.mxu0 0
    %4083 = vmatpush1.bf16.msra.mxu0 0
    %4084 = vmatprep.subr.bf16.mxu0 0
    %4085 = vmatpush1.bf16.msra.mxu0 0
    %4086 = vmatprep.subr.bf16.mxu0 0
    %4087 = vmatpush1.bf16.msra.mxu0 0
    %4088 = vmatprep.subr.bf16.mxu0 0
    %4089 = vmatpush1.bf16.msra.mxu0 0
    %4090 = vmatprep.subr.bf16.mxu0 0
    %4091 = vmatpush1.bf16.msra.mxu0 0
    %4092 = vmatprep.mubr.bf16.mxu0 0
    %4093 = vmatmul.mubr.bf16.gmra.mrb[0].mxu0 %v3981
    %v4094 = vpop.f32.mrb[0].mxu0
    %v4095 = vadd.f32 0.0, %v4094
    %v4096 = vpop.f32.mrb[0].mxu0
    %v4097 = vadd.f32 0.0, %v4096
    %v4098 = vpop.f32.mrb[0].mxu0
    %v4099 = vpop.f32.mrb[0].mxu0
    %4100 = vdwg.mxu0
    %v4101 = vadd.f32 %v3983, %v4054
    %v4102 = vadd.f32 %v3984, %v4056
    %v4103 = vadd.f32 %v3985, %v4095
    %v4104 = vadd.f32 %v3986, %v4097
    %v4105 = vxor.u32 %v4101, 2147483648
    %v4106 = vxor.u32 %v4102, 2147483648
    %v4107 = vxor.u32 %v4103, 2147483648
    %v4108 = vmul.f32 %v4105, 1.442695
    %v4109 = vpow.pop %v4108
    %v4110 = vmul.f32 %v4106, 1.442695
    %v4111 = vpow.pop %v4110
    %v4112 = vmul.f32 %v4107, 1.442695
    %v4113 = vpow.pop %v4112
    %v4114 = vadd.f32 %v4109, 1.0
    %v4115 = vadd.f32 %v4111, 1.0
    %v4116 = vadd.f32 %v4113, 1.0
    %v4117 = vrcp.pop %v4114
    %v4118 = vmul.f32 1.0, %v4117
    %v4119 = vrcp.pop %v4115
    %v4120 = vmul.f32 1.0, %v4119
    %v4121 = vrcp.pop %v4116
    %v4122 = vmul.f32 1.0, %v4121
    %v4123 = vtanh.pop %v4104
    %v4124 = vmul.f32 %v4120, %v3978
    %v4125 = vmul.f32 %v4118, %v4123
    %v4126 = vadd.f32 %v4124, %v4125
    %v4127 = vtanh.pop %v4126
    %v4128 = vmul.f32 %v4122, %v4127
    %v4129 = vpack.c.bf16 %v4128, %v4128
    %v4131 = vrot.slane %v4129, 4
    %4133 = vst [vmem:[#allocation3 + $0x8] sm:$0xf0] %v4131
    %v4134 = vld [vmem:[#allocation2 + $0x80] sm:$0xff]
    %v4135 = vld [vmem:[#allocation2 + $0x88] sm:$0xff]
    %v4136 = vld [vmem:[#allocation2 + $0x90] sm:$0xff]
    %v4137 = vld [vmem:[#allocation2 + $0x98] sm:$0xff]
    %v4138 = vld [vmem:[#allocation5] sm:$0xff]
    %v4139 = vld [vmem:[#allocation5 + $0x8] sm:$0xff]
    %v4140 = vld [vmem:[#allocation5 + $0x10] sm:$0xff]
    %v4141 = vld [vmem:[#allocation5 + $0x18] sm:$0xff]
    %v4142 = vld [vmem:[#allocation5 + $0x20] sm:$0xff]
    %v4143 = vld [vmem:[#allocation5 + $0x28] sm:$0xff]
    %v4144 = vld [vmem:[#allocation5 + $0x30] sm:$0xff]
    %v4145 = vld [vmem:[#allocation5 + $0x38] sm:$0xff]
    %v4146 = vld [vmem:[#allocation5 + $0x40] sm:$0xff]
    %v4147 = vld [vmem:[#allocation5 + $0x48] sm:$0xff]
    %v4148 = vld [vmem:[#allocation5 + $0x50] sm:$0xff]
    %v4149 = vld [vmem:[#allocation5 + $0x58] sm:$0xff]
    %v4150 = vld [vmem:[#allocation5 + $0x60] sm:$0xff]
    %v4151 = vld [vmem:[#allocation5 + $0x68] sm:$0xff]
    %v4152 = vld [vmem:[#allocation5 + $0x70] sm:$0xff]
    %v4153 = vld [vmem:[#allocation5 + $0x78] sm:$0xff]
    %v4154 = vld [vmem:[#allocation5 + $0x80] sm:$0xff]
    %v4155 = vld [vmem:[#allocation5 + $0x88] sm:$0xff]
    %v4156 = vld [vmem:[#allocation5 + $0x90] sm:$0xff]
    %v4157 = vld [vmem:[#allocation5 + $0x98] sm:$0xff]
    %v4158 = vld [vmem:[#allocation5 + $0xa0] sm:$0xff]
    %v4159 = vld [vmem:[#allocation5 + $0xa8] sm:$0xff]
    %v4160 = vld [vmem:[#allocation5 + $0xb0] sm:$0xff]
    %v4161 = vld [vmem:[#allocation5 + $0xb8] sm:$0xff]
    %v4162 = vld [vmem:[#allocation5 + $0xc0] sm:$0xff]
    %v4163 = vld [vmem:[#allocation5 + $0xc8] sm:$0xff]
    %v4164 = vld [vmem:[#allocation5 + $0xd0] sm:$0xff]
    %v4165 = vld [vmem:[#allocation5 + $0xd8] sm:$0xff]
    %v4166 = vld [vmem:[#allocation5 + $0xe0] sm:$0xff]
    %v4167 = vld [vmem:[#allocation5 + $0xe8] sm:$0xff]
    %v4168 = vld [vmem:[#allocation5 + $0xf0] sm:$0xff]
    %v4169 = vld [vmem:[#allocation5 + $0xf8] sm:$0xff]
    %4170 = vmatprep.subr.bf16.mxu0 %v4139
    %4171 = vmatpush1.bf16.msra.mxu0 %v4138
    %4172 = vmatprep.subr.bf16.mxu0 %v4143
    %4173 = vmatpush1.bf16.msra.mxu0 %v4142
    %4174 = vmatprep.subr.bf16.mxu0 %v4147
    %4175 = vmatpush1.bf16.msra.mxu0 %v4146
    %4176 = vmatprep.subr.bf16.mxu0 %v4151
    %4177 = vmatpush1.bf16.msra.mxu0 %v4150
    %4178 = vmatprep.subr.bf16.mxu0 %v4155
    %4179 = vmatpush1.bf16.msra.mxu0 %v4154
    %4180 = vmatprep.subr.bf16.mxu0 %v4159
    %4181 = vmatpush1.bf16.msra.mxu0 %v4158
    %4182 = vmatprep.subr.bf16.mxu0 %v4163
    %4183 = vmatpush1.bf16.msra.mxu0 %v4162
    %4184 = vmatprep.subr.bf16.mxu0 %v4167
    %4185 = vmatpush1.bf16.msra.mxu0 %v4166
    %4186 = vmatprep.subr.bf16.mxu0 0
    %4187 = vmatpush1.bf16.msra.mxu0 0
    %4188 = vmatprep.subr.bf16.mxu0 0
    %4189 = vmatpush1.bf16.msra.mxu0 0
    %4190 = vmatprep.subr.bf16.mxu0 0
    %4191 = vmatpush1.bf16.msra.mxu0 0
    %4192 = vmatprep.subr.bf16.mxu0 0
    %4193 = vmatpush1.bf16.msra.mxu0 0
    %4194 = vmatprep.subr.bf16.mxu0 0
    %4195 = vmatpush1.bf16.msra.mxu0 0
    %4196 = vmatprep.subr.bf16.mxu0 0
    %4197 = vmatpush1.bf16.msra.mxu0 0
    %4198 = vmatprep.subr.bf16.mxu0 0
    %4199 = vmatpush1.bf16.msra.mxu0 0
    %4200 = vmatprep.subr.bf16.mxu0 0
    %4201 = vmatpush1.bf16.msra.mxu0 0
    %4202 = vmatprep.mubr.bf16.mxu0 0
    %4203 = vmatmul.mubr.bf16.gmra.mrb[0].mxu0 %v4129
    %v4204 = vpop.f32.mrb[0].mxu0
    %v4205 = vadd.f32 0.0, %v4204
    %v4206 = vpop.f32.mrb[0].mxu0
    %v4207 = vadd.f32 0.0, %v4206
    %v4208 = vpop.f32.mrb[0].mxu0
    %v4209 = vpop.f32.mrb[0].mxu0
    %4210 = vdwg.mxu0
    %4211 = vmatprep.subr.bf16.mxu0 %v4141
    %4212 = vmatpush1.bf16.msra.mxu0 %v4140
    %4213 = vmatprep.subr.bf16.mxu0 %v4145
    %4214 = vmatpush1.bf16.msra.mxu0 %v4144
    %4215 = vmatprep.subr.bf16.mxu0 %v4149
    %4216 = vmatpush1.bf16.msra.mxu0 %v4148
    %4217 = vmatprep.subr.bf16.mxu0 %v4153
    %4218 = vmatpush1.bf16.msra.mxu0 %v4152
    %4219 = vmatprep.subr.bf16.mxu0 %v4157
    %4220 = vmatpush1.bf16.msra.mxu0 %v4156
    %4221 = vmatprep.subr.bf16.mxu0 %v4161
    %4222 = vmatpush1.bf16.msra.mxu0 %v4160
    %4223 = vmatprep.subr.bf16.mxu0 %v4165
    %4224 = vmatpush1.bf16.msra.mxu0 %v4164
    %4225 = vmatprep.subr.bf16.mxu0 %v4169
    %4226 = vmatpush1.bf16.msra.mxu0 %v4168
    %4227 = vmatprep.subr.bf16.mxu0 0
    %4228 = vmatpush1.bf16.msra.mxu0 0
    %4229 = vmatprep.subr.bf16.mxu0 0
    %4230 = vmatpush1.bf16.msra.mxu0 0
    %4231 = vmatprep.subr.bf16.mxu0 0
    %4232 = vmatpush1.bf16.msra.mxu0 0
    %4233 = vmatprep.subr.bf16.mxu0 0
    %4234 = vmatpush1.bf16.msra.mxu0 0
    %4235 = vmatprep.subr.bf16.mxu0 0
    %4236 = vmatpush1.bf16.msra.mxu0 0
    %4237 = vmatprep.subr.bf16.mxu0 0
    %4238 = vmatpush1.bf16.msra.mxu0 0
    %4239 = vmatprep.subr.bf16.mxu0 0
    %4240 = vmatpush1.bf16.msra.mxu0 0
    %4241 = vmatprep.subr.bf16.mxu0 0
    %4242 = vmatpush1.bf16.msra.mxu0 0
    %4243 = vmatprep.mubr.bf16.mxu0 0
    %4244 = vmatmul.mubr.bf16.gmra.mrb[0].mxu0 %v4129
    %v4245 = vpop.f32.mrb[0].mxu0
    %v4246 = vadd.f32 0.0, %v4245
    %v4247 = vpop.f32.mrb[0].mxu0
    %v4248 = vadd.f32 0.0, %v4247
    %v4249 = vpop.f32.mrb[0].mxu0
    %v4250 = vpop.f32.mrb[0].mxu0
    %4251 = vdwg.mxu0
    %v4252 = vadd.f32 %v4134, %v4205
    %v4253 = vadd.f32 %v4135, %v4207
    %v4254 = vadd.f32 %v4136, %v4246
    %v4255 = vadd.f32 %v4137, %v4248
    %v4256 = vxor.u32 %v4252, 2147483648
    %v4257 = vxor.u32 %v4253, 2147483648
    %v4258 = vxor.u32 %v4254, 2147483648
    %v4259 = vmul.f32 %v4256, 1.442695
    %v4260 = vpow.pop %v4259
    %v4261 = vmul.f32 %v4257, 1.442695
    %v4262 = vpow.pop %v4261
    %v4263 = vmul.f32 %v4258, 1.442695
    %v4264 = vpow.pop %v4263
    %v4265 = vadd.f32 %v4260, 1.0
    %v4266 = vadd.f32 %v4262, 1.0
    %v4267 = vadd.f32 %v4264, 1.0
    %v4268 = vrcp.pop %v4265
    %v4269 = vmul.f32 1.0, %v4268
    %v4270 = vrcp.pop %v4266
    %v4271 = vmul.f32 1.0, %v4270
    %v4272 = vrcp.pop %v4267
    %v4273 = vmul.f32 1.0, %v4272
    %v4274 = vtanh.pop %v4255
    %v4275 = vmul.f32 %v4271, %v4126
    %v4276 = vmul.f32 %v4269, %v4274
    %v4277 = vadd.f32 %v4275, %v4276
    %v4278 = vtanh.pop %v4277
    %v4279 = vmul.f32 %v4273, %v4278
    %v4280 = vpack.c.bf16 %v4279, %v4279
    %4281 = vst [vmem:[#allocation3 + $0x10] sm:$0xf] %v4280
    %v4282 = vld [vmem:[#allocation2 + $0xa0] sm:$0xff]
    %v4283 = vld [vmem:[#allocation2 + $0xa8] sm:$0xff]
    %v4284 = vld [vmem:[#allocation2 + $0xb0] sm:$0xff]
    %v4285 = vld [vmem:[#allocation2 + $0xb8] sm:$0xff]
    %v4286 = vld [vmem:[#allocation5] sm:$0xff]
    %v4287 = vld [vmem:[#allocation5 + $0x8] sm:$0xff]
    %v4288 = vld [vmem:[#allocation5 + $0x10] sm:$0xff]
    %v4289 = vld [vmem:[#allocation5 + $0x18] sm:$0xff]
    %v4290 = vld [vmem:[#allocation5 + $0x20] sm:$0xff]
    %v4291 = vld [vmem:[#allocation5 + $0x28] sm:$0xff]
    %v4292 = vld [vmem:[#allocation5 + $0x30] sm:$0xff]
    %v4293 = vld [vmem:[#allocation5 + $0x38] sm:$0xff]
    %v4294 = vld [vmem:[#allocation5 + $0x40] sm:$0xff]
    %v4295 = vld [vmem:[#allocation5 + $0x48] sm:$0xff]
    %v4296 = vld [vmem:[#allocation5 + $0x50] sm:$0xff]
    %v4297 = vld [vmem:[#allocation5 + $0x58] sm:$0xff]
    %v4298 = vld [vmem:[#allocation5 + $0x60] sm:$0xff]
    %v4299 = vld [vmem:[#allocation5 + $0x68] sm:$0xff]
    %v4300 = vld [vmem:[#allocation5 + $0x70] sm:$0xff]
    %v4301 = vld [vmem:[#allocation5 + $0x78] sm:$0xff]
    %v4302 = vld [vmem:[#allocation5 + $0x80] sm:$0xff]
    %v4303 = vld [vmem:[#allocation5 + $0x88] sm:$0xff]
    %v4304 = vld [vmem:[#allocation5 + $0x90] sm:$0xff]
    %v4305 = vld [vmem:[#allocation5 + $0x98] sm:$0xff]
    %v4306 = vld [vmem:[#allocation5 + $0xa0] sm:$0xff]
    %v4307 = vld [vmem:[#allocation5 + $0xa8] sm:$0xff]
    %v4308 = vld [vmem:[#allocation5 + $0xb0] sm:$0xff]
    %v4309 = vld [vmem:[#allocation5 + $0xb8] sm:$0xff]
    %v4310 = vld [vmem:[#allocation5 + $0xc0] sm:$0xff]
    %v4311 = vld [vmem:[#allocation5 + $0xc8] sm:$0xff]
    %v4312 = vld [vmem:[#allocation5 + $0xd0] sm:$0xff]
    %v4313 = vld [vmem:[#allocation5 + $0xd8] sm:$0xff]
    %v4314 = vld [vmem:[#allocation5 + $0xe0] sm:$0xff]
    %v4315 = vld [vmem:[#allocation5 + $0xe8] sm:$0xff]
    %v4316 = vld [vmem:[#allocation5 + $0xf0] sm:$0xff]
    %v4317 = vld [vmem:[#allocation5 + $0xf8] sm:$0xff]
    %4318 = vmatprep.subr.bf16.mxu0 %v4287
    %4319 = vmatpush1.bf16.msra.mxu0 %v4286
    %4320 = vmatprep.subr.bf16.mxu0 %v4291
    %4321 = vmatpush1.bf16.msra.mxu0 %v4290
    %4322 = vmatprep.subr.bf16.mxu0 %v4295
    %4323 = vmatpush1.bf16.msra.mxu0 %v4294
    %4324 = vmatprep.subr.bf16.mxu0 %v4299
    %4325 = vmatpush1.bf16.msra.mxu0 %v4298
    %4326 = vmatprep.subr.bf16.mxu0 %v4303
    %4327 = vmatpush1.bf16.msra.mxu0 %v4302
    %4328 = vmatprep.subr.bf16.mxu0 %v4307
    %4329 = vmatpush1.bf16.msra.mxu0 %v4306
    %4330 = vmatprep.subr.bf16.mxu0 %v4311
    %4331 = vmatpush1.bf16.msra.mxu0 %v4310
    %4332 = vmatprep.subr.bf16.mxu0 %v4315
    %4333 = vmatpush1.bf16.msra.mxu0 %v4314
    %4334 = vmatprep.subr.bf16.mxu0 0
    %4335 = vmatpush1.bf16.msra.mxu0 0
    %4336 = vmatprep.subr.bf16.mxu0 0
    %4337 = vmatpush1.bf16.msra.mxu0 0
    %4338 = vmatprep.subr.bf16.mxu0 0
    %4339 = vmatpush1.bf16.msra.mxu0 0
    %4340 = vmatprep.subr.bf16.mxu0 0
    %4341 = vmatpush1.bf16.msra.mxu0 0
    %4342 = vmatprep.subr.bf16.mxu0 0
    %4343 = vmatpush1.bf16.msra.mxu0 0
    %4344 = vmatprep.subr.bf16.mxu0 0
    %4345 = vmatpush1.bf16.msra.mxu0 0
    %4346 = vmatprep.subr.bf16.mxu0 0
    %4347 = vmatpush1.bf16.msra.mxu0 0
    %4348 = vmatprep.subr.bf16.mxu0 0
    %4349 = vmatpush1.bf16.msra.mxu0 0
    %4350 = vmatprep.mubr.bf16.mxu0 0
    %4351 = vmatmul.mubr.bf16.gmra.mrb[0].mxu0 %v4280
    %v4352 = vpop.f32.mrb[0].mxu0
    %v4353 = vadd.f32 0.0, %v4352
    %v4354 = vpop.f32.mrb[0].mxu0
    %v4355 = vadd.f32 0.0, %v4354
    %v4356 = vpop.f32.mrb[0].mxu0
    %v4357 = vpop.f32.mrb[0].mxu0
    %4358 = vdwg.mxu0
    %4359 = vmatprep.subr.bf16.mxu0 %v4289
    %4360 = vmatpush1.bf16.msra.mxu0 %v4288
    %4361 = vmatprep.subr.bf16.mxu0 %v4293
    %4362 = vmatpush1.bf16.msra.mxu0 %v4292
    %4363 = vmatprep.subr.bf16.mxu0 %v4297
    %4364 = vmatpush1.bf16.msra.mxu0 %v4296
    %4365 = vmatprep.subr.bf16.mxu0 %v4301
    %4366 = vmatpush1.bf16.msra.mxu0 %v4300
    %4367 = vmatprep.subr.bf16.mxu0 %v4305
    %4368 = vmatpush1.bf16.msra.mxu0 %v4304
    %4369 = vmatprep.subr.bf16.mxu0 %v4309
    %4370 = vmatpush1.bf16.msra.mxu0 %v4308
    %4371 = vmatprep.subr.bf16.mxu0 %v4313
    %4372 = vmatpush1.bf16.msra.mxu0 %v4312
    %4373 = vmatprep.subr.bf16.mxu0 %v4317
    %4374 = vmatpush1.bf16.msra.mxu0 %v4316
    %4375 = vmatprep.subr.bf16.mxu0 0
    %4376 = vmatpush1.bf16.msra.mxu0 0
    %4377 = vmatprep.subr.bf16.mxu0 0
    %4378 = vmatpush1.bf16.msra.mxu0 0
    %4379 = vmatprep.subr.bf16.mxu0 0
    %4380 = vmatpush1.bf16.msra.mxu0 0
    %4381 = vmatprep.subr.bf16.mxu0 0
    %4382 = vmatpush1.bf16.msra.mxu0 0
    %4383 = vmatprep.subr.bf16.mxu0 0
    %4384 = vmatpush1.bf16.msra.mxu0 0
    %4385 = vmatprep.subr.bf16.mxu0 0
    %4386 = vmatpush1.bf16.msra.mxu0 0
    %4387 = vmatprep.subr.bf16.mxu0 0
    %4388 = vmatpush1.bf16.msra.mxu0 0
    %4389 = vmatprep.subr.bf16.mxu0 0
    %4390 = vmatpush1.bf16.msra.mxu0 0
    %4391 = vmatprep.mubr.bf16.mxu0 0
    %4392 = vmatmul.mubr.bf16.gmra.mrb[0].mxu0 %v4280
    %v4393 = vpop.f32.mrb[0].mxu0
    %v4394 = vadd.f32 0.0, %v4393
    %v4395 = vpop.f32.mrb[0].mxu0
    %v4396 = vadd.f32 0.0, %v4395
    %v4397 = vpop.f32.mrb[0].mxu0
    %v4398 = vpop.f32.mrb[0].mxu0
    %4399 = vdwg.mxu0
    %v4400 = vadd.f32 %v4282, %v4353
    %v4401 = vadd.f32 %v4283, %v4355
    %v4402 = vadd.f32 %v4284, %v4394
    %v4403 = vadd.f32 %v4285, %v4396
    %v4404 = vxor.u32 %v4400, 2147483648
    %v4405 = vxor.u32 %v4401, 2147483648
    %v4406 = vxor.u32 %v4402, 2147483648
    %v4407 = vmul.f32 %v4404, 1.442695
    %v4408 = vpow.pop %v4407
    %v4409 = vmul.f32 %v4405, 1.442695
    %v4410 = vpow.pop %v4409
    %v4411 = vmul.f32 %v4406, 1.442695
    %v4412 = vpow.pop %v4411
    %v4413 = vadd.f32 %v4408, 1.0
    %v4414 = vadd.f32 %v4410, 1.0
    %v4415 = vadd.f32 %v4412, 1.0
    %v4416 = vrcp.pop %v4413
    %v4417 = vmul.f32 1.0, %v4416
    %v4418 = vrcp.pop %v4414
    %v4419 = vmul.f32 1.0, %v4418
    %v4420 = vrcp.pop %v4415
    %v4421 = vmul.f32 1.0, %v4420
    %v4422 = vtanh.pop %v4403
    %v4423 = vmul.f32 %v4419, %v4277
    %v4424 = vmul.f32 %v4417, %v4422
    %v4425 = vadd.f32 %v4423, %v4424
    %v4426 = vtanh.pop %v4425
    %v4427 = vmul.f32 %v4421, %v4426
    %v4428 = vpack.c.bf16 %v4427, %v4427
    %v4430 = vrot.slane %v4428, 4
    %4432 = vst [vmem:[#allocation3 + $0x10] sm:$0xf0] %v4430
    %v4433 = vld [vmem:[#allocation2 + $0xc0] sm:$0xff]
    %v4434 = vld [vmem:[#allocation2 + $0xc8] sm:$0xff]
    %v4435 = vld [vmem:[#allocation2 + $0xd0] sm:$0xff]
    %v4436 = vld [vmem:[#allocation2 + $0xd8] sm:$0xff]
    %v4437 = vld [vmem:[#allocation5] sm:$0xff]
    %v4438 = vld [vmem:[#allocation5 + $0x8] sm:$0xff]
    %v4439 = vld [vmem:[#allocation5 + $0x10] sm:$0xff]
    %v4440 = vld [vmem:[#allocation5 + $0x18] sm:$0xff]
    %v4441 = vld [vmem:[#allocation5 + $0x20] sm:$0xff]
    %v4442 = vld [vmem:[#allocation5 + $0x28] sm:$0xff]
    %v4443 = vld [vmem:[#allocation5 + $0x30] sm:$0xff]
    %v4444 = vld [vmem:[#allocation5 + $0x38] sm:$0xff]
    %v4445 = vld [vmem:[#allocation5 + $0x40] sm:$0xff]
    %v4446 = vld [vmem:[#allocation5 + $0x48] sm:$0xff]
    %v4447 = vld [vmem:[#allocation5 + $0x50] sm:$0xff]
    %v4448 = vld [vmem:[#allocation5 + $0x58] sm:$0xff]
    %v4449 = vld [vmem:[#allocation5 + $0x60] sm:$0xff]
    %v4450 = vld [vmem:[#allocation5 + $0x68] sm:$0xff]
    %v4451 = vld [vmem:[#allocation5 + $0x70] sm:$0xff]
    %v4452 = vld [vmem:[#allocation5 + $0x78] sm:$0xff]
    %v4453 = vld [vmem:[#allocation5 + $0x80] sm:$0xff]
    %v4454 = vld [vmem:[#allocation5 + $0x88] sm:$0xff]
    %v4455 = vld [vmem:[#allocation5 + $0x90] sm:$0xff]
    %v4456 = vld [vmem:[#allocation5 + $0x98] sm:$0xff]
    %v4457 = vld [vmem:[#allocation5 + $0xa0] sm:$0xff]
    %v4458 = vld [vmem:[#allocation5 + $0xa8] sm:$0xff]
    %v4459 = vld [vmem:[#allocation5 + $0xb0] sm:$0xff]
    %v4460 = vld [vmem:[#allocation5 + $0xb8] sm:$0xff]
    %v4461 = vld [vmem:[#allocation5 + $0xc0] sm:$0xff]
    %v4462 = vld [vmem:[#allocation5 + $0xc8] sm:$0xff]
    %v4463 = vld [vmem:[#allocation5 + $0xd0] sm:$0xff]
    %v4464 = vld [vmem:[#allocation5 + $0xd8] sm:$0xff]
    %v4465 = vld [vmem:[#allocation5 + $0xe0] sm:$0xff]
    %v4466 = vld [vmem:[#allocation5 + $0xe8] sm:$0xff]
    %v4467 = vld [vmem:[#allocation5 + $0xf0] sm:$0xff]
    %v4468 = vld [vmem:[#allocation5 + $0xf8] sm:$0xff]
    %4469 = vmatprep.subr.bf16.mxu0 %v4438
    %4470 = vmatpush1.bf16.msra.mxu0 %v4437
    %4471 = vmatprep.subr.bf16.mxu0 %v4442
    %4472 = vmatpush1.bf16.msra.mxu0 %v4441
    %4473 = vmatprep.subr.bf16.mxu0 %v4446
    %4474 = vmatpush1.bf16.msra.mxu0 %v4445
    %4475 = vmatprep.subr.bf16.mxu0 %v4450
    %4476 = vmatpush1.bf16.msra.mxu0 %v4449
    %4477 = vmatprep.subr.bf16.mxu0 %v4454
    %4478 = vmatpush1.bf16.msra.mxu0 %v4453
    %4479 = vmatprep.subr.bf16.mxu0 %v4458
    %4480 = vmatpush1.bf16.msra.mxu0 %v4457
    %4481 = vmatprep.subr.bf16.mxu0 %v4462
    %4482 = vmatpush1.bf16.msra.mxu0 %v4461
    %4483 = vmatprep.subr.bf16.mxu0 %v4466
    %4484 = vmatpush1.bf16.msra.mxu0 %v4465
    %4485 = vmatprep.subr.bf16.mxu0 0
    %4486 = vmatpush1.bf16.msra.mxu0 0
    %4487 = vmatprep.subr.bf16.mxu0 0
    %4488 = vmatpush1.bf16.msra.mxu0 0
    %4489 = vmatprep.subr.bf16.mxu0 0
    %4490 = vmatpush1.bf16.msra.mxu0 0
    %4491 = vmatprep.subr.bf16.mxu0 0
    %4492 = vmatpush1.bf16.msra.mxu0 0
    %4493 = vmatprep.subr.bf16.mxu0 0
    %4494 = vmatpush1.bf16.msra.mxu0 0
    %4495 = vmatprep.subr.bf16.mxu0 0
    %4496 = vmatpush1.bf16.msra.mxu0 0
    %4497 = vmatprep.subr.bf16.mxu0 0
    %4498 = vmatpush1.bf16.msra.mxu0 0
    %4499 = vmatprep.subr.bf16.mxu0 0
    %4500 = vmatpush1.bf16.msra.mxu0 0
    %4501 = vmatprep.mubr.bf16.mxu0 0
    %4502 = vmatmul.mubr.bf16.gmra.mrb[0].mxu0 %v4428
    %v4503 = vpop.f32.mrb[0].mxu0
    %v4504 = vadd.f32 0.0, %v4503
    %v4505 = vpop.f32.mrb[0].mxu0
    %v4506 = vadd.f32 0.0, %v4505
    %v4507 = vpop.f32.mrb[0].mxu0
    %v4508 = vpop.f32.mrb[0].mxu0
    %4509 = vdwg.mxu0
    %4510 = vmatprep.subr.bf16.mxu0 %v4440
    %4511 = vmatpush1.bf16.msra.mxu0 %v4439
    %4512 = vmatprep.subr.bf16.mxu0 %v4444
    %4513 = vmatpush1.bf16.msra.mxu0 %v4443
    %4514 = vmatprep.subr.bf16.mxu0 %v4448
    %4515 = vmatpush1.bf16.msra.mxu0 %v4447
    %4516 = vmatprep.subr.bf16.mxu0 %v4452
    %4517 = vmatpush1.bf16.msra.mxu0 %v4451
    %4518 = vmatprep.subr.bf16.mxu0 %v4456
    %4519 = vmatpush1.bf16.msra.mxu0 %v4455
    %4520 = vmatprep.subr.bf16.mxu0 %v4460
    %4521 = vmatpush1.bf16.msra.mxu0 %v4459
    %4522 = vmatprep.subr.bf16.mxu0 %v4464
    %4523 = vmatpush1.bf16.msra.mxu0 %v4463
    %4524 = vmatprep.subr.bf16.mxu0 %v4468
    %4525 = vmatpush1.bf16.msra.mxu0 %v4467
    %4526 = vmatprep.subr.bf16.mxu0 0
    %4527 = vmatpush1.bf16.msra.mxu0 0
    %4528 = vmatprep.subr.bf16.mxu0 0
    %4529 = vmatpush1.bf16.msra.mxu0 0
    %4530 = vmatprep.subr.bf16.mxu0 0
    %4531 = vmatpush1.bf16.msra.mxu0 0
    %4532 = vmatprep.subr.bf16.mxu0 0
    %4533 = vmatpush1.bf16.msra.mxu0 0
    %4534 = vmatprep.subr.bf16.mxu0 0
    %4535 = vmatpush1.bf16.msra.mxu0 0
    %4536 = vmatprep.subr.bf16.mxu0 0
    %4537 = vmatpush1.bf16.msra.mxu0 0
    %4538 = vmatprep.subr.bf16.mxu0 0
    %4539 = vmatpush1.bf16.msra.mxu0 0
    %4540 = vmatprep.subr.bf16.mxu0 0
    %4541 = vmatpush1.bf16.msra.mxu0 0
    %4542 = vmatprep.mubr.bf16.mxu0 0
    %4543 = vmatmul.mubr.bf16.gmra.mrb[0].mxu0 %v4428
    %v4544 = vpop.f32.mrb[0].mxu0
    %v4545 = vadd.f32 0.0, %v4544
    %v4546 = vpop.f32.mrb[0].mxu0
    %v4547 = vadd.f32 0.0, %v4546
    %v4548 = vpop.f32.mrb[0].mxu0
    %v4549 = vpop.f32.mrb[0].mxu0
    %4550 = vdwg.mxu0
    %v4551 = vadd.f32 %v4433, %v4504
    %v4552 = vadd.f32 %v4434, %v4506
    %v4553 = vadd.f32 %v4435, %v4545
    %v4554 = vadd.f32 %v4436, %v4547
    %v4555 = vxor.u32 %v4551, 2147483648
    %v4556 = vxor.u32 %v4552, 2147483648
    %v4557 = vxor.u32 %v4553, 2147483648
    %v4558 = vmul.f32 %v4555, 1.442695
    %v4559 = vpow.pop %v4558
    %v4560 = vmul.f32 %v4556, 1.442695
    %v4561 = vpow.pop %v4560
    %v4562 = vmul.f32 %v4557, 1.442695
    %v4563 = vpow.pop %v4562
    %v4564 = vadd.f32 %v4559, 1.0
    %v4565 = vadd.f32 %v4561, 1.0
    %v4566 = vadd.f32 %v4563, 1.0
    %v4567 = vrcp.pop %v4564
    %v4568 = vmul.f32 1.0, %v4567
    %v4569 = vrcp.pop %v4565
    %v4570 = vmul.f32 1.0, %v4569
    %v4571 = vrcp.pop %v4566
    %v4572 = vmul.f32 1.0, %v4571
    %v4573 = vtanh.pop %v4554
    %v4574 = vmul.f32 %v4570, %v4425
    %v4575 = vmul.f32 %v4568, %v4573
    %v4576 = vadd.f32 %v4574, %v4575
    %v4577 = vtanh.pop %v4576
    %v4578 = vmul.f32 %v4572, %v4577
    %v4579 = vpack.c.bf16 %v4578, %v4578
    %4580 = vst [vmem:[#allocation3 + $0x18] sm:$0xf] %v4579
    %v4581 = vld [vmem:[#allocation2 + $0xe0] sm:$0xff]
    %v4582 = vld [vmem:[#allocation2 + $0xe8] sm:$0xff]
    %v4583 = vld [vmem:[#allocation2 + $0xf0] sm:$0xff]
    %v4584 = vld [vmem:[#allocation2 + $0xf8] sm:$0xff]
    %v4585 = vld [vmem:[#allocation5] sm:$0xff]
    %v4586 = vld [vmem:[#allocation5 + $0x8] sm:$0xff]
    %v4587 = vld [vmem:[#allocation5 + $0x10] sm:$0xff]
    %v4588 = vld [vmem:[#allocation5 + $0x18] sm:$0xff]
    %v4589 = vld [vmem:[#allocation5 + $0x20] sm:$0xff]
    %v4590 = vld [vmem:[#allocation5 + $0x28] sm:$0xff]
    %v4591 = vld [vmem:[#allocation5 + $0x30] sm:$0xff]
    %v4592 = vld [vmem:[#allocation5 + $0x38] sm:$0xff]
    %v4593 = vld [vmem:[#allocation5 + $0x40] sm:$0xff]
    %v4594 = vld [vmem:[#allocation5 + $0x48] sm:$0xff]
    %v4595 = vld [vmem:[#allocation5 + $0x50] sm:$0xff]
    %v4596 = vld [vmem:[#allocation5 + $0x58] sm:$0xff]
    %v4597 = vld [vmem:[#allocation5 + $0x60] sm:$0xff]
    %v4598 = vld [vmem:[#allocation5 + $0x68] sm:$0xff]
    %v4599 = vld [vmem:[#allocation5 + $0x70] sm:$0xff]
    %v4600 = vld [vmem:[#allocation5 + $0x78] sm:$0xff]
    %v4601 = vld [vmem:[#allocation5 + $0x80] sm:$0xff]
    %v4602 = vld [vmem:[#allocation5 + $0x88] sm:$0xff]
    %v4603 = vld [vmem:[#allocation5 + $0x90] sm:$0xff]
    %v4604 = vld [vmem:[#allocation5 + $0x98] sm:$0xff]
    %v4605 = vld [vmem:[#allocation5 + $0xa0] sm:$0xff]
    %v4606 = vld [vmem:[#allocation5 + $0xa8] sm:$0xff]
    %v4607 = vld [vmem:[#allocation5 + $0xb0] sm:$0xff]
    %v4608 = vld [vmem:[#allocation5 + $0xb8] sm:$0xff]
    %v4609 = vld [vmem:[#allocation5 + $0xc0] sm:$0xff]
    %v4610 = vld [vmem:[#allocation5 + $0xc8] sm:$0xff]
    %v4611 = vld [vmem:[#allocation5 + $0xd0] sm:$0xff]
    %v4612 = vld [vmem:[#allocation5 + $0xd8] sm:$0xff]
    %v4613 = vld [vmem:[#allocation5 + $0xe0] sm:$0xff]
    %v4614 = vld [vmem:[#allocation5 + $0xe8] sm:$0xff]
    %v4615 = vld [vmem:[#allocation5 + $0xf0] sm:$0xff]
    %v4616 = vld [vmem:[#allocation5 + $0xf8] sm:$0xff]
    %4617 = vmatprep.subr.bf16.mxu0 %v4586
    %4618 = vmatpush1.bf16.msra.mxu0 %v4585
    %4619 = vmatprep.subr.bf16.mxu0 %v4590
    %4620 = vmatpush1.bf16.msra.mxu0 %v4589
    %4621 = vmatprep.subr.bf16.mxu0 %v4594
    %4622 = vmatpush1.bf16.msra.mxu0 %v4593
    %4623 = vmatprep.subr.bf16.mxu0 %v4598
    %4624 = vmatpush1.bf16.msra.mxu0 %v4597
    %4625 = vmatprep.subr.bf16.mxu0 %v4602
    %4626 = vmatpush1.bf16.msra.mxu0 %v4601
    %4627 = vmatprep.subr.bf16.mxu0 %v4606
    %4628 = vmatpush1.bf16.msra.mxu0 %v4605
    %4629 = vmatprep.subr.bf16.mxu0 %v4610
    %4630 = vmatpush1.bf16.msra.mxu0 %v4609
    %4631 = vmatprep.subr.bf16.mxu0 %v4614
    %4632 = vmatpush1.bf16.msra.mxu0 %v4613
    %4633 = vmatprep.subr.bf16.mxu0 0
    %4634 = vmatpush1.bf16.msra.mxu0 0
    %4635 = vmatprep.subr.bf16.mxu0 0
    %4636 = vmatpush1.bf16.msra.mxu0 0
    %4637 = vmatprep.subr.bf16.mxu0 0
    %4638 = vmatpush1.bf16.msra.mxu0 0
    %4639 = vmatprep.subr.bf16.mxu0 0
    %4640 = vmatpush1.bf16.msra.mxu0 0
    %4641 = vmatprep.subr.bf16.mxu0 0
    %4642 = vmatpush1.bf16.msra.mxu0 0
    %4643 = vmatprep.subr.bf16.mxu0 0
    %4644 = vmatpush1.bf16.msra.mxu0 0
    %4645 = vmatprep.subr.bf16.mxu0 0
    %4646 = vmatpush1.bf16.msra.mxu0 0
    %4647 = vmatprep.subr.bf16.mxu0 0
    %4648 = vmatpush1.bf16.msra.mxu0 0
    %4649 = vmatprep.mubr.bf16.mxu0 0
    %4650 = vmatmul.mubr.bf16.gmra.mrb[0].mxu0 %v4579
    %v4651 = vpop.f32.mrb[0].mxu0
    %v4652 = vadd.f32 0.0, %v4651
    %v4653 = vpop.f32.mrb[0].mxu0
    %v4654 = vadd.f32 0.0, %v4653
    %v4655 = vpop.f32.mrb[0].mxu0
    %v4656 = vpop.f32.mrb[0].mxu0
    %4657 = vdwg.mxu0
    %4658 = vmatprep.subr.bf16.mxu0 %v4588
    %4659 = vmatpush1.bf16.msra.mxu0 %v4587
    %4660 = vmatprep.subr.bf16.mxu0 %v4592
    %4661 = vmatpush1.bf16.msra.mxu0 %v4591
    %4662 = vmatprep.subr.bf16.mxu0 %v4596
    %4663 = vmatpush1.bf16.msra.mxu0 %v4595
    %4664 = vmatprep.subr.bf16.mxu0 %v4600
    %4665 = vmatpush1.bf16.msra.mxu0 %v4599
    %4666 = vmatprep.subr.bf16.mxu0 %v4604
    %4667 = vmatpush1.bf16.msra.mxu0 %v4603
    %4668 = vmatprep.subr.bf16.mxu0 %v4608
    %4669 = vmatpush1.bf16.msra.mxu0 %v4607
    %4670 = vmatprep.subr.bf16.mxu0 %v4612
    %4671 = vmatpush1.bf16.msra.mxu0 %v4611
    %4672 = vmatprep.subr.bf16.mxu0 %v4616
    %4673 = vmatpush1.bf16.msra.mxu0 %v4615
    %4674 = vmatprep.subr.bf16.mxu0 0
    %4675 = vmatpush1.bf16.msra.mxu0 0
    %4676 = vmatprep.subr.bf16.mxu0 0
    %4677 = vmatpush1.bf16.msra.mxu0 0
    %4678 = vmatprep.subr.bf16.mxu0 0
    %4679 = vmatpush1.bf16.msra.mxu0 0
    %4680 = vmatprep.subr.bf16.mxu0 0
    %4681 = vmatpush1.bf16.msra.mxu0 0
    %4682 = vmatprep.subr.bf16.mxu0 0
    %4683 = vmatpush1.bf16.msra.mxu0 0
    %4684 = vmatprep.subr.bf16.mxu0 0
    %4685 = vmatpush1.bf16.msra.mxu0 0
    %4686 = vmatprep.subr.bf16.mxu0 0
    %4687 = vmatpush1.bf16.msra.mxu0 0
    %4688 = vmatprep.subr.bf16.mxu0 0
    %4689 = vmatpush1.bf16.msra.mxu0 0
    %4690 = vmatprep.mubr.bf16.mxu0 0
    %4691 = vmatmul.mubr.bf16.gmra.mrb[0].mxu0 %v4579
    %v4692 = vpop.f32.mrb[0].mxu0
    %v4693 = vadd.f32 0.0, %v4692
    %v4694 = vpop.f32.mrb[0].mxu0
    %v4695 = vadd.f32 0.0, %v4694
    %v4696 = vpop.f32.mrb[0].mxu0
    %v4697 = vpop.f32.mrb[0].mxu0
    %4698 = vdwg.mxu0
    %v4699 = vadd.f32 %v4581, %v4652
    %v4700 = vadd.f32 %v4582, %v4654
    %v4701 = vadd.f32 %v4583, %v4693
    %v4702 = vadd.f32 %v4584, %v4695
    %v4703 = vxor.u32 %v4699, 2147483648
    %v4704 = vxor.u32 %v4700, 2147483648
    %v4705 = vxor.u32 %v4701, 2147483648
    %v4706 = vmul.f32 %v4703, 1.442695
    %v4707 = vpow.pop %v4706
    %v4708 = vmul.f32 %v4704, 1.442695
    %v4709 = vpow.pop %v4708
    %v4710 = vmul.f32 %v4705, 1.442695
    %v4711 = vpow.pop %v4710
    %v4712 = vadd.f32 %v4707, 1.0
    %v4713 = vadd.f32 %v4709, 1.0
    %v4714 = vadd.f32 %v4711, 1.0
    %v4715 = vrcp.pop %v4712
    %v4716 = vmul.f32 1.0, %v4715
    %v4717 = vrcp.pop %v4713
    %v4718 = vmul.f32 1.0, %v4717
    %v4719 = vrcp.pop %v4714
    %v4720 = vmul.f32 1.0, %v4719
    %v4721 = vtanh.pop %v4702
    %v4722 = vmul.f32 %v4718, %v4576
    %v4723 = vmul.f32 %v4716, %v4721
    %v4724 = vadd.f32 %v4722, %v4723
    %v4725 = vtanh.pop %v4724
    %v4726 = vmul.f32 %v4720, %v4725
    %v4727 = vpack.c.bf16 %v4726, %v4726
    %v4729 = vrot.slane %v4727, 4
    %4731 = vst [vmem:[#allocation3 + $0x18] sm:$0xf0] %v4729
    %s4732 = smul.u32 %s3294, 8
    %s4733 = sshll.u32 %s4732, 4
    %4734 = dma.done %s151, %s4733
    %v4735 = vld [vmem:[#allocation3] sm:$0xff]
    %v4736 = vld [vmem:[#allocation3 + $0x8] sm:$0xff]
    %v4737 = vld [vmem:[#allocation3 + $0x10] sm:$0xff]
    %v4738 = vld [vmem:[#allocation3 + $0x18] sm:$0xff]
    %v4739 = vld [vmem:[#allocation6] sm:$0xff]
    %v4740 = vld [vmem:[#allocation6 + $0x8] sm:$0xff]
    %v4741 = vld [vmem:[#allocation6 + $0x10] sm:$0xff]
    %v4742 = vld [vmem:[#allocation6 + $0x18] sm:$0xff]
    %v4743 = vld [vmem:[#allocation6 + $0x20] sm:$0xff]
    %v4744 = vld [vmem:[#allocation6 + $0x28] sm:$0xff]
    %v4745 = vld [vmem:[#allocation6 + $0x30] sm:$0xff]
    %v4746 = vld [vmem:[#allocation6 + $0x38] sm:$0xff]
    %v4747 = vld [vmem:[#allocation6 + $0x40] sm:$0xff]
    %v4748 = vld [vmem:[#allocation6 + $0x48] sm:$0xff]
    %v4749 = vld [vmem:[#allocation6 + $0x50] sm:$0xff]
    %v4750 = vld [vmem:[#allocation6 + $0x58] sm:$0xff]
    %v4751 = vld [vmem:[#allocation6 + $0x60] sm:$0xff]
    %v4752 = vld [vmem:[#allocation6 + $0x68] sm:$0xff]
    %v4753 = vld [vmem:[#allocation6 + $0x70] sm:$0xff]
    %v4754 = vld [vmem:[#allocation6 + $0x78] sm:$0xff]
    %v4755 = vld [vmem:[#allocation6 + $0x80] sm:$0xff]
    %v4756 = vld [vmem:[#allocation6 + $0x88] sm:$0xff]
    %v4757 = vld [vmem:[#allocation6 + $0x90] sm:$0xff]
    %v4758 = vld [vmem:[#allocation6 + $0x98] sm:$0xff]
    %v4759 = vld [vmem:[#allocation6 + $0xa0] sm:$0xff]
    %v4760 = vld [vmem:[#allocation6 + $0xa8] sm:$0xff]
    %v4761 = vld [vmem:[#allocation6 + $0xb0] sm:$0xff]
    %v4762 = vld [vmem:[#allocation6 + $0xb8] sm:$0xff]
    %v4763 = vld [vmem:[#allocation6 + $0xc0] sm:$0xff]
    %v4764 = vld [vmem:[#allocation6 + $0xc8] sm:$0xff]
    %v4765 = vld [vmem:[#allocation6 + $0xd0] sm:$0xff]
    %v4766 = vld [vmem:[#allocation6 + $0xd8] sm:$0xff]
    %v4767 = vld [vmem:[#allocation6 + $0xe0] sm:$0xff]
    %v4768 = vld [vmem:[#allocation6 + $0xe8] sm:$0xff]
    %v4769 = vld [vmem:[#allocation6 + $0xf0] sm:$0xff]
    %v4770 = vld [vmem:[#allocation6 + $0xf8] sm:$0xff]
    %v4771 = vld [vmem:[#allocation6 + $0x100] sm:$0xff]
    %v4772 = vld [vmem:[#allocation6 + $0x108] sm:$0xff]
    %v4773 = vld [vmem:[#allocation6 + $0x110] sm:$0xff]
    %v4774 = vld [vmem:[#allocation6 + $0x118] sm:$0xff]
    %v4775 = vld [vmem:[#allocation6 + $0x120] sm:$0xff]
    %v4776 = vld [vmem:[#allocation6 + $0x128] sm:$0xff]
    %v4777 = vld [vmem:[#allocation6 + $0x130] sm:$0xff]
    %v4778 = vld [vmem:[#allocation6 + $0x138] sm:$0xff]
    %v4779 = vld [vmem:[#allocation6 + $0x140] sm:$0xff]
    %v4780 = vld [vmem:[#allocation6 + $0x148] sm:$0xff]
    %v4781 = vld [vmem:[#allocation6 + $0x150] sm:$0xff]
    %v4782 = vld [vmem:[#allocation6 + $0x158] sm:$0xff]
    %v4783 = vld [vmem:[#allocation6 + $0x160] sm:$0xff]
    %v4784 = vld [vmem:[#allocation6 + $0x168] sm:$0xff]
    %v4785 = vld [vmem:[#allocation6 + $0x170] sm:$0xff]
    %v4786 = vld [vmem:[#allocation6 + $0x178] sm:$0xff]
    %v4787 = vld [vmem:[#allocation6 + $0x180] sm:$0xff]
    %v4788 = vld [vmem:[#allocation6 + $0x188] sm:$0xff]
    %v4789 = vld [vmem:[#allocation6 + $0x190] sm:$0xff]
    %v4790 = vld [vmem:[#allocation6 + $0x198] sm:$0xff]
    %v4791 = vld [vmem:[#allocation6 + $0x1a0] sm:$0xff]
    %v4792 = vld [vmem:[#allocation6 + $0x1a8] sm:$0xff]
    %v4793 = vld [vmem:[#allocation6 + $0x1b0] sm:$0xff]
    %v4794 = vld [vmem:[#allocation6 + $0x1b8] sm:$0xff]
    %v4795 = vld [vmem:[#allocation6 + $0x1c0] sm:$0xff]
    %v4796 = vld [vmem:[#allocation6 + $0x1c8] sm:$0xff]
    %v4797 = vld [vmem:[#allocation6 + $0x1d0] sm:$0xff]
    %v4798 = vld [vmem:[#allocation6 + $0x1d8] sm:$0xff]
    %v4799 = vld [vmem:[#allocation6 + $0x1e0] sm:$0xff]
    %v4800 = vld [vmem:[#allocation6 + $0x1e8] sm:$0xff]
    %v4801 = vld [vmem:[#allocation6 + $0x1f0] sm:$0xff]
    %v4802 = vld [vmem:[#allocation6 + $0x1f8] sm:$0xff]
    %v4803 = vld [vmem:[%s5] sm:$0xff]
    %v4805 = vlaneseq
    %v4806 = vshrl.u32 %v4805, 7
    %v4807 = vsub.s32 0, %v4806
    %v4808 = vrot.slane %v4803, %v4807
    %v4809 = vlaneseq
    %v4810 = vshrl.u32 %v4809, 7
    %v4811 = vsub.s32 1, %v4810
    %v4812 = vrot.slane %v4803, %v4811
    %v4813 = vlaneseq
    %v4814 = vshrl.u32 %v4813, 7
    %v4815 = vsub.s32 2, %v4814
    %v4816 = vrot.slane %v4803, %v4815
    %v4817 = vlaneseq
    %v4818 = vshrl.u32 %v4817, 7
    %v4819 = vsub.s32 3, %v4818
    %v4820 = vrot.slane %v4803, %v4819
    %v4821 = vlaneseq
    %v4822 = vshrl.u32 %v4821, 7
    %v4823 = vsub.s32 4, %v4822
    %v4824 = vrot.slane %v4803, %v4823
    %v4825 = vlaneseq
    %v4826 = vshrl.u32 %v4825, 7
    %v4827 = vsub.s32 5, %v4826
    %v4828 = vrot.slane %v4803, %v4827
    %v4829 = vlaneseq
    %v4830 = vshrl.u32 %v4829, 7
    %v4831 = vsub.s32 6, %v4830
    %v4832 = vrot.slane %v4803, %v4831
    %v4833 = vlaneseq
    %v4834 = vshrl.u32 %v4833, 7
    %v4835 = vsub.s32 7, %v4834
    %v4836 = vrot.slane %v4803, %v4835
    %4845 = vmatprep.subr.bf16.mxu0 %v4740
    %4846 = vmatpush1.bf16.msra.mxu0 %v4739
    %4847 = vmatprep.subr.bf16.mxu0 %v4748
    %4848 = vmatpush1.bf16.msra.mxu0 %v4747
    %4849 = vmatprep.subr.bf16.mxu0 %v4756
    %4850 = vmatpush1.bf16.msra.mxu0 %v4755
    %4851 = vmatprep.subr.bf16.mxu0 %v4764
    %4852 = vmatpush1.bf16.msra.mxu0 %v4763
    %4853 = vmatprep.subr.bf16.mxu0 %v4772
    %4854 = vmatpush1.bf16.msra.mxu0 %v4771
    %4855 = vmatprep.subr.bf16.mxu0 %v4780
    %4856 = vmatpush1.bf16.msra.mxu0 %v4779
    %4857 = vmatprep.subr.bf16.mxu0 %v4788
    %4858 = vmatpush1.bf16.msra.mxu0 %v4787
    %4859 = vmatprep.subr.bf16.mxu0 %v4796
    %4860 = vmatpush1.bf16.msra.mxu0 %v4795
    %4861 = vmatprep.subr.bf16.mxu0 0
    %4862 = vmatpush1.bf16.msra.mxu0 0
    %4863 = vmatprep.subr.bf16.mxu0 0
    %4864 = vmatpush1.bf16.msra.mxu0 0
    %4865 = vmatprep.subr.bf16.mxu0 0
    %4866 = vmatpush1.bf16.msra.mxu0 0
    %4867 = vmatprep.subr.bf16.mxu0 0
    %4868 = vmatpush1.bf16.msra.mxu0 0
    %4869 = vmatprep.subr.bf16.mxu0 0
    %4870 = vmatpush1.bf16.msra.mxu0 0
    %4871 = vmatprep.subr.bf16.mxu0 0
    %4872 = vmatpush1.bf16.msra.mxu0 0
    %4873 = vmatprep.subr.bf16.mxu0 0
    %4874 = vmatpush1.bf16.msra.mxu0 0
    %4875 = vmatprep.subr.bf16.mxu0 0
    %4876 = vmatpush1.bf16.msra.mxu0 0
    %4877 = vmatprep.mubr.bf16.mxu0 0
    %4878 = vmatmul.mubr.bf16.gmra.mrb[0].mxu0 %v4735
    %v4879 = vpop.f32.mrb[0].mxu0
    %v4880 = vadd.f32 %v4808, %v4879
    %v4881 = vpop.f32.mrb[0].mxu0
    %v4882 = vadd.f32 %v4812, %v4881
    %v4883 = vpop.f32.mrb[0].mxu0
    %v4884 = vadd.f32 %v4808, %v4883
    %v4885 = vpop.f32.mrb[0].mxu0
    %v4886 = vadd.f32 %v4812, %v4885
    %4887 = vmatprep.mubr.bf16.mxu0 0
    %4888 = vmatmul.mubr.bf16.gmra.mrb[0].mxu0 %v4736
    %v4889 = vpop.f32.mrb[0].mxu0
    %v4890 = vadd.f32 %v4808, %v4889
    %v4891 = vpop.f32.mrb[0].mxu0
    %v4892 = vadd.f32 %v4812, %v4891
    %v4893 = vpop.f32.mrb[0].mxu0
    %v4894 = vadd.f32 %v4808, %v4893
    %v4895 = vpop.f32.mrb[0].mxu0
    %v4896 = vadd.f32 %v4812, %v4895
    %4897 = vmatprep.mubr.bf16.mxu0 0
    %4898 = vmatmul.mubr.bf16.gmra.mrb[0].mxu0 %v4737
    %v4899 = vpop.f32.mrb[0].mxu0
    %v4900 = vadd.f32 %v4808, %v4899
    %v4901 = vpop.f32.mrb[0].mxu0
    %v4902 = vadd.f32 %v4812, %v4901
    %v4903 = vpop.f32.mrb[0].mxu0
    %v4904 = vadd.f32 %v4808, %v4903
    %v4905 = vpop.f32.mrb[0].mxu0
    %v4906 = vadd.f32 %v4812, %v4905
    %4907 = vmatprep.mubr.bf16.mxu0 0
    %4908 = vmatmul.mubr.bf16.gmra.mrb[0].mxu0 %v4738
    %v4909 = vpop.f32.mrb[0].mxu0
    %v4910 = vadd.f32 %v4808, %v4909
    %v4911 = vpop.f32.mrb[0].mxu0
    %v4912 = vadd.f32 %v4812, %v4911
    %v4913 = vpop.f32.mrb[0].mxu0
    %v4914 = vadd.f32 %v4808, %v4913
    %v4915 = vpop.f32.mrb[0].mxu0
    %v4916 = vadd.f32 %v4812, %v4915
    %4917 = vdwg.mxu0
    %4918 = vmatprep.subr.bf16.mxu0 %v4742
    %4919 = vmatpush1.bf16.msra.mxu0 %v4741
    %4920 = vmatprep.subr.bf16.mxu0 %v4750
    %4921 = vmatpush1.bf16.msra.mxu0 %v4749
    %4922 = vmatprep.subr.bf16.mxu0 %v4758
    %4923 = vmatpush1.bf16.msra.mxu0 %v4757
    %4924 = vmatprep.subr.bf16.mxu0 %v4766
    %4925 = vmatpush1.bf16.msra.mxu0 %v4765
    %4926 = vmatprep.subr.bf16.mxu0 %v4774
    %4927 = vmatpush1.bf16.msra.mxu0 %v4773
    %4928 = vmatprep.subr.bf16.mxu0 %v4782
    %4929 = vmatpush1.bf16.msra.mxu0 %v4781
    %4930 = vmatprep.subr.bf16.mxu0 %v4790
    %4931 = vmatpush1.bf16.msra.mxu0 %v4789
    %4932 = vmatprep.subr.bf16.mxu0 %v4798
    %4933 = vmatpush1.bf16.msra.mxu0 %v4797
    %4934 = vmatprep.subr.bf16.mxu0 0
    %4935 = vmatpush1.bf16.msra.mxu0 0
    %4936 = vmatprep.subr.bf16.mxu0 0
    %4937 = vmatpush1.bf16.msra.mxu0 0
    %4938 = vmatprep.subr.bf16.mxu0 0
    %4939 = vmatpush1.bf16.msra.mxu0 0
    %4940 = vmatprep.subr.bf16.mxu0 0
    %4941 = vmatpush1.bf16.msra.mxu0 0
    %4942 = vmatprep.subr.bf16.mxu0 0
    %4943 = vmatpush1.bf16.msra.mxu0 0
    %4944 = vmatprep.subr.bf16.mxu0 0
    %4945 = vmatpush1.bf16.msra.mxu0 0
    %4946 = vmatprep.subr.bf16.mxu0 0
    %4947 = vmatpush1.bf16.msra.mxu0 0
    %4948 = vmatprep.subr.bf16.mxu0 0
    %4949 = vmatpush1.bf16.msra.mxu0 0
    %4950 = vmatprep.mubr.bf16.mxu0 0
    %4951 = vmatmul.mubr.bf16.gmra.mrb[0].mxu0 %v4735
    %v4952 = vpop.f32.mrb[0].mxu0
    %v4953 = vadd.f32 %v4816, %v4952
    %v4954 = vpop.f32.mrb[0].mxu0
    %v4955 = vadd.f32 %v4820, %v4954
    %v4956 = vpop.f32.mrb[0].mxu0
    %v4957 = vadd.f32 %v4816, %v4956
    %v4958 = vpop.f32.mrb[0].mxu0
    %v4959 = vadd.f32 %v4820, %v4958
    %4960 = vmatprep.mubr.bf16.mxu0 0
    %4961 = vmatmul.mubr.bf16.gmra.mrb[0].mxu0 %v4736
    %v4962 = vpop.f32.mrb[0].mxu0
    %v4963 = vadd.f32 %v4816, %v4962
    %v4964 = vpop.f32.mrb[0].mxu0
    %v4965 = vadd.f32 %v4820, %v4964
    %v4966 = vpop.f32.mrb[0].mxu0
    %v4967 = vadd.f32 %v4816, %v4966
    %v4968 = vpop.f32.mrb[0].mxu0
    %v4969 = vadd.f32 %v4820, %v4968
    %4970 = vmatprep.mubr.bf16.mxu0 0
    %4971 = vmatmul.mubr.bf16.gmra.mrb[0].mxu0 %v4737
    %v4972 = vpop.f32.mrb[0].mxu0
    %v4973 = vadd.f32 %v4816, %v4972
    %v4974 = vpop.f32.mrb[0].mxu0
    %v4975 = vadd.f32 %v4820, %v4974
    %v4976 = vpop.f32.mrb[0].mxu0
    %v4977 = vadd.f32 %v4816, %v4976
    %v4978 = vpop.f32.mrb[0].mxu0
    %v4979 = vadd.f32 %v4820, %v4978
    %4980 = vmatprep.mubr.bf16.mxu0 0
    %4981 = vmatmul.mubr.bf16.gmra.mrb[0].mxu0 %v4738
    %v4982 = vpop.f32.mrb[0].mxu0
    %v4983 = vadd.f32 %v4816, %v4982
    %v4984 = vpop.f32.mrb[0].mxu0
    %v4985 = vadd.f32 %v4820, %v4984
    %v4986 = vpop.f32.mrb[0].mxu0
    %v4987 = vadd.f32 %v4816, %v4986
    %v4988 = vpop.f32.mrb[0].mxu0
    %v4989 = vadd.f32 %v4820, %v4988
    %4990 = vdwg.mxu0
    %4991 = vmatprep.subr.bf16.mxu0 %v4744
    %4992 = vmatpush1.bf16.msra.mxu0 %v4743
    %4993 = vmatprep.subr.bf16.mxu0 %v4752
    %4994 = vmatpush1.bf16.msra.mxu0 %v4751
    %4995 = vmatprep.subr.bf16.mxu0 %v4760
    %4996 = vmatpush1.bf16.msra.mxu0 %v4759
    %4997 = vmatprep.subr.bf16.mxu0 %v4768
    %4998 = vmatpush1.bf16.msra.mxu0 %v4767
    %4999 = vmatprep.subr.bf16.mxu0 %v4776
    %5000 = vmatpush1.bf16.msra.mxu0 %v4775
    %5001 = vmatprep.subr.bf16.mxu0 %v4784
    %5002 = vmatpush1.bf16.msra.mxu0 %v4783
    %5003 = vmatprep.subr.bf16.mxu0 %v4792
    %5004 = vmatpush1.bf16.msra.mxu0 %v4791
    %5005 = vmatprep.subr.bf16.mxu0 %v4800
    %5006 = vmatpush1.bf16.msra.mxu0 %v4799
    %5007 = vmatprep.subr.bf16.mxu0 0
    %5008 = vmatpush1.bf16.msra.mxu0 0
    %5009 = vmatprep.subr.bf16.mxu0 0
    %5010 = vmatpush1.bf16.msra.mxu0 0
    %5011 = vmatprep.subr.bf16.mxu0 0
    %5012 = vmatpush1.bf16.msra.mxu0 0
    %5013 = vmatprep.subr.bf16.mxu0 0
    %5014 = vmatpush1.bf16.msra.mxu0 0
    %5015 = vmatprep.subr.bf16.mxu0 0
    %5016 = vmatpush1.bf16.msra.mxu0 0
    %5017 = vmatprep.subr.bf16.mxu0 0
    %5018 = vmatpush1.bf16.msra.mxu0 0
    %5019 = vmatprep.subr.bf16.mxu0 0
    %5020 = vmatpush1.bf16.msra.mxu0 0
    %5021 = vmatprep.subr.bf16.mxu0 0
    %5022 = vmatpush1.bf16.msra.mxu0 0
    %5023 = vmatprep.mubr.bf16.mxu0 0
    %5024 = vmatmul.mubr.bf16.gmra.mrb[0].mxu0 %v4735
    %v5025 = vpop.f32.mrb[0].mxu0
    %v5026 = vadd.f32 %v4824, %v5025
    %v5027 = vpop.f32.mrb[0].mxu0
    %v5028 = vadd.f32 %v4828, %v5027
    %v5029 = vpop.f32.mrb[0].mxu0
    %v5030 = vadd.f32 %v4824, %v5029
    %v5031 = vpop.f32.mrb[0].mxu0
    %v5032 = vadd.f32 %v4828, %v5031
    %5033 = vmatprep.mubr.bf16.mxu0 0
    %5034 = vmatmul.mubr.bf16.gmra.mrb[0].mxu0 %v4736
    %v5035 = vpop.f32.mrb[0].mxu0
    %v5036 = vadd.f32 %v4824, %v5035
    %v5037 = vpop.f32.mrb[0].mxu0
    %v5038 = vadd.f32 %v4828, %v5037
    %v5039 = vpop.f32.mrb[0].mxu0
    %v5040 = vadd.f32 %v4824, %v5039
    %v5041 = vpop.f32.mrb[0].mxu0
    %v5042 = vadd.f32 %v4828, %v5041
    %5043 = vmatprep.mubr.bf16.mxu0 0
    %5044 = vmatmul.mubr.bf16.gmra.mrb[0].mxu0 %v4737
    %v5045 = vpop.f32.mrb[0].mxu0
    %v5046 = vadd.f32 %v4824, %v5045
    %v5047 = vpop.f32.mrb[0].mxu0
    %v5048 = vadd.f32 %v4828, %v5047
    %v5049 = vpop.f32.mrb[0].mxu0
    %v5050 = vadd.f32 %v4824, %v5049
    %v5051 = vpop.f32.mrb[0].mxu0
    %v5052 = vadd.f32 %v4828, %v5051
    %5053 = vmatprep.mubr.bf16.mxu0 0
    %5054 = vmatmul.mubr.bf16.gmra.mrb[0].mxu0 %v4738
    %v5055 = vpop.f32.mrb[0].mxu0
    %v5056 = vadd.f32 %v4824, %v5055
    %v5057 = vpop.f32.mrb[0].mxu0
    %v5058 = vadd.f32 %v4828, %v5057
    %v5059 = vpop.f32.mrb[0].mxu0
    %v5060 = vadd.f32 %v4824, %v5059
    %v5061 = vpop.f32.mrb[0].mxu0
    %v5062 = vadd.f32 %v4828, %v5061
    %5063 = vdwg.mxu0
    %5064 = vmatprep.subr.bf16.mxu0 %v4746
    %5065 = vmatpush1.bf16.msra.mxu0 %v4745
    %5066 = vmatprep.subr.bf16.mxu0 %v4754
    %5067 = vmatpush1.bf16.msra.mxu0 %v4753
    %5068 = vmatprep.subr.bf16.mxu0 %v4762
    %5069 = vmatpush1.bf16.msra.mxu0 %v4761
    %5070 = vmatprep.subr.bf16.mxu0 %v4770
    %5071 = vmatpush1.bf16.msra.mxu0 %v4769
    %5072 = vmatprep.subr.bf16.mxu0 %v4778
    %5073 = vmatpush1.bf16.msra.mxu0 %v4777
    %5074 = vmatprep.subr.bf16.mxu0 %v4786
    %5075 = vmatpush1.bf16.msra.mxu0 %v4785
    %5076 = vmatprep.subr.bf16.mxu0 %v4794
    %5077 = vmatpush1.bf16.msra.mxu0 %v4793
    %5078 = vmatprep.subr.bf16.mxu0 %v4802
    %5079 = vmatpush1.bf16.msra.mxu0 %v4801
    %5080 = vmatprep.subr.bf16.mxu0 0
    %5081 = vmatpush1.bf16.msra.mxu0 0
    %5082 = vmatprep.subr.bf16.mxu0 0
    %5083 = vmatpush1.bf16.msra.mxu0 0
    %5084 = vmatprep.subr.bf16.mxu0 0
    %5085 = vmatpush1.bf16.msra.mxu0 0
    %5086 = vmatprep.subr.bf16.mxu0 0
    %5087 = vmatpush1.bf16.msra.mxu0 0
    %5088 = vmatprep.subr.bf16.mxu0 0
    %5089 = vmatpush1.bf16.msra.mxu0 0
    %5090 = vmatprep.subr.bf16.mxu0 0
    %5091 = vmatpush1.bf16.msra.mxu0 0
    %5092 = vmatprep.subr.bf16.mxu0 0
    %5093 = vmatpush1.bf16.msra.mxu0 0
    %5094 = vmatprep.subr.bf16.mxu0 0
    %5095 = vmatpush1.bf16.msra.mxu0 0
    %5096 = vmatprep.mubr.bf16.mxu0 0
    %5097 = vmatmul.mubr.bf16.gmra.mrb[0].mxu0 %v4735
    %v5098 = vpop.f32.mrb[0].mxu0
    %v5099 = vadd.f32 %v4832, %v5098
    %v5100 = vpop.f32.mrb[0].mxu0
    %v5101 = vadd.f32 %v4836, %v5100
    %v5102 = vpop.f32.mrb[0].mxu0
    %v5103 = vadd.f32 %v4832, %v5102
    %v5104 = vpop.f32.mrb[0].mxu0
    %v5105 = vadd.f32 %v4836, %v5104
    %5106 = vmatprep.mubr.bf16.mxu0 0
    %5107 = vmatmul.mubr.bf16.gmra.mrb[0].mxu0 %v4736
    %v5108 = vpop.f32.mrb[0].mxu0
    %v5109 = vadd.f32 %v4832, %v5108
    %v5110 = vpop.f32.mrb[0].mxu0
    %v5111 = vadd.f32 %v4836, %v5110
    %v5112 = vpop.f32.mrb[0].mxu0
    %v5113 = vadd.f32 %v4832, %v5112
    %v5114 = vpop.f32.mrb[0].mxu0
    %v5115 = vadd.f32 %v4836, %v5114
    %5116 = vmatprep.mubr.bf16.mxu0 0
    %5117 = vmatmul.mubr.bf16.gmra.mrb[0].mxu0 %v4737
    %v5118 = vpop.f32.mrb[0].mxu0
    %v5119 = vadd.f32 %v4832, %v5118
    %v5120 = vpop.f32.mrb[0].mxu0
    %v5121 = vadd.f32 %v4836, %v5120
    %v5122 = vpop.f32.mrb[0].mxu0
    %v5123 = vadd.f32 %v4832, %v5122
    %v5124 = vpop.f32.mrb[0].mxu0
    %v5125 = vadd.f32 %v4836, %v5124
    %5126 = vmatprep.mubr.bf16.mxu0 0
    %5127 = vmatmul.mubr.bf16.gmra.mrb[0].mxu0 %v4738
    %v5128 = vpop.f32.mrb[0].mxu0
    %v5129 = vadd.f32 %v4832, %v5128
    %v5130 = vpop.f32.mrb[0].mxu0
    %v5131 = vadd.f32 %v4836, %v5130
    %v5132 = vpop.f32.mrb[0].mxu0
    %v5133 = vadd.f32 %v4832, %v5132
    %v5134 = vpop.f32.mrb[0].mxu0
    %v5135 = vadd.f32 %v4836, %v5134
    %5136 = vdwg.mxu0
    %5137 = vst [vmem:[#allocation16] sm:$0xff] %v4880
    %5138 = vst [vmem:[#allocation16 + $0x8] sm:$0xff] %v4882
    %5139 = vst [vmem:[#allocation16 + $0x10] sm:$0xff] %v4953
    %5140 = vst [vmem:[#allocation16 + $0x18] sm:$0xff] %v4955
    %5141 = vst [vmem:[#allocation16 + $0x20] sm:$0xff] %v5026
    %5142 = vst [vmem:[#allocation16 + $0x28] sm:$0xff] %v5028
    %5143 = vst [vmem:[#allocation16 + $0x30] sm:$0xff] %v5099
    %5144 = vst [vmem:[#allocation16 + $0x38] sm:$0xff] %v5101
    %5145 = vst [vmem:[#allocation16 + $0x40] sm:$0xff] %v4884
    %5146 = vst [vmem:[#allocation16 + $0x48] sm:$0xff] %v4886
    %5147 = vst [vmem:[#allocation16 + $0x50] sm:$0xff] %v4957
    %5148 = vst [vmem:[#allocation16 + $0x58] sm:$0xff] %v4959
    %5149 = vst [vmem:[#allocation16 + $0x60] sm:$0xff] %v5030
    %5150 = vst [vmem:[#allocation16 + $0x68] sm:$0xff] %v5032
    %5151 = vst [vmem:[#allocation16 + $0x70] sm:$0xff] %v5103
    %5152 = vst [vmem:[#allocation16 + $0x78] sm:$0xff] %v5105
    %5153 = vst [vmem:[#allocation16 + $0x80] sm:$0xff] %v4890
    %5154 = vst [vmem:[#allocation16 + $0x88] sm:$0xff] %v4892
    %5155 = vst [vmem:[#allocation16 + $0x90] sm:$0xff] %v4963
    %5156 = vst [vmem:[#allocation16 + $0x98] sm:$0xff] %v4965
    %5157 = vst [vmem:[#allocation16 + $0xa0] sm:$0xff] %v5036
    %5158 = vst [vmem:[#allocation16 + $0xa8] sm:$0xff] %v5038
    %5159 = vst [vmem:[#allocation16 + $0xb0] sm:$0xff] %v5109
    %5160 = vst [vmem:[#allocation16 + $0xb8] sm:$0xff] %v5111
    %5161 = vst [vmem:[#allocation16 + $0xc0] sm:$0xff] %v4894
    %5162 = vst [vmem:[#allocation16 + $0xc8] sm:$0xff] %v4896
    %5163 = vst [vmem:[#allocation16 + $0xd0] sm:$0xff] %v4967
    %5164 = vst [vmem:[#allocation16 + $0xd8] sm:$0xff] %v4969
    %5165 = vst [vmem:[#allocation16 + $0xe0] sm:$0xff] %v5040
    %5166 = vst [vmem:[#allocation16 + $0xe8] sm:$0xff] %v5042
    %5167 = vst [vmem:[#allocation16 + $0xf0] sm:$0xff] %v5113
    %5168 = vst [vmem:[#allocation16 + $0xf8] sm:$0xff] %v5115
    %5169 = vst [vmem:[#allocation16 + $0x100] sm:$0xff] %v4900
    %5170 = vst [vmem:[#allocation16 + $0x108] sm:$0xff] %v4902
    %5171 = vst [vmem:[#allocation16 + $0x110] sm:$0xff] %v4973
    %5172 = vst [vmem:[#allocation16 + $0x118] sm:$0xff] %v4975
    %5173 = vst [vmem:[#allocation16 + $0x120] sm:$0xff] %v5046
    %5174 = vst [vmem:[#allocation16 + $0x128] sm:$0xff] %v5048
    %5175 = vst [vmem:[#allocation16 + $0x130] sm:$0xff] %v5119
    %5176 = vst [vmem:[#allocation16 + $0x138] sm:$0xff] %v5121
    %5177 = vst [vmem:[#allocation16 + $0x140] sm:$0xff] %v4904
    %5178 = vst [vmem:[#allocation16 + $0x148] sm:$0xff] %v4906
    %5179 = vst [vmem:[#allocation16 + $0x150] sm:$0xff] %v4977
    %5180 = vst [vmem:[#allocation16 + $0x158] sm:$0xff] %v4979
    %5181 = vst [vmem:[#allocation16 + $0x160] sm:$0xff] %v5050
    %5182 = vst [vmem:[#allocation16 + $0x168] sm:$0xff] %v5052
    %5183 = vst [vmem:[#allocation16 + $0x170] sm:$0xff] %v5123
    %5184 = vst [vmem:[#allocation16 + $0x178] sm:$0xff] %v5125
    %5185 = vst [vmem:[#allocation16 + $0x180] sm:$0xff] %v4910
    %5186 = vst [vmem:[#allocation16 + $0x188] sm:$0xff] %v4912
    %5187 = vst [vmem:[#allocation16 + $0x190] sm:$0xff] %v4983
    %5188 = vst [vmem:[#allocation16 + $0x198] sm:$0xff] %v4985
    %5189 = vst [vmem:[#allocation16 + $0x1a0] sm:$0xff] %v5056
    %5190 = vst [vmem:[#allocation16 + $0x1a8] sm:$0xff] %v5058
    %5191 = vst [vmem:[#allocation16 + $0x1b0] sm:$0xff] %v5129
    %5192 = vst [vmem:[#allocation16 + $0x1b8] sm:$0xff] %v5131
    %5193 = vst [vmem:[#allocation16 + $0x1c0] sm:$0xff] %v4914
    %5194 = vst [vmem:[#allocation16 + $0x1c8] sm:$0xff] %v4916
    %5195 = vst [vmem:[#allocation16 + $0x1d0] sm:$0xff] %v4987
    %5196 = vst [vmem:[#allocation16 + $0x1d8] sm:$0xff] %v4989
    %5197 = vst [vmem:[#allocation16 + $0x1e0] sm:$0xff] %v5060
    %5198 = vst [vmem:[#allocation16 + $0x1e8] sm:$0xff] %v5062
    %5199 = vst [vmem:[#allocation16 + $0x1f0] sm:$0xff] %v5133
    %5200 = vst [vmem:[#allocation16 + $0x1f8] sm:$0xff] %v5135
    // Predicated region
    $region42: #{tpu_custom_call.1} parent=1 // pred_check
      _
    $region43: #{tpu_custom_call.1} parent=1 // pred_check_branch
      %5202 = sbr.rel (0) target = $region45
    $region44: #{tpu_custom_call.1} parent=1 // pred_region
      %s5204 = ssub.s32 8192, 8192
      %5205 = vsyncadd [#allocation10], %s5204
      %s5206 = sshll.u32 [#allocation16], 4
      %s5207 = int_to_ptr.vmem [resolvable:$true] %s5206
      %5212 = dma.vmem_to_hbm [thread:$0]  %s5207, 8192, %s9, [#allocation10], 1024, 1024, 64
    $region45: #{tpu_custom_call.1} parent=1 // pred_fallthru
      _
    // Predicated region
    $region46: #{tpu_custom_call.1} parent=1 // pred_check
      _
    $region47: #{tpu_custom_call.1} parent=1 // pred_check_branch
      %5214 = sbr.rel (0) target = $region49
    $region48: #{tpu_custom_call.1} parent=1 // pred_region
      %5215 = dma.done [#allocation10], 8192
    $region49: #{tpu_custom_call.1} parent=1 // pred_fallthru
      _
    %5216 = vsyncpa [#allocation9], 1
    %5217 = vsyncpa [#allocation12], 1
    %5218 = vsyncpa [#allocation15], 1
    %5219 = vsyncpa [#allocation10], 1
  %5220 = vsyncmov [#allocation7]
  %s5221 = vpop.sfrf %5220
  %p5222 = scmp.eq.s32.totalorder %s5221, 0
  %p5223 = pneg %p5222
  %5225 = shalt.err (%p5223)
  %s5226 = scalar_lea.sflag [#allocation7], 1
  %5227 = vsyncmov %s5226
  %s5228 = vpop.sfrf %5227
  %p5229 = scmp.eq.s32.totalorder %s5228, 0
  %p5230 = pneg %p5229
  %5232 = shalt.err (%p5230)
  %s5233 = scalar_lea.sflag [#allocation7], 2
  %5234 = vsyncmov %s5233
  %s5235 = vpop.sfrf %5234
  %p5236 = scmp.eq.s32.totalorder %s5235, 0
  %p5237 = pneg %p5236
  %5239 = shalt.err (%p5237)

</llo_original>
